<compile_context>
chip_gen: v7x
topology: tpu7x:2x2x1
jax: 0.10.0
libtpu: 0.0.40
codegen_flags: <defaults>
</compile_context>

<pallas_src>
import functools

import numpy as np
import jax
import jax.numpy as jnp
from jax import lax
from jax.experimental import pallas as pl
from jax.experimental.pallas import tpu as pltpu

# MXU input dtype for the fused conv dots.  Setting this to jnp.bfloat16 gives
# 2-4x MXU throughput on v5e/v6e/v7x and halves the tap-stack VMEM footprint,
# at the cost of ~1e-2 abs error vs the f32 reference (the tolerance below is
# relaxed automatically).  Default stays f32 so the strict 1e-4 check holds.
_MXU_DTYPE = jnp.float32


# ---------------------------------------------------------------------------
# Fused decoder kernel: one grid step processes Nb images, all 6 layers.
# ---------------------------------------------------------------------------
def _decoder_kernel(x_ref, m_ref, wA_ref, bA_ref, wB_ref, bB_ref, o_ref,
                    stack_ref, *, C, n_layers, shifts):
    L = x_ref.shape[-1]                                   # Nb * H * W
    masks = m_ref[...]                                    # (9, L) f32

    def leaky(v):                                         # LeakyReLU(0.2)
        return jnp.maximum(v, 0.2 * v)

    def conv3x3(x, w, b):
        # x: (C, L) f32, w: (Cout, 9*C), b: (Cout, 1) f32.
        # Build the 9-tap im2col stack in VMEM scratch: row block t holds the
        # input rolled by the tap's flat offset, with invalid (border /
        # cross-image) lanes zeroed by the precomputed mask.  The roll is an
        # XLU op, so it overlaps the MXU/VPU work.
        for t, s in enumerate(shifts):
            if s == 0:                                    # center tap: no mask
                stack_ref[t * C:(t + 1) * C, :] = x.astype(stack_ref.dtype)
            else:
                rolled = pltpu.roll(x, shift=(-s) % L, axis=1)
                stack_ref[t * C:(t + 1) * C, :] = (
                    rolled * masks[t:t + 1, :]).astype(stack_ref.dtype)
        # Single fused MXU dot, K = 9*C (144 for hidden=16).
        acc = jnp.dot(w, stack_ref[...], preferred_element_type=jnp.float32)
        return acc + b

    x = x_ref[...]                                        # (C, L) f32
    li = 0
    # ResBlocks (decoder mode): ConvT -> LeakyReLU -> ConvT, plus skip.
    for _ in range(n_layers):
        h = leaky(conv3x3(x, wA_ref[li], bA_ref[li]))
        x = conv3x3(h, wA_ref[li + 1], bA_ref[li + 1]) + x
        li += 2
    # Head: ConvT -> LeakyReLU -> ConvT -> Tanh
    x = leaky(conv3x3(x, wA_ref[li], bA_ref[li]))
    y = jnp.tanh(conv3x3(x, wB_ref[...], bB_ref[...]))
    o_ref[...] = y.astype(o_ref.dtype)                    # full 8-sublane store


# ---------------------------------------------------------------------------
# Wrapper helpers
# ---------------------------------------------------------------------------
def _prep_fused(wt):
    """ConvTranspose2d weight (Cin, Cout, 3, 3) -> (Cout, 9*Cin), laid out so
    the equivalent same-pad cross-correlation is one dot against the
    (9*Cin, L) tap stack:  W[co, t*Cin + ci] = wt[ci, co, 2-dy, 2-dx],
    t = dy*3 + dx."""
    cin, cout = wt.shape[0], wt.shape[1]
    w = wt[:, :, ::-1, ::-1]                   # spatial flip
    w = jnp.transpose(w, (1, 2, 3, 0))         # (Cout, 3, 3, Cin)
    return w.reshape(cout, 9 * cin)


def _border_masks(H, W, images_per_step):
    """(9, Nb*H*W) f32 per-tap validity masks, tiled per image so cross-image
    leakage from the flat rolls is zeroed."""
    pos = np.arange(H * W)
    hh, ww = pos // W, pos % W
    rows = []
    for dy in range(3):
        for dx in range(3):
            valid = ((hh + dy - 1 >= 0) & (hh + dy - 1 < H) &
                     (ww + dx - 1 >= 0) & (ww + dx - 1 < W))
            rows.append(valid.astype(np.float32))
    m = np.stack(rows, axis=0)                             # (9, H*W)
    return jnp.asarray(np.tile(m, (1, images_per_step)))   # (9, Nb*H*W)


def _images_per_step(N):
    """Widen the lane axis as much as possible while keeping >=2 grid steps
    (v7x has two TensorCores sharing the grid); avoid many tiny steps."""
    if N <= 1:
        return 1
    nb = max(1, N // 2)
    while N % nb:
        nb -= 1
    return nb


# ---------------------------------------------------------------------------
# Wrapper: weight re-layout + single pallas_call (all under jit).
# ---------------------------------------------------------------------------
@jax.jit
def decoder_forward(params, x):
    """x: (N, C, H, W) NCHW float32  ->  (N, out_channels, H, W)."""
    N, C, H, W = x.shape
    HW = H * W
    Nb = _images_per_step(N)
    G = N // Nb
    L = Nb * HW

    # Pack the 5 hidden->hidden layers (4 ResBlock convs + head1).
    w_list, b_list = [], []
    for (w1, b1), (w2, b2) in params["resblocks"]:
        w_list += [_prep_fused(w1), _prep_fused(w2)]
        b_list += [b1, b2]
    w_list.append(_prep_fused(params["head1"][0]))
    b_list.append(params["head1"][1])
    wA = jnp.stack(w_list, 0).astype(_MXU_DTYPE)                 # (nA, C, 9C)
    bA = jnp.stack(b_list, 0).reshape(-1, C, 1).astype(jnp.float32)
    nA = wA.shape[0]
    n_layers = (nA - 1) // 2

    # Head2 (hidden -> out_channels); pad Cout up to 8 sublanes so the final
    # in-kernel store is a full, unmasked block.
    w_head, b_head = params["head2"]
    Cout = w_head.shape[1]
    CoutP = ((Cout + 7) // 8) * 8
    wB = jnp.pad(_prep_fused(w_head),
                 ((0, CoutP - Cout), (0, 0))).astype(_MXU_DTYPE)
    bB = jnp.pad(b_head.reshape(Cout, 1),
                 ((0, CoutP - Cout), (0, 0))).astype(jnp.float32)

    masks = _border_masks(H, W, Nb)                              # (9, L)
    shifts = tuple((dy - 1) * W + (dx - 1)
                   for dy in range(3) for dx in range(3))

    # Nb images stacked along the lane axis, channel-major: (G, C, Nb*HW).
    x2 = (x.reshape(G, Nb, C, HW).transpose(0, 2, 1, 3)
           .reshape(G, C, L).astype(jnp.float32))

    kernel = functools.partial(_decoder_kernel, C=C, n_layers=n_layers,
                               shifts=shifts)
    out = pl.pallas_call(
        kernel,
        out_shape=jax.ShapeDtypeStruct((G, CoutP, L), jnp.float32),
        grid=(G,),
        in_specs=[
            pl.BlockSpec((None, C, L), lambda g: (g, 0, 0)),     # activations
            pl.BlockSpec((9, L), lambda g: (0, 0)),              # border masks
            pl.BlockSpec((nA, C, 9 * C), lambda g: (0, 0, 0)),   # hidden weights
            pl.BlockSpec((nA, C, 1), lambda g: (0, 0, 0)),       # hidden biases
            pl.BlockSpec((CoutP, 9 * C), lambda g: (0, 0)),      # head2 weight
            pl.BlockSpec((CoutP, 1), lambda g: (0, 0)),          # head2 bias
        ],
        out_specs=pl.BlockSpec((None, CoutP, L), lambda g: (g, 0, 0)),
        scratch_shapes=[pltpu.VMEM((9 * C, L), _MXU_DTYPE)],     # tap stack
        compiler_params=pltpu.CompilerParams(
            dimension_semantics=("parallel",),
            vmem_limit_bytes=32 * 1024 * 1024),
        # TODO(synk): at realistic widths (C>=128, HW>=4096) on v7x (64 MiB
        # VMEM), single-buffer the constant weight specs (pl.Buffered(1)) and
        # tile HW with a halo instead of keeping everything resident.
    )(x2, masks, wA, bA, wB, bB)

    out = (out.reshape(G, CoutP, Nb, HW).transpose(0, 2, 1, 3)
              .reshape(N, CoutP, H, W))
    return out[:, :Cout]


# ---------------------------------------------------------------------------
# Decoder parameters (deterministic, PyTorch-shaped ConvTranspose weights)
# ---------------------------------------------------------------------------
def init_decoder_params(key, hidden=16, out_channels=3, n_layers=2):
    def convt_params(k, cin, cout):
        k1, k2 = jax.random.split(k)
        bound = 1.0 / jnp.sqrt(jnp.float32(cin * 9))
        w = jax.random.uniform(k1, (cin, cout, 3, 3), jnp.float32, -bound, bound)
        bias = jax.random.uniform(k2, (cout,), jnp.float32, -bound, bound)
        return w, bias

    keys = jax.random.split(key, 2 * n_layers + 2)
    idx = 0
    resblocks = []
    for _ in range(n_layers):
        w1, b1 = convt_params(keys[idx], hidden, hidden); idx += 1
        w2, b2 = convt_params(keys[idx], hidden, hidden); idx += 1
        resblocks.append(((w1, b1), (w2, b2)))
    head1 = convt_params(keys[idx], hidden, hidden); idx += 1
    head2 = convt_params(keys[idx], hidden, out_channels); idx += 1
    return {"resblocks": resblocks, "head1": head1, "head2": head2}


# ---------------------------------------------------------------------------
# Pure-JAX reference (NCHW) for correctness check only
# ---------------------------------------------------------------------------
def _conv_ref(x, wt, b):
    # ConvTranspose2d(k=3,s=1,p=1) == flipped-kernel same-pad conv, I/O swapped.
    w = jnp.transpose(wt[:, :, ::-1, ::-1], (1, 0, 2, 3))   # (Cout,Cin,3,3)
    y = lax.conv_general_dilated(
        x, w, window_strides=(1, 1), padding=((1, 1), (1, 1)),
        dimension_numbers=("NCHW", "OIHW", "NCHW"))
    return y + b.reshape(1, -1, 1, 1)


def decoder_ref(params, x):
    leaky = lambda v: jnp.where(v >= 0, v, 0.2 * v)
    for (w1, b1), (w2, b2) in params["resblocks"]:
        h = leaky(_conv_ref(x, w1, b1))
        x = _conv_ref(h, w2, b2) + x
    x = leaky(_conv_ref(x, *params["head1"]))
    x = jnp.tanh(_conv_ref(x, *params["head2"]))
    return x


if __name__ == "__main__":
    key = jax.random.PRNGKey(0)
    kx, kp = jax.random.split(key)

    # Small shapes consistent with the module: batch 4 (-> 2 grid steps of 2
    # lane-stacked images), hidden=16 channels, 16x16 spatial, 3 out channels.
    N, H, W = 4, 16, 16
    hidden, out_ch, n_layers = 16, 3, 2

    x = jax.random.normal(kx, (N, hidden, H, W), jnp.float32)
    params = init_decoder_params(kp, hidden=hidden, out_channels=out_ch,
                                 n_layers=n_layers)

    y = jax.block_until_ready(decoder_forward(params, x))
    assert y.shape == (N, out_ch, H, W), y.shape

    y_ref = decoder_ref(params, x)
    tol = 1e-4 if _MXU_DTYPE == jnp.float32 else 3e-2
    err = float(jnp.max(jnp.abs(y - y_ref)))
    if err > tol:
        raise AssertionError(f"Pallas decoder mismatch vs reference: {err}")

    print("KERNEL_OK")
</pallas_src>

<mosaic_0001>
module attributes {stable_mosaic.version = 11 : i64} {
  func.func @_decoder_kernel(%arg0: i32, %arg1: memref<1x16x512xf32, #tpu.memory_space<vmem>>, %arg2: memref<9x512xf32, #tpu.memory_space<vmem>>, %arg3: memref<5x16x144xf32, #tpu.memory_space<vmem>>, %arg4: memref<5x16x1xf32, #tpu.memory_space<vmem>>, %arg5: memref<8x144xf32, #tpu.memory_space<vmem>>, %arg6: memref<8x1xf32, #tpu.memory_space<vmem>>, %arg7: memref<1x8x512xf32, #tpu.memory_space<vmem>>, %arg8: memref<144x512xf32, #tpu.memory_space<vmem>>) attributes {dimension_semantics = [#tpu.dimension_semantics<parallel>], iteration_bounds = array<i64: 2>, scalar_prefetch = 0 : i64, scratch_operands = 1 : i64, tpu.core_type = #tpu.core_type<tc>, window_params = [{transform_indices = @transform_0, window_bounds = array<i64: 1, 16, 512>}, {pipeline_mode = #tpu.pipeline_mode<synchronous>, transform_indices = @transform_1, window_bounds = array<i64: 9, 512>}, {pipeline_mode = #tpu.pipeline_mode<synchronous>, transform_indices = @transform_2, window_bounds = array<i64: 5, 16, 144>}, {pipeline_mode = #tpu.pipeline_mode<synchronous>, transform_indices = @transform_3, window_bounds = array<i64: 5, 16, 1>}, {pipeline_mode = #tpu.pipeline_mode<synchronous>, transform_indices = @transform_4, window_bounds = array<i64: 8, 144>}, {pipeline_mode = #tpu.pipeline_mode<synchronous>, transform_indices = @transform_5, window_bounds = array<i64: 8, 1>}, {transform_indices = @transform_6, window_bounds = array<i64: 1, 8, 512>}]} {
    %c0 = arith.constant 0 : index
    %c0_0 = arith.constant 0 : index
    %0 = vector.load %arg2[%c0, %c0_0] : memref<9x512xf32, #tpu.memory_space<vmem>>, vector<9x512xf32>
    %c0_1 = arith.constant 0 : index
    %c0_2 = arith.constant 0 : index
    %c0_3 = arith.constant 0 : index
    %1 = vector.load %arg1[%c0_1, %c0_2, %c0_3] : memref<1x16x512xf32, #tpu.memory_space<vmem>>, vector<1x16x512xf32>
    %2 = vector.shape_cast %1 : vector<1x16x512xf32> to vector<16x512xf32>
    %c0_4 = arith.constant 0 : index
    %c0_5 = arith.constant 0 : index
    %c0_6 = arith.constant 0 : index
    %3 = vector.load %arg3[%c0_4, %c0_5, %c0_6] : memref<5x16x144xf32, #tpu.memory_space<vmem>>, vector<1x16x144xf32>
    %4 = vector.shape_cast %3 : vector<1x16x144xf32> to vector<16x144xf32>
    %c0_7 = arith.constant 0 : index
    %c0_8 = arith.constant 0 : index
    %c0_9 = arith.constant 0 : index
    %5 = vector.load %arg4[%c0_7, %c0_8, %c0_9] : memref<5x16x1xf32, #tpu.memory_space<vmem>>, vector<1x16x1xf32>
    %6 = vector.shape_cast %5 : vector<1x16x1xf32> to vector<16x1xf32>
    %c17_i32 = arith.constant 17 : i32
    %7 = tpu.dynamic_rotate %2 by %c17_i32 dim 1 : vector<16x512xf32>, i32 -> vector<16x512xf32>
    %8 = vector.extract_strided_slice %0 {offsets = [0, 0], sizes = [1, 512], strides = [1, 1]} : vector<9x512xf32> to vector<1x512xf32>
    %9 = vector.broadcast %8 : vector<1x512xf32> to vector<16x512xf32>
    %10 = arith.mulf %7, %9 : vector<16x512xf32>
    %c0_10 = arith.constant 0 : index
    %c0_11 = arith.constant 0 : index
    %11 = vector.load %arg8[%c0_10, %c0_11] : memref<144x512xf32, #tpu.memory_space<vmem>>, vector<16x512xf32>
    tpu.vector_store %arg8[%c0_10, %c0_11], %10 {strides = array<i32>} : memref<144x512xf32, #tpu.memory_space<vmem>>, vector<16x512xf32>,
    %c16_i32 = arith.constant 16 : i32
    %12 = tpu.dynamic_rotate %2 by %c16_i32 dim 1 : vector<16x512xf32>, i32 -> vector<16x512xf32>
    %13 = vector.extract_strided_slice %0 {offsets = [1, 0], sizes = [1, 512], strides = [1, 1]} : vector<9x512xf32> to vector<1x512xf32>
    %14 = vector.broadcast %13 : vector<1x512xf32> to vector<16x512xf32>
    %15 = arith.mulf %12, %14 : vector<16x512xf32>
    %c16 = arith.constant 16 : index
    %c0_12 = arith.constant 0 : index
    %16 = vector.load %arg8[%c16, %c0_12] : memref<144x512xf32, #tpu.memory_space<vmem>>, vector<16x512xf32>
    tpu.vector_store %arg8[%c16, %c0_12], %15 {strides = array<i32>} : memref<144x512xf32, #tpu.memory_space<vmem>>, vector<16x512xf32>,
    %c15_i32 = arith.constant 15 : i32
    %17 = tpu.dynamic_rotate %2 by %c15_i32 dim 1 : vector<16x512xf32>, i32 -> vector<16x512xf32>
    %18 = vector.extract_strided_slice %0 {offsets = [2, 0], sizes = [1, 512], strides = [1, 1]} : vector<9x512xf32> to vector<1x512xf32>
    %19 = vector.broadcast %18 : vector<1x512xf32> to vector<16x512xf32>
    %20 = arith.mulf %17, %19 : vector<16x512xf32>
    %c32 = arith.constant 32 : index
    %c0_13 = arith.constant 0 : index
    %21 = vector.load %arg8[%c32, %c0_13] : memref<144x512xf32, #tpu.memory_space<vmem>>, vector<16x512xf32>
    tpu.vector_store %arg8[%c32, %c0_13], %20 {strides = array<i32>} : memref<144x512xf32, #tpu.memory_space<vmem>>, vector<16x512xf32>,
    %c1_i32 = arith.constant 1 : i32
    %22 = tpu.dynamic_rotate %2 by %c1_i32 dim 1 : vector<16x512xf32>, i32 -> vector<16x512xf32>
    %23 = vector.extract_strided_slice %0 {offsets = [3, 0], sizes = [1, 512], strides = [1, 1]} : vector<9x512xf32> to vector<1x512xf32>
    %24 = vector.broadcast %23 : vector<1x512xf32> to vector<16x512xf32>
    %25 = arith.mulf %22, %24 : vector<16x512xf32>
    %c48 = arith.constant 48 : index
    %c0_14 = arith.constant 0 : index
    %26 = vector.load %arg8[%c48, %c0_14] : memref<144x512xf32, #tpu.memory_space<vmem>>, vector<16x512xf32>
    tpu.vector_store %arg8[%c48, %c0_14], %25 {strides = array<i32>} : memref<144x512xf32, #tpu.memory_space<vmem>>, vector<16x512xf32>,
    %c64 = arith.constant 64 : index
    %c0_15 = arith.constant 0 : index
    %27 = vector.load %arg8[%c64, %c0_15] : memref<144x512xf32, #tpu.memory_space<vmem>>, vector<16x512xf32>
    tpu.vector_store %arg8[%c64, %c0_15], %2 {strides = array<i32>} : memref<144x512xf32, #tpu.memory_space<vmem>>, vector<16x512xf32>,
    %c511_i32 = arith.constant 511 : i32
    %28 = tpu.dynamic_rotate %2 by %c511_i32 dim 1 : vector<16x512xf32>, i32 -> vector<16x512xf32>
    %29 = vector.extract_strided_slice %0 {offsets = [5, 0], sizes = [1, 512], strides = [1, 1]} : vector<9x512xf32> to vector<1x512xf32>
    %30 = vector.broadcast %29 : vector<1x512xf32> to vector<16x512xf32>
    %31 = arith.mulf %28, %30 : vector<16x512xf32>
    %c80 = arith.constant 80 : index
    %c0_16 = arith.constant 0 : index
    %32 = vector.load %arg8[%c80, %c0_16] : memref<144x512xf32, #tpu.memory_space<vmem>>, vector<16x512xf32>
    tpu.vector_store %arg8[%c80, %c0_16], %31 {strides = array<i32>} : memref<144x512xf32, #tpu.memory_space<vmem>>, vector<16x512xf32>,
    %c497_i32 = arith.constant 497 : i32
    %33 = tpu.dynamic_rotate %2 by %c497_i32 dim 1 : vector<16x512xf32>, i32 -> vector<16x512xf32>
    %34 = vector.extract_strided_slice %0 {offsets = [6, 0], sizes = [1, 512], strides = [1, 1]} : vector<9x512xf32> to vector<1x512xf32>
    %35 = vector.broadcast %34 : vector<1x512xf32> to vector<16x512xf32>
    %36 = arith.mulf %33, %35 : vector<16x512xf32>
    %c96 = arith.constant 96 : index
    %c0_17 = arith.constant 0 : index
    %37 = vector.load %arg8[%c96, %c0_17] : memref<144x512xf32, #tpu.memory_space<vmem>>, vector<16x512xf32>
    tpu.vector_store %arg8[%c96, %c0_17], %36 {strides = array<i32>} : memref<144x512xf32, #tpu.memory_space<vmem>>, vector<16x512xf32>,
    %c496_i32 = arith.constant 496 : i32
    %38 = tpu.dynamic_rotate %2 by %c496_i32 dim 1 : vector<16x512xf32>, i32 -> vector<16x512xf32>
    %39 = vector.extract_strided_slice %0 {offsets = [7, 0], sizes = [1, 512], strides = [1, 1]} : vector<9x512xf32> to vector<1x512xf32>
    %40 = vector.broadcast %39 : vector<1x512xf32> to vector<16x512xf32>
    %41 = arith.mulf %38, %40 : vector<16x512xf32>
    %c112 = arith.constant 112 : index
    %c0_18 = arith.constant 0 : index
    %42 = vector.load %arg8[%c112, %c0_18] : memref<144x512xf32, #tpu.memory_space<vmem>>, vector<16x512xf32>
    tpu.vector_store %arg8[%c112, %c0_18], %41 {strides = array<i32>} : memref<144x512xf32, #tpu.memory_space<vmem>>, vector<16x512xf32>,
    %c495_i32 = arith.constant 495 : i32
    %43 = tpu.dynamic_rotate %2 by %c495_i32 dim 1 : vector<16x512xf32>, i32 -> vector<16x512xf32>
    %44 = vector.extract_strided_slice %0 {offsets = [8, 0], sizes = [1, 512], strides = [1, 1]} : vector<9x512xf32> to vector<1x512xf32>
    %45 = vector.broadcast %44 : vector<1x512xf32> to vector<16x512xf32>
    %46 = arith.mulf %43, %45 : vector<16x512xf32>
    %c128 = arith.constant 128 : index
    %c0_19 = arith.constant 0 : index
    %47 = vector.load %arg8[%c128, %c0_19] : memref<144x512xf32, #tpu.memory_space<vmem>>, vector<16x512xf32>
    tpu.vector_store %arg8[%c128, %c0_19], %46 {strides = array<i32>} : memref<144x512xf32, #tpu.memory_space<vmem>>, vector<16x512xf32>,
    %c0_20 = arith.constant 0 : index
    %c0_21 = arith.constant 0 : index
    %48 = vector.load %arg8[%c0_20, %c0_21] : memref<144x512xf32, #tpu.memory_space<vmem>>, vector<144x512xf32>
    %cst = arith.constant dense<0.000000e+00> : vector<16x512xf32>
    %49 = tpu.matmul %4, %48, %cst {dimension_numbers = #tpu.dot_dimension_numbers<[1], [0], [0], [1], [0, 0, 1, 1], [], []>} : vector<16x144xf32>, vector<144x512xf32>, vector<16x512xf32> -> vector<16x512xf32>
    %50 = vector.broadcast %6 : vector<16x1xf32> to vector<16x512xf32>
    %51 = arith.addf %49, %50 : vector<16x512xf32>
    %cst_22 = arith.constant 2.000000e-01 : f32
    %52 = vector.broadcast %cst_22 : f32 to vector<16x512xf32>
    %53 = arith.mulf %52, %51 : vector<16x512xf32>
    %54 = arith.maximumf %51, %53 : vector<16x512xf32>
    %c1 = arith.constant 1 : index
    %c0_23 = arith.constant 0 : index
    %c0_24 = arith.constant 0 : index
    %55 = vector.load %arg3[%c1, %c0_23, %c0_24] : memref<5x16x144xf32, #tpu.memory_space<vmem>>, vector<1x16x144xf32>
    %56 = vector.shape_cast %55 : vector<1x16x144xf32> to vector<16x144xf32>
    %c1_25 = arith.constant 1 : index
    %c0_26 = arith.constant 0 : index
    %c0_27 = arith.constant 0 : index
    %57 = vector.load %arg4[%c1_25, %c0_26, %c0_27] : memref<5x16x1xf32, #tpu.memory_space<vmem>>, vector<1x16x1xf32>
    %58 = vector.shape_cast %57 : vector<1x16x1xf32> to vector<16x1xf32>
    %c17_i32_28 = arith.constant 17 : i32
    %59 = tpu.dynamic_rotate %54 by %c17_i32_28 dim 1 : vector<16x512xf32>, i32 -> vector<16x512xf32>
    %60 = vector.extract_strided_slice %0 {offsets = [0, 0], sizes = [1, 512], strides = [1, 1]} : vector<9x512xf32> to vector<1x512xf32>
    %61 = vector.broadcast %60 : vector<1x512xf32> to vector<16x512xf32>
    %62 = arith.mulf %59, %61 : vector<16x512xf32>
    %c0_29 = arith.constant 0 : index
    %c0_30 = arith.constant 0 : index
    %63 = vector.load %arg8[%c0_29, %c0_30] : memref<144x512xf32, #tpu.memory_space<vmem>>, vector<16x512xf32>
    tpu.vector_store %arg8[%c0_29, %c0_30], %62 {strides = array<i32>} : memref<144x512xf32, #tpu.memory_space<vmem>>, vector<16x512xf32>,
    %c16_i32_31 = arith.constant 16 : i32
    %64 = tpu.dynamic_rotate %54 by %c16_i32_31 dim 1 : vector<16x512xf32>, i32 -> vector<16x512xf32>
    %65 = vector.extract_strided_slice %0 {offsets = [1, 0], sizes = [1, 512], strides = [1, 1]} : vector<9x512xf32> to vector<1x512xf32>
    %66 = vector.broadcast %65 : vector<1x512xf32> to vector<16x512xf32>
    %67 = arith.mulf %64, %66 : vector<16x512xf32>
    %c16_32 = arith.constant 16 : index
    %c0_33 = arith.constant 0 : index
    %68 = vector.load %arg8[%c16_32, %c0_33] : memref<144x512xf32, #tpu.memory_space<vmem>>, vector<16x512xf32>
    tpu.vector_store %arg8[%c16_32, %c0_33], %67 {strides = array<i32>} : memref<144x512xf32, #tpu.memory_space<vmem>>, vector<16x512xf32>,
    %c15_i32_34 = arith.constant 15 : i32
    %69 = tpu.dynamic_rotate %54 by %c15_i32_34 dim 1 : vector<16x512xf32>, i32 -> vector<16x512xf32>
    %70 = vector.extract_strided_slice %0 {offsets = [2, 0], sizes = [1, 512], strides = [1, 1]} : vector<9x512xf32> to vector<1x512xf32>
    %71 = vector.broadcast %70 : vector<1x512xf32> to vector<16x512xf32>
    %72 = arith.mulf %69, %71 : vector<16x512xf32>
    %c32_35 = arith.constant 32 : index
    %c0_36 = arith.constant 0 : index
    %73 = vector.load %arg8[%c32_35, %c0_36] : memref<144x512xf32, #tpu.memory_space<vmem>>, vector<16x512xf32>
    tpu.vector_store %arg8[%c32_35, %c0_36], %72 {strides = array<i32>} : memref<144x512xf32, #tpu.memory_space<vmem>>, vector<16x512xf32>,
    %c1_i32_37 = arith.constant 1 : i32
    %74 = tpu.dynamic_rotate %54 by %c1_i32_37 dim 1 : vector<16x512xf32>, i32 -> vector<16x512xf32>
    %75 = vector.extract_strided_slice %0 {offsets = [3, 0], sizes = [1, 512], strides = [1, 1]} : vector<9x512xf32> to vector<1x512xf32>
    %76 = vector.broadcast %75 : vector<1x512xf32> to vector<16x512xf32>
    %77 = arith.mulf %74, %76 : vector<16x512xf32>
    %c48_38 = arith.constant 48 : index
    %c0_39 = arith.constant 0 : index
    %78 = vector.load %arg8[%c48_38, %c0_39] : memref<144x512xf32, #tpu.memory_space<vmem>>, vector<16x512xf32>
    tpu.vector_store %arg8[%c48_38, %c0_39], %77 {strides = array<i32>} : memref<144x512xf32, #tpu.memory_space<vmem>>, vector<16x512xf32>,
    %c64_40 = arith.constant 64 : index
    %c0_41 = arith.constant 0 : index
    %79 = vector.load %arg8[%c64_40, %c0_41] : memref<144x512xf32, #tpu.memory_space<vmem>>, vector<16x512xf32>
    tpu.vector_store %arg8[%c64_40, %c0_41], %54 {strides = array<i32>} : memref<144x512xf32, #tpu.memory_space<vmem>>, vector<16x512xf32>,
    %c511_i32_42 = arith.constant 511 : i32
    %80 = tpu.dynamic_rotate %54 by %c511_i32_42 dim 1 : vector<16x512xf32>, i32 -> vector<16x512xf32>
    %81 = vector.extract_strided_slice %0 {offsets = [5, 0], sizes = [1, 512], strides = [1, 1]} : vector<9x512xf32> to vector<1x512xf32>
    %82 = vector.broadcast %81 : vector<1x512xf32> to vector<16x512xf32>
    %83 = arith.mulf %80, %82 : vector<16x512xf32>
    %c80_43 = arith.constant 80 : index
    %c0_44 = arith.constant 0 : index
    %84 = vector.load %arg8[%c80_43, %c0_44] : memref<144x512xf32, #tpu.memory_space<vmem>>, vector<16x512xf32>
    tpu.vector_store %arg8[%c80_43, %c0_44], %83 {strides = array<i32>} : memref<144x512xf32, #tpu.memory_space<vmem>>, vector<16x512xf32>,
    %c497_i32_45 = arith.constant 497 : i32
    %85 = tpu.dynamic_rotate %54 by %c497_i32_45 dim 1 : vector<16x512xf32>, i32 -> vector<16x512xf32>
    %86 = vector.extract_strided_slice %0 {offsets = [6, 0], sizes = [1, 512], strides = [1, 1]} : vector<9x512xf32> to vector<1x512xf32>
    %87 = vector.broadcast %86 : vector<1x512xf32> to vector<16x512xf32>
    %88 = arith.mulf %85, %87 : vector<16x512xf32>
    %c96_46 = arith.constant 96 : index
    %c0_47 = arith.constant 0 : index
    %89 = vector.load %arg8[%c96_46, %c0_47] : memref<144x512xf32, #tpu.memory_space<vmem>>, vector<16x512xf32>
    tpu.vector_store %arg8[%c96_46, %c0_47], %88 {strides = array<i32>} : memref<144x512xf32, #tpu.memory_space<vmem>>, vector<16x512xf32>,
    %c496_i32_48 = arith.constant 496 : i32
    %90 = tpu.dynamic_rotate %54 by %c496_i32_48 dim 1 : vector<16x512xf32>, i32 -> vector<16x512xf32>
    %91 = vector.extract_strided_slice %0 {offsets = [7, 0], sizes = [1, 512], strides = [1, 1]} : vector<9x512xf32> to vector<1x512xf32>
    %92 = vector.broadcast %91 : vector<1x512xf32> to vector<16x512xf32>
    %93 = arith.mulf %90, %92 : vector<16x512xf32>
    %c112_49 = arith.constant 112 : index
    %c0_50 = arith.constant 0 : index
    %94 = vector.load %arg8[%c112_49, %c0_50] : memref<144x512xf32, #tpu.memory_space<vmem>>, vector<16x512xf32>
    tpu.vector_store %arg8[%c112_49, %c0_50], %93 {strides = array<i32>} : memref<144x512xf32, #tpu.memory_space<vmem>>, vector<16x512xf32>,
    %c495_i32_51 = arith.constant 495 : i32
    %95 = tpu.dynamic_rotate %54 by %c495_i32_51 dim 1 : vector<16x512xf32>, i32 -> vector<16x512xf32>
    %96 = vector.extract_strided_slice %0 {offsets = [8, 0], sizes = [1, 512], strides = [1, 1]} : vector<9x512xf32> to vector<1x512xf32>
    %97 = vector.broadcast %96 : vector<1x512xf32> to vector<16x512xf32>
    %98 = arith.mulf %95, %97 : vector<16x512xf32>
    %c128_52 = arith.constant 128 : index
    %c0_53 = arith.constant 0 : index
    %99 = vector.load %arg8[%c128_52, %c0_53] : memref<144x512xf32, #tpu.memory_space<vmem>>, vector<16x512xf32>
    tpu.vector_store %arg8[%c128_52, %c0_53], %98 {strides = array<i32>} : memref<144x512xf32, #tpu.memory_space<vmem>>, vector<16x512xf32>,
    %c0_54 = arith.constant 0 : index
    %c0_55 = arith.constant 0 : index
    %100 = vector.load %arg8[%c0_54, %c0_55] : memref<144x512xf32, #tpu.memory_space<vmem>>, vector<144x512xf32>
    %cst_56 = arith.constant dense<0.000000e+00> : vector<16x512xf32>
    %101 = tpu.matmul %56, %100, %cst_56 {dimension_numbers = #tpu.dot_dimension_numbers<[1], [0], [0], [1], [0, 0, 1, 1], [], []>} : vector<16x144xf32>, vector<144x512xf32>, vector<16x512xf32> -> vector<16x512xf32>
    %102 = vector.broadcast %58 : vector<16x1xf32> to vector<16x512xf32>
    %103 = arith.addf %101, %102 : vector<16x512xf32>
    %104 = arith.addf %103, %2 : vector<16x512xf32>
    %c2 = arith.constant 2 : index
    %c0_57 = arith.constant 0 : index
    %c0_58 = arith.constant 0 : index
    %105 = vector.load %arg3[%c2, %c0_57, %c0_58] : memref<5x16x144xf32, #tpu.memory_space<vmem>>, vector<1x16x144xf32>
    %106 = vector.shape_cast %105 : vector<1x16x144xf32> to vector<16x144xf32>
    %c2_59 = arith.constant 2 : index
    %c0_60 = arith.constant 0 : index
    %c0_61 = arith.constant 0 : index
    %107 = vector.load %arg4[%c2_59, %c0_60, %c0_61] : memref<5x16x1xf32, #tpu.memory_space<vmem>>, vector<1x16x1xf32>
    %108 = vector.shape_cast %107 : vector<1x16x1xf32> to vector<16x1xf32>
    %c17_i32_62 = arith.constant 17 : i32
    %109 = tpu.dynamic_rotate %104 by %c17_i32_62 dim 1 : vector<16x512xf32>, i32 -> vector<16x512xf32>
    %110 = vector.extract_strided_slice %0 {offsets = [0, 0], sizes = [1, 512], strides = [1, 1]} : vector<9x512xf32> to vector<1x512xf32>
    %111 = vector.broadcast %110 : vector<1x512xf32> to vector<16x512xf32>
    %112 = arith.mulf %109, %111 : vector<16x512xf32>
    %c0_63 = arith.constant 0 : index
    %c0_64 = arith.constant 0 : index
    %113 = vector.load %arg8[%c0_63, %c0_64] : memref<144x512xf32, #tpu.memory_space<vmem>>, vector<16x512xf32>
    tpu.vector_store %arg8[%c0_63, %c0_64], %112 {strides = array<i32>} : memref<144x512xf32, #tpu.memory_space<vmem>>, vector<16x512xf32>,
    %c16_i32_65 = arith.constant 16 : i32
    %114 = tpu.dynamic_rotate %104 by %c16_i32_65 dim 1 : vector<16x512xf32>, i32 -> vector<16x512xf32>
    %115 = vector.extract_strided_slice %0 {offsets = [1, 0], sizes = [1, 512], strides = [1, 1]} : vector<9x512xf32> to vector<1x512xf32>
    %116 = vector.broadcast %115 : vector<1x512xf32> to vector<16x512xf32>
    %117 = arith.mulf %114, %116 : vector<16x512xf32>
    %c16_66 = arith.constant 16 : index
    %c0_67 = arith.constant 0 : index
    %118 = vector.load %arg8[%c16_66, %c0_67] : memref<144x512xf32, #tpu.memory_space<vmem>>, vector<16x512xf32>
    tpu.vector_store %arg8[%c16_66, %c0_67], %117 {strides = array<i32>} : memref<144x512xf32, #tpu.memory_space<vmem>>, vector<16x512xf32>,
    %c15_i32_68 = arith.constant 15 : i32
    %119 = tpu.dynamic_rotate %104 by %c15_i32_68 dim 1 : vector<16x512xf32>, i32 -> vector<16x512xf32>
    %120 = vector.extract_strided_slice %0 {offsets = [2, 0], sizes = [1, 512], strides = [1, 1]} : vector<9x512xf32> to vector<1x512xf32>
    %121 = vector.broadcast %120 : vector<1x512xf32> to vector<16x512xf32>
    %122 = arith.mulf %119, %121 : vector<16x512xf32>
    %c32_69 = arith.constant 32 : index
    %c0_70 = arith.constant 0 : index
    %123 = vector.load %arg8[%c32_69, %c0_70] : memref<144x512xf32, #tpu.memory_space<vmem>>, vector<16x512xf32>
    tpu.vector_store %arg8[%c32_69, %c0_70], %122 {strides = array<i32>} : memref<144x512xf32, #tpu.memory_space<vmem>>, vector<16x512xf32>,
    %c1_i32_71 = arith.constant 1 : i32
    %124 = tpu.dynamic_rotate %104 by %c1_i32_71 dim 1 : vector<16x512xf32>, i32 -> vector<16x512xf32>
    %125 = vector.extract_strided_slice %0 {offsets = [3, 0], sizes = [1, 512], strides = [1, 1]} : vector<9x512xf32> to vector<1x512xf32>
    %126 = vector.broadcast %125 : vector<1x512xf32> to vector<16x512xf32>
    %127 = arith.mulf %124, %126 : vector<16x512xf32>
    %c48_72 = arith.constant 48 : index
    %c0_73 = arith.constant 0 : index
    %128 = vector.load %arg8[%c48_72, %c0_73] : memref<144x512xf32, #tpu.memory_space<vmem>>, vector<16x512xf32>
    tpu.vector_store %arg8[%c48_72, %c0_73], %127 {strides = array<i32>} : memref<144x512xf32, #tpu.memory_space<vmem>>, vector<16x512xf32>,
    %c64_74 = arith.constant 64 : index
    %c0_75 = arith.constant 0 : index
    %129 = vector.load %arg8[%c64_74, %c0_75] : memref<144x512xf32, #tpu.memory_space<vmem>>, vector<16x512xf32>
    tpu.vector_store %arg8[%c64_74, %c0_75], %104 {strides = array<i32>} : memref<144x512xf32, #tpu.memory_space<vmem>>, vector<16x512xf32>,
    %c511_i32_76 = arith.constant 511 : i32
    %130 = tpu.dynamic_rotate %104 by %c511_i32_76 dim 1 : vector<16x512xf32>, i32 -> vector<16x512xf32>
    %131 = vector.extract_strided_slice %0 {offsets = [5, 0], sizes = [1, 512], strides = [1, 1]} : vector<9x512xf32> to vector<1x512xf32>
    %132 = vector.broadcast %131 : vector<1x512xf32> to vector<16x512xf32>
    %133 = arith.mulf %130, %132 : vector<16x512xf32>
    %c80_77 = arith.constant 80 : index
    %c0_78 = arith.constant 0 : index
    %134 = vector.load %arg8[%c80_77, %c0_78] : memref<144x512xf32, #tpu.memory_space<vmem>>, vector<16x512xf32>
    tpu.vector_store %arg8[%c80_77, %c0_78], %133 {strides = array<i32>} : memref<144x512xf32, #tpu.memory_space<vmem>>, vector<16x512xf32>,
    %c497_i32_79 = arith.constant 497 : i32
    %135 = tpu.dynamic_rotate %104 by %c497_i32_79 dim 1 : vector<16x512xf32>, i32 -> vector<16x512xf32>
    %136 = vector.extract_strided_slice %0 {offsets = [6, 0], sizes = [1, 512], strides = [1, 1]} : vector<9x512xf32> to vector<1x512xf32>
    %137 = vector.broadcast %136 : vector<1x512xf32> to vector<16x512xf32>
    %138 = arith.mulf %135, %137 : vector<16x512xf32>
    %c96_80 = arith.constant 96 : index
    %c0_81 = arith.constant 0 : index
    %139 = vector.load %arg8[%c96_80, %c0_81] : memref<144x512xf32, #tpu.memory_space<vmem>>, vector<16x512xf32>
    tpu.vector_store %arg8[%c96_80, %c0_81], %138 {strides = array<i32>} : memref<144x512xf32, #tpu.memory_space<vmem>>, vector<16x512xf32>,
    %c496_i32_82 = arith.constant 496 : i32
    %140 = tpu.dynamic_rotate %104 by %c496_i32_82 dim 1 : vector<16x512xf32>, i32 -> vector<16x512xf32>
    %141 = vector.extract_strided_slice %0 {offsets = [7, 0], sizes = [1, 512], strides = [1, 1]} : vector<9x512xf32> to vector<1x512xf32>
    %142 = vector.broadcast %141 : vector<1x512xf32> to vector<16x512xf32>
    %143 = arith.mulf %140, %142 : vector<16x512xf32>
    %c112_83 = arith.constant 112 : index
    %c0_84 = arith.constant 0 : index
    %144 = vector.load %arg8[%c112_83, %c0_84] : memref<144x512xf32, #tpu.memory_space<vmem>>, vector<16x512xf32>
    tpu.vector_store %arg8[%c112_83, %c0_84], %143 {strides = array<i32>} : memref<144x512xf32, #tpu.memory_space<vmem>>, vector<16x512xf32>,
    %c495_i32_85 = arith.constant 495 : i32
    %145 = tpu.dynamic_rotate %104 by %c495_i32_85 dim 1 : vector<16x512xf32>, i32 -> vector<16x512xf32>
    %146 = vector.extract_strided_slice %0 {offsets = [8, 0], sizes = [1, 512], strides = [1, 1]} : vector<9x512xf32> to vector<1x512xf32>
    %147 = vector.broadcast %146 : vector<1x512xf32> to vector<16x512xf32>
    %148 = arith.mulf %145, %147 : vector<16x512xf32>
    %c128_86 = arith.constant 128 : index
    %c0_87 = arith.constant 0 : index
    %149 = vector.load %arg8[%c128_86, %c0_87] : memref<144x512xf32, #tpu.memory_space<vmem>>, vector<16x512xf32>
    tpu.vector_store %arg8[%c128_86, %c0_87], %148 {strides = array<i32>} : memref<144x512xf32, #tpu.memory_space<vmem>>, vector<16x512xf32>,
    %c0_88 = arith.constant 0 : index
    %c0_89 = arith.constant 0 : index
    %150 = vector.load %arg8[%c0_88, %c0_89] : memref<144x512xf32, #tpu.memory_space<vmem>>, vector<144x512xf32>
    %cst_90 = arith.constant dense<0.000000e+00> : vector<16x512xf32>
    %151 = tpu.matmul %106, %150, %cst_90 {dimension_numbers = #tpu.dot_dimension_numbers<[1], [0], [0], [1], [0, 0, 1, 1], [], []>} : vector<16x144xf32>, vector<144x512xf32>, vector<16x512xf32> -> vector<16x512xf32>
    %152 = vector.broadcast %108 : vector<16x1xf32> to vector<16x512xf32>
    %153 = arith.addf %151, %152 : vector<16x512xf32>
    %cst_91 = arith.constant 2.000000e-01 : f32
    %154 = vector.broadcast %cst_91 : f32 to vector<16x512xf32>
    %155 = arith.mulf %154, %153 : vector<16x512xf32>
    %156 = arith.maximumf %153, %155 : vector<16x512xf32>
    %c3 = arith.constant 3 : index
    %c0_92 = arith.constant 0 : index
    %c0_93 = arith.constant 0 : index
    %157 = vector.load %arg3[%c3, %c0_92, %c0_93] : memref<5x16x144xf32, #tpu.memory_space<vmem>>, vector<1x16x144xf32>
    %158 = vector.shape_cast %157 : vector<1x16x144xf32> to vector<16x144xf32>
    %c3_94 = arith.constant 3 : index
    %c0_95 = arith.constant 0 : index
    %c0_96 = arith.constant 0 : index
    %159 = vector.load %arg4[%c3_94, %c0_95, %c0_96] : memref<5x16x1xf32, #tpu.memory_space<vmem>>, vector<1x16x1xf32>
    %160 = vector.shape_cast %159 : vector<1x16x1xf32> to vector<16x1xf32>
    %c17_i32_97 = arith.constant 17 : i32
    %161 = tpu.dynamic_rotate %156 by %c17_i32_97 dim 1 : vector<16x512xf32>, i32 -> vector<16x512xf32>
    %162 = vector.extract_strided_slice %0 {offsets = [0, 0], sizes = [1, 512], strides = [1, 1]} : vector<9x512xf32> to vector<1x512xf32>
    %163 = vector.broadcast %162 : vector<1x512xf32> to vector<16x512xf32>
    %164 = arith.mulf %161, %163 : vector<16x512xf32>
    %c0_98 = arith.constant 0 : index
    %c0_99 = arith.constant 0 : index
    %165 = vector.load %arg8[%c0_98, %c0_99] : memref<144x512xf32, #tpu.memory_space<vmem>>, vector<16x512xf32>
    tpu.vector_store %arg8[%c0_98, %c0_99], %164 {strides = array<i32>} : memref<144x512xf32, #tpu.memory_space<vmem>>, vector<16x512xf32>,
    %c16_i32_100 = arith.constant 16 : i32
    %166 = tpu.dynamic_rotate %156 by %c16_i32_100 dim 1 : vector<16x512xf32>, i32 -> vector<16x512xf32>
    %167 = vector.extract_strided_slice %0 {offsets = [1, 0], sizes = [1, 512], strides = [1, 1]} : vector<9x512xf32> to vector<1x512xf32>
    %168 = vector.broadcast %167 : vector<1x512xf32> to vector<16x512xf32>
    %169 = arith.mulf %166, %168 : vector<16x512xf32>
    %c16_101 = arith.constant 16 : index
    %c0_102 = arith.constant 0 : index
    %170 = vector.load %arg8[%c16_101, %c0_102] : memref<144x512xf32, #tpu.memory_space<vmem>>, vector<16x512xf32>
    tpu.vector_store %arg8[%c16_101, %c0_102], %169 {strides = array<i32>} : memref<144x512xf32, #tpu.memory_space<vmem>>, vector<16x512xf32>,
    %c15_i32_103 = arith.constant 15 : i32
    %171 = tpu.dynamic_rotate %156 by %c15_i32_103 dim 1 : vector<16x512xf32>, i32 -> vector<16x512xf32>
    %172 = vector.extract_strided_slice %0 {offsets = [2, 0], sizes = [1, 512], strides = [1, 1]} : vector<9x512xf32> to vector<1x512xf32>
    %173 = vector.broadcast %172 : vector<1x512xf32> to vector<16x512xf32>
    %174 = arith.mulf %171, %173 : vector<16x512xf32>
    %c32_104 = arith.constant 32 : index
    %c0_105 = arith.constant 0 : index
    %175 = vector.load %arg8[%c32_104, %c0_105] : memref<144x512xf32, #tpu.memory_space<vmem>>, vector<16x512xf32>
    tpu.vector_store %arg8[%c32_104, %c0_105], %174 {strides = array<i32>} : memref<144x512xf32, #tpu.memory_space<vmem>>, vector<16x512xf32>,
    %c1_i32_106 = arith.constant 1 : i32
    %176 = tpu.dynamic_rotate %156 by %c1_i32_106 dim 1 : vector<16x512xf32>, i32 -> vector<16x512xf32>
    %177 = vector.extract_strided_slice %0 {offsets = [3, 0], sizes = [1, 512], strides = [1, 1]} : vector<9x512xf32> to vector<1x512xf32>
    %178 = vector.broadcast %177 : vector<1x512xf32> to vector<16x512xf32>
    %179 = arith.mulf %176, %178 : vector<16x512xf32>
    %c48_107 = arith.constant 48 : index
    %c0_108 = arith.constant 0 : index
    %180 = vector.load %arg8[%c48_107, %c0_108] : memref<144x512xf32, #tpu.memory_space<vmem>>, vector<16x512xf32>
    tpu.vector_store %arg8[%c48_107, %c0_108], %179 {strides = array<i32>} : memref<144x512xf32, #tpu.memory_space<vmem>>, vector<16x512xf32>,
    %c64_109 = arith.constant 64 : index
    %c0_110 = arith.constant 0 : index
    %181 = vector.load %arg8[%c64_109, %c0_110] : memref<144x512xf32, #tpu.memory_space<vmem>>, vector<16x512xf32>
    tpu.vector_store %arg8[%c64_109, %c0_110], %156 {strides = array<i32>} : memref<144x512xf32, #tpu.memory_space<vmem>>, vector<16x512xf32>,
    %c511_i32_111 = arith.constant 511 : i32
    %182 = tpu.dynamic_rotate %156 by %c511_i32_111 dim 1 : vector<16x512xf32>, i32 -> vector<16x512xf32>
    %183 = vector.extract_strided_slice %0 {offsets = [5, 0], sizes = [1, 512], strides = [1, 1]} : vector<9x512xf32> to vector<1x512xf32>
    %184 = vector.broadcast %183 : vector<1x512xf32> to vector<16x512xf32>
    %185 = arith.mulf %182, %184 : vector<16x512xf32>
    %c80_112 = arith.constant 80 : index
    %c0_113 = arith.constant 0 : index
    %186 = vector.load %arg8[%c80_112, %c0_113] : memref<144x512xf32, #tpu.memory_space<vmem>>, vector<16x512xf32>
    tpu.vector_store %arg8[%c80_112, %c0_113], %185 {strides = array<i32>} : memref<144x512xf32, #tpu.memory_space<vmem>>, vector<16x512xf32>,
    %c497_i32_114 = arith.constant 497 : i32
    %187 = tpu.dynamic_rotate %156 by %c497_i32_114 dim 1 : vector<16x512xf32>, i32 -> vector<16x512xf32>
    %188 = vector.extract_strided_slice %0 {offsets = [6, 0], sizes = [1, 512], strides = [1, 1]} : vector<9x512xf32> to vector<1x512xf32>
    %189 = vector.broadcast %188 : vector<1x512xf32> to vector<16x512xf32>
    %190 = arith.mulf %187, %189 : vector<16x512xf32>
    %c96_115 = arith.constant 96 : index
    %c0_116 = arith.constant 0 : index
    %191 = vector.load %arg8[%c96_115, %c0_116] : memref<144x512xf32, #tpu.memory_space<vmem>>, vector<16x512xf32>
    tpu.vector_store %arg8[%c96_115, %c0_116], %190 {strides = array<i32>} : memref<144x512xf32, #tpu.memory_space<vmem>>, vector<16x512xf32>,
    %c496_i32_117 = arith.constant 496 : i32
    %192 = tpu.dynamic_rotate %156 by %c496_i32_117 dim 1 : vector<16x512xf32>, i32 -> vector<16x512xf32>
    %193 = vector.extract_strided_slice %0 {offsets = [7, 0], sizes = [1, 512], strides = [1, 1]} : vector<9x512xf32> to vector<1x512xf32>
    %194 = vector.broadcast %193 : vector<1x512xf32> to vector<16x512xf32>
    %195 = arith.mulf %192, %194 : vector<16x512xf32>
    %c112_118 = arith.constant 112 : index
    %c0_119 = arith.constant 0 : index
    %196 = vector.load %arg8[%c112_118, %c0_119] : memref<144x512xf32, #tpu.memory_space<vmem>>, vector<16x512xf32>
    tpu.vector_store %arg8[%c112_118, %c0_119], %195 {strides = array<i32>} : memref<144x512xf32, #tpu.memory_space<vmem>>, vector<16x512xf32>,
    %c495_i32_120 = arith.constant 495 : i32
    %197 = tpu.dynamic_rotate %156 by %c495_i32_120 dim 1 : vector<16x512xf32>, i32 -> vector<16x512xf32>
    %198 = vector.extract_strided_slice %0 {offsets = [8, 0], sizes = [1, 512], strides = [1, 1]} : vector<9x512xf32> to vector<1x512xf32>
    %199 = vector.broadcast %198 : vector<1x512xf32> to vector<16x512xf32>
    %200 = arith.mulf %197, %199 : vector<16x512xf32>
    %c128_121 = arith.constant 128 : index
    %c0_122 = arith.constant 0 : index
    %201 = vector.load %arg8[%c128_121, %c0_122] : memref<144x512xf32, #tpu.memory_space<vmem>>, vector<16x512xf32>
    tpu.vector_store %arg8[%c128_121, %c0_122], %200 {strides = array<i32>} : memref<144x512xf32, #tpu.memory_space<vmem>>, vector<16x512xf32>,
    %c0_123 = arith.constant 0 : index
    %c0_124 = arith.constant 0 : index
    %202 = vector.load %arg8[%c0_123, %c0_124] : memref<144x512xf32, #tpu.memory_space<vmem>>, vector<144x512xf32>
    %cst_125 = arith.constant dense<0.000000e+00> : vector<16x512xf32>
    %203 = tpu.matmul %158, %202, %cst_125 {dimension_numbers = #tpu.dot_dimension_numbers<[1], [0], [0], [1], [0, 0, 1, 1], [], []>} : vector<16x144xf32>, vector<144x512xf32>, vector<16x512xf32> -> vector<16x512xf32>
    %204 = vector.broadcast %160 : vector<16x1xf32> to vector<16x512xf32>
    %205 = arith.addf %203, %204 : vector<16x512xf32>
    %206 = arith.addf %205, %104 : vector<16x512xf32>
    %c4 = arith.constant 4 : index
    %c0_126 = arith.constant 0 : index
    %c0_127 = arith.constant 0 : index
    %207 = vector.load %arg3[%c4, %c0_126, %c0_127] : memref<5x16x144xf32, #tpu.memory_space<vmem>>, vector<1x16x144xf32>
    %208 = vector.shape_cast %207 : vector<1x16x144xf32> to vector<16x144xf32>
    %c4_128 = arith.constant 4 : index
    %c0_129 = arith.constant 0 : index
    %c0_130 = arith.constant 0 : index
    %209 = vector.load %arg4[%c4_128, %c0_129, %c0_130] : memref<5x16x1xf32, #tpu.memory_space<vmem>>, vector<1x16x1xf32>
    %210 = vector.shape_cast %209 : vector<1x16x1xf32> to vector<16x1xf32>
    %c17_i32_131 = arith.constant 17 : i32
    %211 = tpu.dynamic_rotate %206 by %c17_i32_131 dim 1 : vector<16x512xf32>, i32 -> vector<16x512xf32>
    %212 = vector.extract_strided_slice %0 {offsets = [0, 0], sizes = [1, 512], strides = [1, 1]} : vector<9x512xf32> to vector<1x512xf32>
    %213 = vector.broadcast %212 : vector<1x512xf32> to vector<16x512xf32>
    %214 = arith.mulf %211, %213 : vector<16x512xf32>
    %c0_132 = arith.constant 0 : index
    %c0_133 = arith.constant 0 : index
    %215 = vector.load %arg8[%c0_132, %c0_133] : memref<144x512xf32, #tpu.memory_space<vmem>>, vector<16x512xf32>
    tpu.vector_store %arg8[%c0_132, %c0_133], %214 {strides = array<i32>} : memref<144x512xf32, #tpu.memory_space<vmem>>, vector<16x512xf32>,
    %c16_i32_134 = arith.constant 16 : i32
    %216 = tpu.dynamic_rotate %206 by %c16_i32_134 dim 1 : vector<16x512xf32>, i32 -> vector<16x512xf32>
    %217 = vector.extract_strided_slice %0 {offsets = [1, 0], sizes = [1, 512], strides = [1, 1]} : vector<9x512xf32> to vector<1x512xf32>
    %218 = vector.broadcast %217 : vector<1x512xf32> to vector<16x512xf32>
    %219 = arith.mulf %216, %218 : vector<16x512xf32>
    %c16_135 = arith.constant 16 : index
    %c0_136 = arith.constant 0 : index
    %220 = vector.load %arg8[%c16_135, %c0_136] : memref<144x512xf32, #tpu.memory_space<vmem>>, vector<16x512xf32>
    tpu.vector_store %arg8[%c16_135, %c0_136], %219 {strides = array<i32>} : memref<144x512xf32, #tpu.memory_space<vmem>>, vector<16x512xf32>,
    %c15_i32_137 = arith.constant 15 : i32
    %221 = tpu.dynamic_rotate %206 by %c15_i32_137 dim 1 : vector<16x512xf32>, i32 -> vector<16x512xf32>
    %222 = vector.extract_strided_slice %0 {offsets = [2, 0], sizes = [1, 512], strides = [1, 1]} : vector<9x512xf32> to vector<1x512xf32>
    %223 = vector.broadcast %222 : vector<1x512xf32> to vector<16x512xf32>
    %224 = arith.mulf %221, %223 : vector<16x512xf32>
    %c32_138 = arith.constant 32 : index
    %c0_139 = arith.constant 0 : index
    %225 = vector.load %arg8[%c32_138, %c0_139] : memref<144x512xf32, #tpu.memory_space<vmem>>, vector<16x512xf32>
    tpu.vector_store %arg8[%c32_138, %c0_139], %224 {strides = array<i32>} : memref<144x512xf32, #tpu.memory_space<vmem>>, vector<16x512xf32>,
    %c1_i32_140 = arith.constant 1 : i32
    %226 = tpu.dynamic_rotate %206 by %c1_i32_140 dim 1 : vector<16x512xf32>, i32 -> vector<16x512xf32>
    %227 = vector.extract_strided_slice %0 {offsets = [3, 0], sizes = [1, 512], strides = [1, 1]} : vector<9x512xf32> to vector<1x512xf32>
    %228 = vector.broadcast %227 : vector<1x512xf32> to vector<16x512xf32>
    %229 = arith.mulf %226, %228 : vector<16x512xf32>
    %c48_141 = arith.constant 48 : index
    %c0_142 = arith.constant 0 : index
    %230 = vector.load %arg8[%c48_141, %c0_142] : memref<144x512xf32, #tpu.memory_space<vmem>>, vector<16x512xf32>
    tpu.vector_store %arg8[%c48_141, %c0_142], %229 {strides = array<i32>} : memref<144x512xf32, #tpu.memory_space<vmem>>, vector<16x512xf32>,
    %c64_143 = arith.constant 64 : index
    %c0_144 = arith.constant 0 : index
    %231 = vector.load %arg8[%c64_143, %c0_144] : memref<144x512xf32, #tpu.memory_space<vmem>>, vector<16x512xf32>
    tpu.vector_store %arg8[%c64_143, %c0_144], %206 {strides = array<i32>} : memref<144x512xf32, #tpu.memory_space<vmem>>, vector<16x512xf32>,
    %c511_i32_145 = arith.constant 511 : i32
    %232 = tpu.dynamic_rotate %206 by %c511_i32_145 dim 1 : vector<16x512xf32>, i32 -> vector<16x512xf32>
    %233 = vector.extract_strided_slice %0 {offsets = [5, 0], sizes = [1, 512], strides = [1, 1]} : vector<9x512xf32> to vector<1x512xf32>
    %234 = vector.broadcast %233 : vector<1x512xf32> to vector<16x512xf32>
    %235 = arith.mulf %232, %234 : vector<16x512xf32>
    %c80_146 = arith.constant 80 : index
    %c0_147 = arith.constant 0 : index
    %236 = vector.load %arg8[%c80_146, %c0_147] : memref<144x512xf32, #tpu.memory_space<vmem>>, vector<16x512xf32>
    tpu.vector_store %arg8[%c80_146, %c0_147], %235 {strides = array<i32>} : memref<144x512xf32, #tpu.memory_space<vmem>>, vector<16x512xf32>,
    %c497_i32_148 = arith.constant 497 : i32
    %237 = tpu.dynamic_rotate %206 by %c497_i32_148 dim 1 : vector<16x512xf32>, i32 -> vector<16x512xf32>
    %238 = vector.extract_strided_slice %0 {offsets = [6, 0], sizes = [1, 512], strides = [1, 1]} : vector<9x512xf32> to vector<1x512xf32>
    %239 = vector.broadcast %238 : vector<1x512xf32> to vector<16x512xf32>
    %240 = arith.mulf %237, %239 : vector<16x512xf32>
    %c96_149 = arith.constant 96 : index
    %c0_150 = arith.constant 0 : index
    %241 = vector.load %arg8[%c96_149, %c0_150] : memref<144x512xf32, #tpu.memory_space<vmem>>, vector<16x512xf32>
    tpu.vector_store %arg8[%c96_149, %c0_150], %240 {strides = array<i32>} : memref<144x512xf32, #tpu.memory_space<vmem>>, vector<16x512xf32>,
    %c496_i32_151 = arith.constant 496 : i32
    %242 = tpu.dynamic_rotate %206 by %c496_i32_151 dim 1 : vector<16x512xf32>, i32 -> vector<16x512xf32>
    %243 = vector.extract_strided_slice %0 {offsets = [7, 0], sizes = [1, 512], strides = [1, 1]} : vector<9x512xf32> to vector<1x512xf32>
    %244 = vector.broadcast %243 : vector<1x512xf32> to vector<16x512xf32>
    %245 = arith.mulf %242, %244 : vector<16x512xf32>
    %c112_152 = arith.constant 112 : index
    %c0_153 = arith.constant 0 : index
    %246 = vector.load %arg8[%c112_152, %c0_153] : memref<144x512xf32, #tpu.memory_space<vmem>>, vector<16x512xf32>
    tpu.vector_store %arg8[%c112_152, %c0_153], %245 {strides = array<i32>} : memref<144x512xf32, #tpu.memory_space<vmem>>, vector<16x512xf32>,
    %c495_i32_154 = arith.constant 495 : i32
    %247 = tpu.dynamic_rotate %206 by %c495_i32_154 dim 1 : vector<16x512xf32>, i32 -> vector<16x512xf32>
    %248 = vector.extract_strided_slice %0 {offsets = [8, 0], sizes = [1, 512], strides = [1, 1]} : vector<9x512xf32> to vector<1x512xf32>
    %249 = vector.broadcast %248 : vector<1x512xf32> to vector<16x512xf32>
    %250 = arith.mulf %247, %249 : vector<16x512xf32>
    %c128_155 = arith.constant 128 : index
    %c0_156 = arith.constant 0 : index
    %251 = vector.load %arg8[%c128_155, %c0_156] : memref<144x512xf32, #tpu.memory_space<vmem>>, vector<16x512xf32>
    tpu.vector_store %arg8[%c128_155, %c0_156], %250 {strides = array<i32>} : memref<144x512xf32, #tpu.memory_space<vmem>>, vector<16x512xf32>,
    %c0_157 = arith.constant 0 : index
    %c0_158 = arith.constant 0 : index
    %252 = vector.load %arg8[%c0_157, %c0_158] : memref<144x512xf32, #tpu.memory_space<vmem>>, vector<144x512xf32>
    %cst_159 = arith.constant dense<0.000000e+00> : vector<16x512xf32>
    %253 = tpu.matmul %208, %252, %cst_159 {dimension_numbers = #tpu.dot_dimension_numbers<[1], [0], [0], [1], [0, 0, 1, 1], [], []>} : vector<16x144xf32>, vector<144x512xf32>, vector<16x512xf32> -> vector<16x512xf32>
    %254 = vector.broadcast %210 : vector<16x1xf32> to vector<16x512xf32>
    %255 = arith.addf %253, %254 : vector<16x512xf32>
    %cst_160 = arith.constant 2.000000e-01 : f32
    %256 = vector.broadcast %cst_160 : f32 to vector<16x512xf32>
    %257 = arith.mulf %256, %255 : vector<16x512xf32>
    %258 = arith.maximumf %255, %257 : vector<16x512xf32>
    %c0_161 = arith.constant 0 : index
    %c0_162 = arith.constant 0 : index
    %259 = vector.load %arg5[%c0_161, %c0_162] : memref<8x144xf32, #tpu.memory_space<vmem>>, vector<8x144xf32>
    %c0_163 = arith.constant 0 : index
    %c0_164 = arith.constant 0 : index
    %260 = vector.load %arg6[%c0_163, %c0_164] : memref<8x1xf32, #tpu.memory_space<vmem>>, vector<8x1xf32>
    %c17_i32_165 = arith.constant 17 : i32
    %261 = tpu.dynamic_rotate %258 by %c17_i32_165 dim 1 : vector<16x512xf32>, i32 -> vector<16x512xf32>
    %262 = vector.extract_strided_slice %0 {offsets = [0, 0], sizes = [1, 512], strides = [1, 1]} : vector<9x512xf32> to vector<1x512xf32>
    %263 = vector.broadcast %262 : vector<1x512xf32> to vector<16x512xf32>
    %264 = arith.mulf %261, %263 : vector<16x512xf32>
    %c0_166 = arith.constant 0 : index
    %c0_167 = arith.constant 0 : index
    %265 = vector.load %arg8[%c0_166, %c0_167] : memref<144x512xf32, #tpu.memory_space<vmem>>, vector<16x512xf32>
    tpu.vector_store %arg8[%c0_166, %c0_167], %264 {strides = array<i32>} : memref<144x512xf32, #tpu.memory_space<vmem>>, vector<16x512xf32>,
    %c16_i32_168 = arith.constant 16 : i32
    %266 = tpu.dynamic_rotate %258 by %c16_i32_168 dim 1 : vector<16x512xf32>, i32 -> vector<16x512xf32>
    %267 = vector.extract_strided_slice %0 {offsets = [1, 0], sizes = [1, 512], strides = [1, 1]} : vector<9x512xf32> to vector<1x512xf32>
    %268 = vector.broadcast %267 : vector<1x512xf32> to vector<16x512xf32>
    %269 = arith.mulf %266, %268 : vector<16x512xf32>
    %c16_169 = arith.constant 16 : index
    %c0_170 = arith.constant 0 : index
    %270 = vector.load %arg8[%c16_169, %c0_170] : memref<144x512xf32, #tpu.memory_space<vmem>>, vector<16x512xf32>
    tpu.vector_store %arg8[%c16_169, %c0_170], %269 {strides = array<i32>} : memref<144x512xf32, #tpu.memory_space<vmem>>, vector<16x512xf32>,
    %c15_i32_171 = arith.constant 15 : i32
    %271 = tpu.dynamic_rotate %258 by %c15_i32_171 dim 1 : vector<16x512xf32>, i32 -> vector<16x512xf32>
    %272 = vector.extract_strided_slice %0 {offsets = [2, 0], sizes = [1, 512], strides = [1, 1]} : vector<9x512xf32> to vector<1x512xf32>
    %273 = vector.broadcast %272 : vector<1x512xf32> to vector<16x512xf32>
    %274 = arith.mulf %271, %273 : vector<16x512xf32>
    %c32_172 = arith.constant 32 : index
    %c0_173 = arith.constant 0 : index
    %275 = vector.load %arg8[%c32_172, %c0_173] : memref<144x512xf32, #tpu.memory_space<vmem>>, vector<16x512xf32>
    tpu.vector_store %arg8[%c32_172, %c0_173], %274 {strides = array<i32>} : memref<144x512xf32, #tpu.memory_space<vmem>>, vector<16x512xf32>,
    %c1_i32_174 = arith.constant 1 : i32
    %276 = tpu.dynamic_rotate %258 by %c1_i32_174 dim 1 : vector<16x512xf32>, i32 -> vector<16x512xf32>
    %277 = vector.extract_strided_slice %0 {offsets = [3, 0], sizes = [1, 512], strides = [1, 1]} : vector<9x512xf32> to vector<1x512xf32>
    %278 = vector.broadcast %277 : vector<1x512xf32> to vector<16x512xf32>
    %279 = arith.mulf %276, %278 : vector<16x512xf32>
    %c48_175 = arith.constant 48 : index
    %c0_176 = arith.constant 0 : index
    %280 = vector.load %arg8[%c48_175, %c0_176] : memref<144x512xf32, #tpu.memory_space<vmem>>, vector<16x512xf32>
    tpu.vector_store %arg8[%c48_175, %c0_176], %279 {strides = array<i32>} : memref<144x512xf32, #tpu.memory_space<vmem>>, vector<16x512xf32>,
    %c64_177 = arith.constant 64 : index
    %c0_178 = arith.constant 0 : index
    %281 = vector.load %arg8[%c64_177, %c0_178] : memref<144x512xf32, #tpu.memory_space<vmem>>, vector<16x512xf32>
    tpu.vector_store %arg8[%c64_177, %c0_178], %258 {strides = array<i32>} : memref<144x512xf32, #tpu.memory_space<vmem>>, vector<16x512xf32>,
    %c511_i32_179 = arith.constant 511 : i32
    %282 = tpu.dynamic_rotate %258 by %c511_i32_179 dim 1 : vector<16x512xf32>, i32 -> vector<16x512xf32>
    %283 = vector.extract_strided_slice %0 {offsets = [5, 0], sizes = [1, 512], strides = [1, 1]} : vector<9x512xf32> to vector<1x512xf32>
    %284 = vector.broadcast %283 : vector<1x512xf32> to vector<16x512xf32>
    %285 = arith.mulf %282, %284 : vector<16x512xf32>
    %c80_180 = arith.constant 80 : index
    %c0_181 = arith.constant 0 : index
    %286 = vector.load %arg8[%c80_180, %c0_181] : memref<144x512xf32, #tpu.memory_space<vmem>>, vector<16x512xf32>
    tpu.vector_store %arg8[%c80_180, %c0_181], %285 {strides = array<i32>} : memref<144x512xf32, #tpu.memory_space<vmem>>, vector<16x512xf32>,
    %c497_i32_182 = arith.constant 497 : i32
    %287 = tpu.dynamic_rotate %258 by %c497_i32_182 dim 1 : vector<16x512xf32>, i32 -> vector<16x512xf32>
    %288 = vector.extract_strided_slice %0 {offsets = [6, 0], sizes = [1, 512], strides = [1, 1]} : vector<9x512xf32> to vector<1x512xf32>
    %289 = vector.broadcast %288 : vector<1x512xf32> to vector<16x512xf32>
    %290 = arith.mulf %287, %289 : vector<16x512xf32>
    %c96_183 = arith.constant 96 : index
    %c0_184 = arith.constant 0 : index
    %291 = vector.load %arg8[%c96_183, %c0_184] : memref<144x512xf32, #tpu.memory_space<vmem>>, vector<16x512xf32>
    tpu.vector_store %arg8[%c96_183, %c0_184], %290 {strides = array<i32>} : memref<144x512xf32, #tpu.memory_space<vmem>>, vector<16x512xf32>,
    %c496_i32_185 = arith.constant 496 : i32
    %292 = tpu.dynamic_rotate %258 by %c496_i32_185 dim 1 : vector<16x512xf32>, i32 -> vector<16x512xf32>
    %293 = vector.extract_strided_slice %0 {offsets = [7, 0], sizes = [1, 512], strides = [1, 1]} : vector<9x512xf32> to vector<1x512xf32>
    %294 = vector.broadcast %293 : vector<1x512xf32> to vector<16x512xf32>
    %295 = arith.mulf %292, %294 : vector<16x512xf32>
    %c112_186 = arith.constant 112 : index
    %c0_187 = arith.constant 0 : index
    %296 = vector.load %arg8[%c112_186, %c0_187] : memref<144x512xf32, #tpu.memory_space<vmem>>, vector<16x512xf32>
    tpu.vector_store %arg8[%c112_186, %c0_187], %295 {strides = array<i32>} : memref<144x512xf32, #tpu.memory_space<vmem>>, vector<16x512xf32>,
    %c495_i32_188 = arith.constant 495 : i32
    %297 = tpu.dynamic_rotate %258 by %c495_i32_188 dim 1 : vector<16x512xf32>, i32 -> vector<16x512xf32>
    %298 = vector.extract_strided_slice %0 {offsets = [8, 0], sizes = [1, 512], strides = [1, 1]} : vector<9x512xf32> to vector<1x512xf32>
    %299 = vector.broadcast %298 : vector<1x512xf32> to vector<16x512xf32>
    %300 = arith.mulf %297, %299 : vector<16x512xf32>
    %c128_189 = arith.constant 128 : index
    %c0_190 = arith.constant 0 : index
    %301 = vector.load %arg8[%c128_189, %c0_190] : memref<144x512xf32, #tpu.memory_space<vmem>>, vector<16x512xf32>
    tpu.vector_store %arg8[%c128_189, %c0_190], %300 {strides = array<i32>} : memref<144x512xf32, #tpu.memory_space<vmem>>, vector<16x512xf32>,
    %c0_191 = arith.constant 0 : index
    %c0_192 = arith.constant 0 : index
    %302 = vector.load %arg8[%c0_191, %c0_192] : memref<144x512xf32, #tpu.memory_space<vmem>>, vector<144x512xf32>
    %cst_193 = arith.constant dense<0.000000e+00> : vector<8x512xf32>
    %303 = tpu.matmul %259, %302, %cst_193 {dimension_numbers = #tpu.dot_dimension_numbers<[1], [0], [0], [1], [0, 0, 1, 1], [], []>} : vector<8x144xf32>, vector<144x512xf32>, vector<8x512xf32> -> vector<8x512xf32>
    %304 = vector.broadcast %260 : vector<8x1xf32> to vector<8x512xf32>
    %305 = arith.addf %303, %304 : vector<8x512xf32>
    %306 = math.tanh %305 : vector<8x512xf32>
    %c0_194 = arith.constant 0 : index
    %c0_195 = arith.constant 0 : index
    %c0_196 = arith.constant 0 : index
    %307 = vector.load %arg7[%c0_194, %c0_195, %c0_196] : memref<1x8x512xf32, #tpu.memory_space<vmem>>, vector<1x8x512xf32>
    %308 = vector.shape_cast %307 : vector<1x8x512xf32> to vector<8x512xf32>
    %309 = vector.shape_cast %306 : vector<8x512xf32> to vector<1x8x512xf32>
    tpu.vector_store %arg7[%c0_194, %c0_195, %c0_196], %309 {strides = array<i32>} : memref<1x8x512xf32, #tpu.memory_space<vmem>>, vector<1x8x512xf32>,
    return
  }
  func.func @transform_0(%arg0: i32) -> (i32, i32, i32) {
    %c0_i32 = arith.constant 0 : i32
    %c0_i32_0 = arith.constant 0 : i32
    %c0_i32_1 = arith.constant 0 : i32
    return %arg0, %c0_i32, %c0_i32_0 : i32, i32, i32
  }
  func.func @transform_1(%arg0: i32) -> (i32, i32) {
    %c0_i32 = arith.constant 0 : i32
    %c0_i32_0 = arith.constant 0 : i32
    %c0_i32_1 = arith.constant 0 : i32
    return %c0_i32, %c0_i32_0 : i32, i32
  }
  func.func @transform_2(%arg0: i32) -> (i32, i32, i32) {
    %c0_i32 = arith.constant 0 : i32
    %c0_i32_0 = arith.constant 0 : i32
    %c0_i32_1 = arith.constant 0 : i32
    %c0_i32_2 = arith.constant 0 : i32
    return %c0_i32, %c0_i32_0, %c0_i32_1 : i32, i32, i32
  }
  func.func @transform_3(%arg0: i32) -> (i32, i32, i32) {
    %c0_i32 = arith.constant 0 : i32
    %c0_i32_0 = arith.constant 0 : i32
    %c0_i32_1 = arith.constant 0 : i32
    %c0_i32_2 = arith.constant 0 : i32
    return %c0_i32, %c0_i32_0, %c0_i32_1 : i32, i32, i32
  }
  func.func @transform_4(%arg0: i32) -> (i32, i32) {
    %c0_i32 = arith.constant 0 : i32
    %c0_i32_0 = arith.constant 0 : i32
    %c0_i32_1 = arith.constant 0 : i32
    return %c0_i32, %c0_i32_0 : i32, i32
  }
  func.func @transform_5(%arg0: i32) -> (i32, i32) {
    %c0_i32 = arith.constant 0 : i32
    %c0_i32_0 = arith.constant 0 : i32
    %c0_i32_1 = arith.constant 0 : i32
    return %c0_i32, %c0_i32_0 : i32, i32
  }
  func.func @transform_6(%arg0: i32) -> (i32, i32, i32) {
    %c0_i32 = arith.constant 0 : i32
    %c0_i32_0 = arith.constant 0 : i32
    %c0_i32_1 = arith.constant 0 : i32
    return %arg0, %c0_i32, %c0_i32_0 : i32, i32, i32
  }
}

</mosaic_0001>

<llo_original>
// kernel: decoder_forward.1
$region0: #{decoder_forward.1}
  #allocation0 [shape = 'u32[]', space=smem, size = 0x4, offset = 0x4, fixed_abs, tag = 'smem constant byte address 0x4 - core index']
  #allocation1 [shape = 'u32[144,128]{1,0:T(1,128)}', space=vmem, size = 0x12000, scoped, tag = 'internal scratch']
  #allocation2 [shape = 'f32[144,512]{1,0:T(8,128)}', space=vmem, size = 0x48000, scoped, tag = 'scratch operand']
  %s0 = inlined_call_operand.vmem [shape: f32[2,16,512], index: 0, kind: input, shape index: {}]
  %s1 = inlined_call_operand.vmem [shape: f32[9,512], index: 1, kind: input, shape index: {}]
  %s2 = inlined_call_operand.vmem [shape: f32[5,16,144], index: 2, kind: input, shape index: {}]
  %s3 = inlined_call_operand.vmem [shape: f32[5,16,1], index: 3, kind: input, shape index: {}]
  %s4 = inlined_call_operand.vmem [shape: f32[8,144], index: 4, kind: input, shape index: {}]
  %s5 = inlined_call_operand.vmem [shape: f32[8,1], index: 5, kind: input, shape index: {}]
  %s6 = inlined_call_operand.vmem [shape: f32[2,8,512], index: 6, kind: output, shape index: {}]
  %s7 = sld [smem:[#allocation0]]
  $region57: #{decoder_forward.1} parent=0
    _
  %s9 = ssub.s32 1, %s7
  %s10 = scalar_select 0, %s9, %s7
  loop: start=0, step=1, limit=4
  $region2: #{decoder_forward.1} parent=0 // loop_pre_header
    _
  $region3: #{decoder_forward.1} parent=0 // loop_header
    %s12 = sphi 0, %s16
    %p13 = scmp.ge.s32.totalorder %s12, 4
    %s22 = sphi 0, %s24
    %s25 = sphi 0, %s22
    %s26 = sphi 0, %s25
    %s42 = sphi 0, %s26
    %s46 = sphi 0, %s46
    %s48 = sphi 0, %s46
    %s49 = sphi 0, %s48
    %s63 = sphi 0, %s49
    %s67 = sphi 0, %s67
    %s69 = sphi 0, %s67
    %s70 = sphi 0, %s69
    %s84 = sphi 0, %s70
    %s88 = sphi 0, %s88
    %s90 = sphi 0, %s88
    %s91 = sphi 0, %s90
    %s105 = sphi 0, %s91
    %s109 = sphi 0, %s109
    %s111 = sphi 0, %s109
    %s112 = sphi 0, %s111
    %s126 = sphi 0, %s112
    %s130 = sphi 0, %s130
    %s132 = sphi 0, %s130
    %s133 = sphi 0, %s132
    %s147 = sphi 0, %s133
    %s153 = sphi 0, %s155
    %s156 = sphi 0, %s153
    %s157 = sphi 0, %s156
    %s173 = sphi 0, %s157
  $region4: #{decoder_forward.1} parent=0 // loop_header_branch
    %15 = sbr.rel (%p13) target = $region8
  $region5: #{decoder_forward.1} parent=0 // loop_body
    %s17 = ssub.s32 %s12, 1
    %s18 = ssub.s32 %s12, 2
    %s19 = sadd.s32 %s12, 1
    %s20 = ssub.s32 %s12, %s19
    %p21 = scmp.eq.s32.totalorder %s20, 0
    %s23 = sadd.s32 %s22, 1
    %s24 = scalar_select %p21, %s22, %s23
    %p27 = pneg %p21
    %p28 = scmp.eq.s32.totalorder %s12, 1
    %p29 = por %p27, %p28
    %p30 = scmp.ne.s32.totalorder %s22, %s25
    %p31 = scmp.eq.s32.totalorder %s12, 0
    %p32 = por %p30, %p31
    %p33 = scmp.ne.s32.totalorder %s22, %s25
    %p34 = scmp.eq.s32.totalorder %s17, 1
    %p35 = por %p33, %p34
    %p36 = scmp.ne.s32.totalorder %s25, %s26
    %p37 = scmp.eq.s32.totalorder %s17, 0
    %p38 = por %p36, %p37
    %p39 = scmp.ne.s32.totalorder %s25, %s26
    %p40 = scmp.eq.s32.totalorder %s18, 1
    %p41 = por %p39, %p40
    %p43 = scmp.ne.s32.totalorder %s26, %s42
    %p44 = scmp.eq.s32.totalorder %s18, 0
    %p45 = por %p43, %p44
    %s47 = sadd.s32 %s46, 1
    %p50 = scmp.eq.s32.totalorder %s12, 1
    %p51 = scmp.ne.s32.totalorder %s46, %s48
    %p52 = scmp.eq.s32.totalorder %s12, 0
    %p53 = por %p51, %p52
    %p54 = scmp.ne.s32.totalorder %s46, %s48
    %p55 = scmp.eq.s32.totalorder %s17, 1
    %p56 = por %p54, %p55
    %p57 = scmp.ne.s32.totalorder %s48, %s49
    %p58 = scmp.eq.s32.totalorder %s17, 0
    %p59 = por %p57, %p58
    %p60 = scmp.ne.s32.totalorder %s48, %s49
    %p61 = scmp.eq.s32.totalorder %s18, 1
    %p62 = por %p60, %p61
    %p64 = scmp.ne.s32.totalorder %s49, %s63
    %p65 = scmp.eq.s32.totalorder %s18, 0
    %p66 = por %p64, %p65
    %s68 = sadd.s32 %s67, 1
    %p71 = scmp.eq.s32.totalorder %s12, 1
    %p72 = scmp.ne.s32.totalorder %s67, %s69
    %p73 = scmp.eq.s32.totalorder %s12, 0
    %p74 = por %p72, %p73
    %p75 = scmp.ne.s32.totalorder %s67, %s69
    %p76 = scmp.eq.s32.totalorder %s17, 1
    %p77 = por %p75, %p76
    %p78 = scmp.ne.s32.totalorder %s69, %s70
    %p79 = scmp.eq.s32.totalorder %s17, 0
    %p80 = por %p78, %p79
    %p81 = scmp.ne.s32.totalorder %s69, %s70
    %p82 = scmp.eq.s32.totalorder %s18, 1
    %p83 = por %p81, %p82
    %p85 = scmp.ne.s32.totalorder %s70, %s84
    %p86 = scmp.eq.s32.totalorder %s18, 0
    %p87 = por %p85, %p86
    %s89 = sadd.s32 %s88, 1
    %p92 = scmp.eq.s32.totalorder %s12, 1
    %p93 = scmp.ne.s32.totalorder %s88, %s90
    %p94 = scmp.eq.s32.totalorder %s12, 0
    %p95 = por %p93, %p94
    %p96 = scmp.ne.s32.totalorder %s88, %s90
    %p97 = scmp.eq.s32.totalorder %s17, 1
    %p98 = por %p96, %p97
    %p99 = scmp.ne.s32.totalorder %s90, %s91
    %p100 = scmp.eq.s32.totalorder %s17, 0
    %p101 = por %p99, %p100
    %p102 = scmp.ne.s32.totalorder %s90, %s91
    %p103 = scmp.eq.s32.totalorder %s18, 1
    %p104 = por %p102, %p103
    %p106 = scmp.ne.s32.totalorder %s91, %s105
    %p107 = scmp.eq.s32.totalorder %s18, 0
    %p108 = por %p106, %p107
    %s110 = sadd.s32 %s109, 1
    %p113 = scmp.eq.s32.totalorder %s12, 1
    %p114 = scmp.ne.s32.totalorder %s109, %s111
    %p115 = scmp.eq.s32.totalorder %s12, 0
    %p116 = por %p114, %p115
    %p117 = scmp.ne.s32.totalorder %s109, %s111
    %p118 = scmp.eq.s32.totalorder %s17, 1
    %p119 = por %p117, %p118
    %p120 = scmp.ne.s32.totalorder %s111, %s112
    %p121 = scmp.eq.s32.totalorder %s17, 0
    %p122 = por %p120, %p121
    %p123 = scmp.ne.s32.totalorder %s111, %s112
    %p124 = scmp.eq.s32.totalorder %s18, 1
    %p125 = por %p123, %p124
    %p127 = scmp.ne.s32.totalorder %s112, %s126
    %p128 = scmp.eq.s32.totalorder %s18, 0
    %p129 = por %p127, %p128
    %s131 = sadd.s32 %s130, 1
    %p134 = scmp.eq.s32.totalorder %s12, 1
    %p135 = scmp.ne.s32.totalorder %s130, %s132
    %p136 = scmp.eq.s32.totalorder %s12, 0
    %p137 = por %p135, %p136
    %p138 = scmp.ne.s32.totalorder %s130, %s132
    %p139 = scmp.eq.s32.totalorder %s17, 1
    %p140 = por %p138, %p139
    %p141 = scmp.ne.s32.totalorder %s132, %s133
    %p142 = scmp.eq.s32.totalorder %s17, 0
    %p143 = por %p141, %p142
    %p144 = scmp.ne.s32.totalorder %s132, %s133
    %p145 = scmp.eq.s32.totalorder %s18, 1
    %p146 = por %p144, %p145
    %p148 = scmp.ne.s32.totalorder %s133, %s147
    %p149 = scmp.eq.s32.totalorder %s18, 0
    %p150 = por %p148, %p149
    %s151 = ssub.s32 %s12, %s19
    %p152 = scmp.eq.s32.totalorder %s151, 0
    %s154 = sadd.s32 %s153, 1
    %s155 = scalar_select %p152, %s153, %s154
    %p158 = pneg %p152
    %p159 = scmp.eq.s32.totalorder %s12, 1
    %p160 = por %p158, %p159
    %p161 = scmp.ne.s32.totalorder %s153, %s156
    %p162 = scmp.eq.s32.totalorder %s12, 0
    %p163 = por %p161, %p162
    %p164 = scmp.ne.s32.totalorder %s153, %s156
    %p165 = scmp.eq.s32.totalorder %s17, 1
    %p166 = por %p164, %p165
    %p167 = scmp.ne.s32.totalorder %s156, %s157
    %p168 = scmp.eq.s32.totalorder %s17, 0
    %p169 = por %p167, %p168
    %p170 = scmp.ne.s32.totalorder %s156, %s157
    %p171 = scmp.eq.s32.totalorder %s18, 1
    %p172 = por %p170, %p171
    %p174 = scmp.ne.s32.totalorder %s157, %s173
    %p175 = scmp.eq.s32.totalorder %s18, 0
    %p176 = por %p174, %p175
    %p177 = scmp.le.s32.totalorder 1, %s12
    %p178 = scmp.lt.s32.totalorder %s12, 3
    %p179 = pnand %p177, %p178
    %p180 = pneg %p179
    // Predicated region
    $region9: #{decoder_forward.1} parent=5 // pred_check
      _
    $region10: #{decoder_forward.1} parent=5 // pred_check_branch
      %182 = sbr.rel (%p179) target = $region12
    $region11: #{decoder_forward.1} parent=5 // pred_region
      %s183 = ssub.s32 %s12, 1
      // Predicated region
      $region13: #{decoder_forward.1} parent=11 // pred_check
        %p184 = pneg %p59
      $region14: #{decoder_forward.1} parent=11 // pred_check_branch
        %186 = sbr.rel (%p184) target = $region16
      $region15: #{decoder_forward.1} parent=11 // pred_region
        _
      $region16: #{decoder_forward.1} parent=11 // pred_fallthru
        _
      // Predicated region
      $region17: #{decoder_forward.1} parent=11 // pred_check
        %p187 = pneg %p80
      $region18: #{decoder_forward.1} parent=11 // pred_check_branch
        %189 = sbr.rel (%p187) target = $region20
      $region19: #{decoder_forward.1} parent=11 // pred_region
        _
      $region20: #{decoder_forward.1} parent=11 // pred_fallthru
        _
      // Predicated region
      $region21: #{decoder_forward.1} parent=11 // pred_check
        %p190 = pneg %p101
      $region22: #{decoder_forward.1} parent=11 // pred_check_branch
        %192 = sbr.rel (%p190) target = $region24
      $region23: #{decoder_forward.1} parent=11 // pred_region
        _
      $region24: #{decoder_forward.1} parent=11 // pred_fallthru
        _
      // Predicated region
      $region25: #{decoder_forward.1} parent=11 // pred_check
        %p193 = pneg %p122
      $region26: #{decoder_forward.1} parent=11 // pred_check_branch
        %195 = sbr.rel (%p193) target = $region28
      $region27: #{decoder_forward.1} parent=11 // pred_region
        _
      $region28: #{decoder_forward.1} parent=11 // pred_fallthru
        _
      // Predicated region
      $region29: #{decoder_forward.1} parent=11 // pred_check
        %p196 = pneg %p143
      $region30: #{decoder_forward.1} parent=11 // pred_check_branch
        %198 = sbr.rel (%p196) target = $region32
      $region31: #{decoder_forward.1} parent=11 // pred_region
        _
      $region32: #{decoder_forward.1} parent=11 // pred_fallthru
        _
    $region12: #{decoder_forward.1} parent=5 // pred_fallthru
      _
    %p199 = scmp.lt.s32.totalorder %s12, 2
    // Predicated region
    $region33: #{decoder_forward.1} parent=5 // pred_check
      %p200 = pneg %p199
    $region34: #{decoder_forward.1} parent=5 // pred_check_branch
      %202 = sbr.rel (%p200) target = $region36
    $region35: #{decoder_forward.1} parent=5 // pred_region
      // Predicated region
      $region37: #{decoder_forward.1} parent=35 // pred_check
        %p203 = pneg %p32
      $region38: #{decoder_forward.1} parent=35 // pred_check_branch
        %205 = sbr.rel (%p203) target = $region40
      $region39: #{decoder_forward.1} parent=35 // pred_region
        %p206 = scmp.lt.s32.totalorder %s12, 1
        %s207 = scalar_select %p206, %s12, 1
        %s208 = smul.addr %s207, 8
        %s209 = smul.addr %s208, 8
        %s210 = scalar_lea.vmem %s0, %s209
      $region40: #{decoder_forward.1} parent=35 // pred_fallthru
        _
    $region36: #{decoder_forward.1} parent=5 // pred_fallthru
      _
    %p211 = scmp.le.s32.totalorder 1, %s12
    %p212 = scmp.lt.s32.totalorder %s12, 3
    %p213 = pnand %p211, %p212
    %p214 = pneg %p213
    // Predicated region
    $region41: #{decoder_forward.1} parent=5 // pred_check
      _
    $region42: #{decoder_forward.1} parent=5 // pred_check_branch
      %216 = sbr.rel (%p213) target = $region44
    $region43: #{decoder_forward.1} parent=5 // pred_region
      %s217 = ssub.s32 %s12, 1
      %p218 = scmp.lt.s32.totalorder %s17, 1
      %s219 = scalar_select %p218, %s17, 1
      %s220 = smul.addr %s219, 8
      %s221 = smul.addr %s220, 8
      %s222 = scalar_lea.vmem %s0, %s221
      %p223 = pneg %p38
      %p224 = pneg %p35
      %p225 = pneg %p59
      %p226 = pneg %p56
      %p227 = pneg %p80
      %p228 = pneg %p77
      %p229 = pneg %p101
      %p230 = pneg %p98
      %p231 = pneg %p122
      %p232 = pneg %p119
      %p233 = pneg %p143
      %p234 = pneg %p140
      %p235 = pneg %p169
      %p236 = pneg %p166
      %p237 = scmp.lt.s32.totalorder %s17, 1
      %s238 = scalar_select %p237, %s17, 1
      %s239 = smul.addr %s238, 4
      %s240 = smul.addr %s239, 8
      %s241 = scalar_lea.vmem %s6, %s240
      %p242 = scmp.lt.s32.totalorder %s17, 1
      %s243 = scalar_select %p242, %s17, 1
      %s244 = smul.addr %s243, 8
      %s245 = smul.addr %s244, 8
      %s246 = scalar_lea.vmem %s0, %s245
      %p247 = scmp.lt.s32.totalorder %s17, 1
      %s248 = scalar_select %p247, %s17, 1
      %s249 = smul.addr %s248, 4
      %s250 = smul.addr %s249, 8
      %s251 = scalar_lea.vmem %s6, %s250
      %v252 = vld [vmem:[%s1] sm:$0xff]
      %v253 = vld [vmem:[%s1 + $0x8] sm:$0xff]
      %v254 = vld [vmem:[%s1 + $0x10] sm:$0xff]
      %v255 = vld [vmem:[%s1 + $0x18] sm:$0xff]
      %v256 = vld [vmem:[%s1 + $0x20] sm:$0x1]
      %v257 = vld [vmem:[%s1 + $0x28] sm:$0x1]
      %v258 = vld [vmem:[%s1 + $0x30] sm:$0x1]
      %v259 = vld [vmem:[%s1 + $0x38] sm:$0x1]
      %v260 = vld [vmem:[%s246] sm:$0xff]
      %v261 = vld [vmem:[%s246 + $0x8] sm:$0xff]
      %v262 = vld [vmem:[%s246 + $0x10] sm:$0xff]
      %v263 = vld [vmem:[%s246 + $0x18] sm:$0xff]
      %v264 = vld [vmem:[%s246 + $0x20] sm:$0xff]
      %v265 = vld [vmem:[%s246 + $0x28] sm:$0xff]
      %v266 = vld [vmem:[%s246 + $0x30] sm:$0xff]
      %v267 = vld [vmem:[%s246 + $0x38] sm:$0xff]
      %v268 = vld [vmem:[%s2] sm:$0xff]
      %v269 = vld [vmem:[%s2 + $0x8] sm:$0xff]
      %v270 = vld [vmem:[%s2 + $0x10] sm:$0xff]
      %v271 = vld [vmem:[%s2 + $0x18] sm:$0xff]
      %v272 = vld [vmem:[%s3] sm:$0xff]
      %v273 = vld [vmem:[%s3 + $0x8] sm:$0xff]
      %274 = vrot.lane.b32.xlu0 %v260, 17
      %v275 = vpop.permute.xlu0 %274
      %276 = vrot.lane.b32.xlu0 %v264, 17
      %v277 = vpop.permute.xlu0 %276
      %278 = vrot.lane.b32.xlu0 %v261, 17
      %v279 = vpop.permute.xlu0 %278
      %280 = vrot.lane.b32.xlu0 %v265, 17
      %v281 = vpop.permute.xlu0 %280
      %282 = vrot.lane.b32.xlu0 %v262, 17
      %v283 = vpop.permute.xlu0 %282
      %284 = vrot.lane.b32.xlu0 %v266, 17
      %v285 = vpop.permute.xlu0 %284
      %286 = vrot.lane.b32.xlu0 %v263, 17
      %v287 = vpop.permute.xlu0 %286
      %288 = vrot.lane.b32.xlu0 %v267, 17
      %v289 = vpop.permute.xlu0 %288
      %v290 = vlaneseq
      %v291 = vand.u32 %v290, 127
      %vm292 = vcmp.lt.s32.totalorder %v291, 17
      %v293 = vsel %vm292, %v283, %v287
      %v294 = vsel %vm292, %v285, %v289
      %v295 = vsel %vm292, %v279, %v283
      %v296 = vsel %vm292, %v281, %v285
      %v297 = vsel %vm292, %v275, %v279
      %v298 = vsel %vm292, %v277, %v281
      %v299 = vsel %vm292, %v287, %v275
      %v300 = vsel %vm292, %v289, %v277
      %v301 = vlaneseq
      %v302 = vshrl.u32 %v301, 7
      %v303 = vsub.s32 0, %v302
      %v304 = vrot.slane %v252, %v303
      %v305 = vlaneseq
      %v306 = vshrl.u32 %v305, 7
      %v307 = vsub.s32 0, %v306
      %v308 = vrot.slane %v253, %v307
      %v309 = vlaneseq
      %v310 = vshrl.u32 %v309, 7
      %v311 = vsub.s32 0, %v310
      %v312 = vrot.slane %v254, %v311
      %v313 = vlaneseq
      %v314 = vshrl.u32 %v313, 7
      %v315 = vsub.s32 0, %v314
      %v316 = vrot.slane %v255, %v315
      %v317 = vmul.f32 %v299, %v304
      %v318 = vmul.f32 %v297, %v308
      %v319 = vmul.f32 %v295, %v312
      %v320 = vmul.f32 %v293, %v316
      %v321 = vmul.f32 %v300, %v304
      %v322 = vmul.f32 %v298, %v308
      %v323 = vmul.f32 %v296, %v312
      %v324 = vmul.f32 %v294, %v316
      %325 = vst [vmem:[#allocation2] sm:$0xff] %v317
      %326 = vst [vmem:[#allocation2 + $0x8] sm:$0xff] %v318
      %327 = vst [vmem:[#allocation2 + $0x10] sm:$0xff] %v319
      %328 = vst [vmem:[#allocation2 + $0x18] sm:$0xff] %v320
      %329 = vst [vmem:[#allocation2 + $0x20] sm:$0xff] %v321
      %330 = vst [vmem:[#allocation2 + $0x28] sm:$0xff] %v322
      %331 = vst [vmem:[#allocation2 + $0x30] sm:$0xff] %v323
      %332 = vst [vmem:[#allocation2 + $0x38] sm:$0xff] %v324
      %333 = vrot.lane.b32.xlu0 %v260, 16
      %v334 = vpop.permute.xlu0 %333
      %335 = vrot.lane.b32.xlu0 %v264, 16
      %v336 = vpop.permute.xlu0 %335
      %337 = vrot.lane.b32.xlu0 %v261, 16
      %v338 = vpop.permute.xlu0 %337
      %339 = vrot.lane.b32.xlu0 %v265, 16
      %v340 = vpop.permute.xlu0 %339
      %341 = vrot.lane.b32.xlu0 %v262, 16
      %v342 = vpop.permute.xlu0 %341
      %343 = vrot.lane.b32.xlu0 %v266, 16
      %v344 = vpop.permute.xlu0 %343
      %345 = vrot.lane.b32.xlu0 %v263, 16
      %v346 = vpop.permute.xlu0 %345
      %347 = vrot.lane.b32.xlu0 %v267, 16
      %v348 = vpop.permute.xlu0 %347
      %vm349 = vcmp.lt.s32.totalorder %v291, 16
      %v350 = vsel %vm349, %v342, %v346
      %v351 = vsel %vm349, %v344, %v348
      %v352 = vsel %vm349, %v338, %v342
      %v353 = vsel %vm349, %v340, %v344
      %v354 = vsel %vm349, %v334, %v338
      %v355 = vsel %vm349, %v336, %v340
      %v356 = vsel %vm349, %v346, %v334
      %v357 = vsel %vm349, %v348, %v336
      %v358 = vlaneseq
      %v359 = vshrl.u32 %v358, 7
      %v360 = vsub.s32 1, %v359
      %v361 = vrot.slane %v252, %v360
      %v362 = vlaneseq
      %v363 = vshrl.u32 %v362, 7
      %v364 = vsub.s32 1, %v363
      %v365 = vrot.slane %v253, %v364
      %v366 = vlaneseq
      %v367 = vshrl.u32 %v366, 7
      %v368 = vsub.s32 1, %v367
      %v369 = vrot.slane %v254, %v368
      %v370 = vlaneseq
      %v371 = vshrl.u32 %v370, 7
      %v372 = vsub.s32 1, %v371
      %v373 = vrot.slane %v255, %v372
      %v374 = vmul.f32 %v356, %v361
      %v375 = vmul.f32 %v354, %v365
      %v376 = vmul.f32 %v352, %v369
      %v377 = vmul.f32 %v350, %v373
      %v378 = vmul.f32 %v357, %v361
      %v379 = vmul.f32 %v355, %v365
      %v380 = vmul.f32 %v353, %v369
      %v381 = vmul.f32 %v351, %v373
      %382 = vst [vmem:[#allocation2 + $0x40] sm:$0xff] %v374
      %383 = vst [vmem:[#allocation2 + $0x48] sm:$0xff] %v375
      %384 = vst [vmem:[#allocation2 + $0x50] sm:$0xff] %v376
      %385 = vst [vmem:[#allocation2 + $0x58] sm:$0xff] %v377
      %386 = vst [vmem:[#allocation2 + $0x60] sm:$0xff] %v378
      %387 = vst [vmem:[#allocation2 + $0x68] sm:$0xff] %v379
      %388 = vst [vmem:[#allocation2 + $0x70] sm:$0xff] %v380
      %389 = vst [vmem:[#allocation2 + $0x78] sm:$0xff] %v381
      %390 = vrot.lane.b32.xlu0 %v260, 15
      %v391 = vpop.permute.xlu0 %390
      %392 = vrot.lane.b32.xlu0 %v264, 15
      %v393 = vpop.permute.xlu0 %392
      %394 = vrot.lane.b32.xlu0 %v261, 15
      %v395 = vpop.permute.xlu0 %394
      %396 = vrot.lane.b32.xlu0 %v265, 15
      %v397 = vpop.permute.xlu0 %396
      %398 = vrot.lane.b32.xlu0 %v262, 15
      %v399 = vpop.permute.xlu0 %398
      %400 = vrot.lane.b32.xlu0 %v266, 15
      %v401 = vpop.permute.xlu0 %400
      %402 = vrot.lane.b32.xlu0 %v263, 15
      %v403 = vpop.permute.xlu0 %402
      %404 = vrot.lane.b32.xlu0 %v267, 15
      %v405 = vpop.permute.xlu0 %404
      %vm406 = vcmp.lt.s32.totalorder %v291, 15
      %v407 = vsel %vm406, %v399, %v403
      %v408 = vsel %vm406, %v401, %v405
      %v409 = vsel %vm406, %v395, %v399
      %v410 = vsel %vm406, %v397, %v401
      %v411 = vsel %vm406, %v391, %v395
      %v412 = vsel %vm406, %v393, %v397
      %v413 = vsel %vm406, %v403, %v391
      %v414 = vsel %vm406, %v405, %v393
      %v415 = vlaneseq
      %v416 = vshrl.u32 %v415, 7
      %v417 = vsub.s32 2, %v416
      %v418 = vrot.slane %v252, %v417
      %v419 = vlaneseq
      %v420 = vshrl.u32 %v419, 7
      %v421 = vsub.s32 2, %v420
      %v422 = vrot.slane %v253, %v421
      %v423 = vlaneseq
      %v424 = vshrl.u32 %v423, 7
      %v425 = vsub.s32 2, %v424
      %v426 = vrot.slane %v254, %v425
      %v427 = vlaneseq
      %v428 = vshrl.u32 %v427, 7
      %v429 = vsub.s32 2, %v428
      %v430 = vrot.slane %v255, %v429
      %v431 = vmul.f32 %v413, %v418
      %v432 = vmul.f32 %v411, %v422
      %v433 = vmul.f32 %v409, %v426
      %v434 = vmul.f32 %v407, %v430
      %v435 = vmul.f32 %v414, %v418
      %v436 = vmul.f32 %v412, %v422
      %v437 = vmul.f32 %v410, %v426
      %v438 = vmul.f32 %v408, %v430
      %439 = vst [vmem:[#allocation2 + $0x80] sm:$0xff] %v431
      %440 = vst [vmem:[#allocation2 + $0x88] sm:$0xff] %v432
      %441 = vst [vmem:[#allocation2 + $0x90] sm:$0xff] %v433
      %442 = vst [vmem:[#allocation2 + $0x98] sm:$0xff] %v434
      %443 = vst [vmem:[#allocation2 + $0xa0] sm:$0xff] %v435
      %444 = vst [vmem:[#allocation2 + $0xa8] sm:$0xff] %v436
      %445 = vst [vmem:[#allocation2 + $0xb0] sm:$0xff] %v437
      %446 = vst [vmem:[#allocation2 + $0xb8] sm:$0xff] %v438
      %447 = vrot.lane.b32.xlu0 %v260, 1
      %v448 = vpop.permute.xlu0 %447
      %449 = vrot.lane.b32.xlu0 %v264, 1
      %v450 = vpop.permute.xlu0 %449
      %451 = vrot.lane.b32.xlu0 %v261, 1
      %v452 = vpop.permute.xlu0 %451
      %453 = vrot.lane.b32.xlu0 %v265, 1
      %v454 = vpop.permute.xlu0 %453
      %455 = vrot.lane.b32.xlu0 %v262, 1
      %v456 = vpop.permute.xlu0 %455
      %457 = vrot.lane.b32.xlu0 %v266, 1
      %v458 = vpop.permute.xlu0 %457
      %459 = vrot.lane.b32.xlu0 %v263, 1
      %v460 = vpop.permute.xlu0 %459
      %461 = vrot.lane.b32.xlu0 %v267, 1
      %v462 = vpop.permute.xlu0 %461
      %vm463 = vcmp.lt.s32.totalorder %v291, 1
      %v464 = vsel %vm463, %v456, %v460
      %v465 = vsel %vm463, %v458, %v462
      %v466 = vsel %vm463, %v452, %v456
      %v467 = vsel %vm463, %v454, %v458
      %v468 = vsel %vm463, %v448, %v452
      %v469 = vsel %vm463, %v450, %v454
      %v470 = vsel %vm463, %v460, %v448
      %v471 = vsel %vm463, %v462, %v450
      %v472 = vlaneseq
      %v473 = vshrl.u32 %v472, 7
      %v474 = vsub.s32 3, %v473
      %v475 = vrot.slane %v252, %v474
      %v476 = vlaneseq
      %v477 = vshrl.u32 %v476, 7
      %v478 = vsub.s32 3, %v477
      %v479 = vrot.slane %v253, %v478
      %v480 = vlaneseq
      %v481 = vshrl.u32 %v480, 7
      %v482 = vsub.s32 3, %v481
      %v483 = vrot.slane %v254, %v482
      %v484 = vlaneseq
      %v485 = vshrl.u32 %v484, 7
      %v486 = vsub.s32 3, %v485
      %v487 = vrot.slane %v255, %v486
      %v488 = vmul.f32 %v470, %v475
      %v489 = vmul.f32 %v468, %v479
      %v490 = vmul.f32 %v466, %v483
      %v491 = vmul.f32 %v464, %v487
      %v492 = vmul.f32 %v471, %v475
      %v493 = vmul.f32 %v469, %v479
      %v494 = vmul.f32 %v467, %v483
      %v495 = vmul.f32 %v465, %v487
      %496 = vst [vmem:[#allocation2 + $0xc0] sm:$0xff] %v488
      %497 = vst [vmem:[#allocation2 + $0xc8] sm:$0xff] %v489
      %498 = vst [vmem:[#allocation2 + $0xd0] sm:$0xff] %v490
      %499 = vst [vmem:[#allocation2 + $0xd8] sm:$0xff] %v491
      %500 = vst [vmem:[#allocation2 + $0xe0] sm:$0xff] %v492
      %501 = vst [vmem:[#allocation2 + $0xe8] sm:$0xff] %v493
      %502 = vst [vmem:[#allocation2 + $0xf0] sm:$0xff] %v494
      %503 = vst [vmem:[#allocation2 + $0xf8] sm:$0xff] %v495
      %504 = vst [vmem:[#allocation2 + $0x100] sm:$0xff] %v260
      %505 = vst [vmem:[#allocation2 + $0x108] sm:$0xff] %v261
      %506 = vst [vmem:[#allocation2 + $0x110] sm:$0xff] %v262
      %507 = vst [vmem:[#allocation2 + $0x118] sm:$0xff] %v263
      %508 = vst [vmem:[#allocation2 + $0x120] sm:$0xff] %v264
      %509 = vst [vmem:[#allocation2 + $0x128] sm:$0xff] %v265
      %510 = vst [vmem:[#allocation2 + $0x130] sm:$0xff] %v266
      %511 = vst [vmem:[#allocation2 + $0x138] sm:$0xff] %v267
      %512 = vrot.lane.b32.xlu0 %v260, 127
      %v513 = vpop.permute.xlu0 %512
      %514 = vrot.lane.b32.xlu0 %v264, 127
      %v515 = vpop.permute.xlu0 %514
      %516 = vrot.lane.b32.xlu0 %v261, 127
      %v517 = vpop.permute.xlu0 %516
      %518 = vrot.lane.b32.xlu0 %v265, 127
      %v519 = vpop.permute.xlu0 %518
      %520 = vrot.lane.b32.xlu0 %v262, 127
      %v521 = vpop.permute.xlu0 %520
      %522 = vrot.lane.b32.xlu0 %v266, 127
      %v523 = vpop.permute.xlu0 %522
      %524 = vrot.lane.b32.xlu0 %v263, 127
      %v525 = vpop.permute.xlu0 %524
      %526 = vrot.lane.b32.xlu0 %v267, 127
      %v527 = vpop.permute.xlu0 %526
      %vm528 = vcmp.lt.s32.totalorder %v291, 127
      %v529 = vsel %vm528, %v521, %v525
      %v530 = vsel %vm528, %v523, %v527
      %v531 = vsel %vm528, %v517, %v521
      %v532 = vsel %vm528, %v519, %v523
      %v533 = vsel %vm528, %v513, %v517
      %v534 = vsel %vm528, %v515, %v519
      %v535 = vsel %vm528, %v525, %v513
      %v536 = vsel %vm528, %v527, %v515
      %v537 = vlaneseq
      %v538 = vshrl.u32 %v537, 7
      %v539 = vsub.s32 5, %v538
      %v540 = vrot.slane %v252, %v539
      %v541 = vlaneseq
      %v542 = vshrl.u32 %v541, 7
      %v543 = vsub.s32 5, %v542
      %v544 = vrot.slane %v253, %v543
      %v545 = vlaneseq
      %v546 = vshrl.u32 %v545, 7
      %v547 = vsub.s32 5, %v546
      %v548 = vrot.slane %v254, %v547
      %v549 = vlaneseq
      %v550 = vshrl.u32 %v549, 7
      %v551 = vsub.s32 5, %v550
      %v552 = vrot.slane %v255, %v551
      %v553 = vmul.f32 %v533, %v540
      %v554 = vmul.f32 %v531, %v544
      %v555 = vmul.f32 %v529, %v548
      %v556 = vmul.f32 %v535, %v552
      %v557 = vmul.f32 %v534, %v540
      %v558 = vmul.f32 %v532, %v544
      %v559 = vmul.f32 %v530, %v548
      %v560 = vmul.f32 %v536, %v552
      %561 = vst [vmem:[#allocation2 + $0x140] sm:$0xff] %v553
      %562 = vst [vmem:[#allocation2 + $0x148] sm:$0xff] %v554
      %563 = vst [vmem:[#allocation2 + $0x150] sm:$0xff] %v555
      %564 = vst [vmem:[#allocation2 + $0x158] sm:$0xff] %v556
      %565 = vst [vmem:[#allocation2 + $0x160] sm:$0xff] %v557
      %566 = vst [vmem:[#allocation2 + $0x168] sm:$0xff] %v558
      %567 = vst [vmem:[#allocation2 + $0x170] sm:$0xff] %v559
      %568 = vst [vmem:[#allocation2 + $0x178] sm:$0xff] %v560
      %569 = vrot.lane.b32.xlu0 %v260, 113
      %v570 = vpop.permute.xlu0 %569
      %571 = vrot.lane.b32.xlu0 %v264, 113
      %v572 = vpop.permute.xlu0 %571
      %573 = vrot.lane.b32.xlu0 %v261, 113
      %v574 = vpop.permute.xlu0 %573
      %575 = vrot.lane.b32.xlu0 %v265, 113
      %v576 = vpop.permute.xlu0 %575
      %577 = vrot.lane.b32.xlu0 %v262, 113
      %v578 = vpop.permute.xlu0 %577
      %579 = vrot.lane.b32.xlu0 %v266, 113
      %v580 = vpop.permute.xlu0 %579
      %581 = vrot.lane.b32.xlu0 %v263, 113
      %v582 = vpop.permute.xlu0 %581
      %583 = vrot.lane.b32.xlu0 %v267, 113
      %v584 = vpop.permute.xlu0 %583
      %vm585 = vcmp.lt.s32.totalorder %v291, 113
      %v586 = vsel %vm585, %v578, %v582
      %v587 = vsel %vm585, %v580, %v584
      %v588 = vsel %vm585, %v574, %v578
      %v589 = vsel %vm585, %v576, %v580
      %v590 = vsel %vm585, %v570, %v574
      %v591 = vsel %vm585, %v572, %v576
      %v592 = vsel %vm585, %v582, %v570
      %v593 = vsel %vm585, %v584, %v572
      %v594 = vlaneseq
      %v595 = vshrl.u32 %v594, 7
      %v596 = vsub.s32 6, %v595
      %v597 = vrot.slane %v252, %v596
      %v598 = vlaneseq
      %v599 = vshrl.u32 %v598, 7
      %v600 = vsub.s32 6, %v599
      %v601 = vrot.slane %v253, %v600
      %v602 = vlaneseq
      %v603 = vshrl.u32 %v602, 7
      %v604 = vsub.s32 6, %v603
      %v605 = vrot.slane %v254, %v604
      %v606 = vlaneseq
      %v607 = vshrl.u32 %v606, 7
      %v608 = vsub.s32 6, %v607
      %v609 = vrot.slane %v255, %v608
      %v610 = vmul.f32 %v590, %v597
      %v611 = vmul.f32 %v588, %v601
      %v612 = vmul.f32 %v586, %v605
      %v613 = vmul.f32 %v592, %v609
      %v614 = vmul.f32 %v591, %v597
      %v615 = vmul.f32 %v589, %v601
      %v616 = vmul.f32 %v587, %v605
      %v617 = vmul.f32 %v593, %v609
      %618 = vst [vmem:[#allocation2 + $0x180] sm:$0xff] %v610
      %619 = vst [vmem:[#allocation2 + $0x188] sm:$0xff] %v611
      %620 = vst [vmem:[#allocation2 + $0x190] sm:$0xff] %v612
      %621 = vst [vmem:[#allocation2 + $0x198] sm:$0xff] %v613
      %622 = vst [vmem:[#allocation2 + $0x1a0] sm:$0xff] %v614
      %623 = vst [vmem:[#allocation2 + $0x1a8] sm:$0xff] %v615
      %624 = vst [vmem:[#allocation2 + $0x1b0] sm:$0xff] %v616
      %625 = vst [vmem:[#allocation2 + $0x1b8] sm:$0xff] %v617
      %626 = vrot.lane.b32.xlu0 %v260, 112
      %v627 = vpop.permute.xlu0 %626
      %628 = vrot.lane.b32.xlu0 %v264, 112
      %v629 = vpop.permute.xlu0 %628
      %630 = vrot.lane.b32.xlu0 %v261, 112
      %v631 = vpop.permute.xlu0 %630
      %632 = vrot.lane.b32.xlu0 %v265, 112
      %v633 = vpop.permute.xlu0 %632
      %634 = vrot.lane.b32.xlu0 %v262, 112
      %v635 = vpop.permute.xlu0 %634
      %636 = vrot.lane.b32.xlu0 %v266, 112
      %v637 = vpop.permute.xlu0 %636
      %638 = vrot.lane.b32.xlu0 %v263, 112
      %v639 = vpop.permute.xlu0 %638
      %640 = vrot.lane.b32.xlu0 %v267, 112
      %v641 = vpop.permute.xlu0 %640
      %vm642 = vcmp.lt.s32.totalorder %v291, 112
      %v643 = vsel %vm642, %v635, %v639
      %v644 = vsel %vm642, %v637, %v641
      %v645 = vsel %vm642, %v631, %v635
      %v646 = vsel %vm642, %v633, %v637
      %v647 = vsel %vm642, %v627, %v631
      %v648 = vsel %vm642, %v629, %v633
      %v649 = vsel %vm642, %v639, %v627
      %v650 = vsel %vm642, %v641, %v629
      %v651 = vlaneseq
      %v652 = vshrl.u32 %v651, 7
      %v653 = vsub.s32 7, %v652
      %v654 = vrot.slane %v252, %v653
      %v655 = vlaneseq
      %v656 = vshrl.u32 %v655, 7
      %v657 = vsub.s32 7, %v656
      %v658 = vrot.slane %v253, %v657
      %v659 = vlaneseq
      %v660 = vshrl.u32 %v659, 7
      %v661 = vsub.s32 7, %v660
      %v662 = vrot.slane %v254, %v661
      %v663 = vlaneseq
      %v664 = vshrl.u32 %v663, 7
      %v665 = vsub.s32 7, %v664
      %v666 = vrot.slane %v255, %v665
      %v667 = vmul.f32 %v647, %v654
      %v668 = vmul.f32 %v645, %v658
      %v669 = vmul.f32 %v643, %v662
      %v670 = vmul.f32 %v649, %v666
      %v671 = vmul.f32 %v648, %v654
      %v672 = vmul.f32 %v646, %v658
      %v673 = vmul.f32 %v644, %v662
      %v674 = vmul.f32 %v650, %v666
      %675 = vst [vmem:[#allocation2 + $0x1c0] sm:$0xff] %v667
      %676 = vst [vmem:[#allocation2 + $0x1c8] sm:$0xff] %v668
      %677 = vst [vmem:[#allocation2 + $0x1d0] sm:$0xff] %v669
      %678 = vst [vmem:[#allocation2 + $0x1d8] sm:$0xff] %v670
      %679 = vst [vmem:[#allocation2 + $0x1e0] sm:$0xff] %v671
      %680 = vst [vmem:[#allocation2 + $0x1e8] sm:$0xff] %v672
      %681 = vst [vmem:[#allocation2 + $0x1f0] sm:$0xff] %v673
      %682 = vst [vmem:[#allocation2 + $0x1f8] sm:$0xff] %v674
      %683 = vrot.lane.b32.xlu0 %v260, 111
      %v684 = vpop.permute.xlu0 %683
      %685 = vrot.lane.b32.xlu0 %v264, 111
      %v686 = vpop.permute.xlu0 %685
      %687 = vrot.lane.b32.xlu0 %v261, 111
      %v688 = vpop.permute.xlu0 %687
      %689 = vrot.lane.b32.xlu0 %v265, 111
      %v690 = vpop.permute.xlu0 %689
      %691 = vrot.lane.b32.xlu0 %v262, 111
      %v692 = vpop.permute.xlu0 %691
      %693 = vrot.lane.b32.xlu0 %v266, 111
      %v694 = vpop.permute.xlu0 %693
      %695 = vrot.lane.b32.xlu0 %v263, 111
      %v696 = vpop.permute.xlu0 %695
      %697 = vrot.lane.b32.xlu0 %v267, 111
      %v698 = vpop.permute.xlu0 %697
      %vm699 = vcmp.lt.s32.totalorder %v291, 111
      %v700 = vsel %vm699, %v692, %v696
      %v701 = vsel %vm699, %v694, %v698
      %v702 = vsel %vm699, %v688, %v692
      %v703 = vsel %vm699, %v690, %v694
      %v704 = vsel %vm699, %v684, %v688
      %v705 = vsel %vm699, %v686, %v690
      %v706 = vsel %vm699, %v696, %v684
      %v707 = vsel %vm699, %v698, %v686
      %v708 = vlaneseq
      %v709 = vshrl.u32 %v708, 7
      %v710 = vsub.s32 0, %v709
      %v711 = vrot.slane %v256, %v710
      %v712 = vlaneseq
      %v713 = vshrl.u32 %v712, 7
      %v714 = vsub.s32 0, %v713
      %v715 = vrot.slane %v257, %v714
      %v716 = vlaneseq
      %v717 = vshrl.u32 %v716, 7
      %v718 = vsub.s32 0, %v717
      %v719 = vrot.slane %v258, %v718
      %v720 = vlaneseq
      %v721 = vshrl.u32 %v720, 7
      %v722 = vsub.s32 0, %v721
      %v723 = vrot.slane %v259, %v722
      %v724 = vmul.f32 %v704, %v711
      %v725 = vmul.f32 %v702, %v715
      %v726 = vmul.f32 %v700, %v719
      %v727 = vmul.f32 %v706, %v723
      %v728 = vmul.f32 %v705, %v711
      %v729 = vmul.f32 %v703, %v715
      %v730 = vmul.f32 %v701, %v719
      %v731 = vmul.f32 %v707, %v723
      %732 = vst [vmem:[#allocation2 + $0x200] sm:$0xff] %v724
      %733 = vst [vmem:[#allocation2 + $0x208] sm:$0xff] %v725
      %734 = vst [vmem:[#allocation2 + $0x210] sm:$0xff] %v726
      %735 = vst [vmem:[#allocation2 + $0x218] sm:$0xff] %v727
      %736 = vst [vmem:[#allocation2 + $0x220] sm:$0xff] %v728
      %737 = vst [vmem:[#allocation2 + $0x228] sm:$0xff] %v729
      %738 = vst [vmem:[#allocation2 + $0x230] sm:$0xff] %v730
      %739 = vst [vmem:[#allocation2 + $0x238] sm:$0xff] %v731
      %v740 = vld [vmem:[#allocation2] sm:$0xff]
      %v741 = vld [vmem:[#allocation2 + $0x8] sm:$0xff]
      %v742 = vld [vmem:[#allocation2 + $0x10] sm:$0xff]
      %v743 = vld [vmem:[#allocation2 + $0x18] sm:$0xff]
      %v744 = vld [vmem:[#allocation2 + $0x20] sm:$0xff]
      %v745 = vld [vmem:[#allocation2 + $0x28] sm:$0xff]
      %v746 = vld [vmem:[#allocation2 + $0x30] sm:$0xff]
      %v747 = vld [vmem:[#allocation2 + $0x38] sm:$0xff]
      %v748 = vld [vmem:[#allocation2 + $0x40] sm:$0xff]
      %v749 = vld [vmem:[#allocation2 + $0x48] sm:$0xff]
      %v750 = vld [vmem:[#allocation2 + $0x50] sm:$0xff]
      %v751 = vld [vmem:[#allocation2 + $0x58] sm:$0xff]
      %v752 = vld [vmem:[#allocation2 + $0x60] sm:$0xff]
      %v753 = vld [vmem:[#allocation2 + $0x68] sm:$0xff]
      %v754 = vld [vmem:[#allocation2 + $0x70] sm:$0xff]
      %v755 = vld [vmem:[#allocation2 + $0x78] sm:$0xff]
      %v756 = vld [vmem:[#allocation2 + $0x80] sm:$0xff]
      %v757 = vld [vmem:[#allocation2 + $0x88] sm:$0xff]
      %v758 = vld [vmem:[#allocation2 + $0x90] sm:$0xff]
      %v759 = vld [vmem:[#allocation2 + $0x98] sm:$0xff]
      %v760 = vld [vmem:[#allocation2 + $0xa0] sm:$0xff]
      %v761 = vld [vmem:[#allocation2 + $0xa8] sm:$0xff]
      %v762 = vld [vmem:[#allocation2 + $0xb0] sm:$0xff]
      %v763 = vld [vmem:[#allocation2 + $0xb8] sm:$0xff]
      %v764 = vld [vmem:[#allocation2 + $0xc0] sm:$0xff]
      %v765 = vld [vmem:[#allocation2 + $0xc8] sm:$0xff]
      %v766 = vld [vmem:[#allocation2 + $0xd0] sm:$0xff]
      %v767 = vld [vmem:[#allocation2 + $0xd8] sm:$0xff]
      %v768 = vld [vmem:[#allocation2 + $0xe0] sm:$0xff]
      %v769 = vld [vmem:[#allocation2 + $0xe8] sm:$0xff]
      %v770 = vld [vmem:[#allocation2 + $0xf0] sm:$0xff]
      %v771 = vld [vmem:[#allocation2 + $0xf8] sm:$0xff]
      %v772 = vld [vmem:[#allocation2 + $0x100] sm:$0xff]
      %v773 = vld [vmem:[#allocation2 + $0x108] sm:$0xff]
      %v774 = vld [vmem:[#allocation2 + $0x110] sm:$0xff]
      %v775 = vld [vmem:[#allocation2 + $0x118] sm:$0xff]
      %v776 = vld [vmem:[#allocation2 + $0x120] sm:$0xff]
      %v777 = vld [vmem:[#allocation2 + $0x128] sm:$0xff]
      %v778 = vld [vmem:[#allocation2 + $0x130] sm:$0xff]
      %v779 = vld [vmem:[#allocation2 + $0x138] sm:$0xff]
      %v780 = vld [vmem:[#allocation2 + $0x140] sm:$0xff]
      %v781 = vld [vmem:[#allocation2 + $0x148] sm:$0xff]
      %v782 = vld [vmem:[#allocation2 + $0x150] sm:$0xff]
      %v783 = vld [vmem:[#allocation2 + $0x158] sm:$0xff]
      %v784 = vld [vmem:[#allocation2 + $0x160] sm:$0xff]
      %v785 = vld [vmem:[#allocation2 + $0x168] sm:$0xff]
      %v786 = vld [vmem:[#allocation2 + $0x170] sm:$0xff]
      %v787 = vld [vmem:[#allocation2 + $0x178] sm:$0xff]
      %v788 = vld [vmem:[#allocation2 + $0x180] sm:$0xff]
      %v789 = vld [vmem:[#allocation2 + $0x188] sm:$0xff]
      %v790 = vld [vmem:[#allocation2 + $0x190] sm:$0xff]
      %v791 = vld [vmem:[#allocation2 + $0x198] sm:$0xff]
      %v792 = vld [vmem:[#allocation2 + $0x1a0] sm:$0xff]
      %v793 = vld [vmem:[#allocation2 + $0x1a8] sm:$0xff]
      %v794 = vld [vmem:[#allocation2 + $0x1b0] sm:$0xff]
      %v795 = vld [vmem:[#allocation2 + $0x1b8] sm:$0xff]
      %v796 = vld [vmem:[#allocation2 + $0x1c0] sm:$0xff]
      %v797 = vld [vmem:[#allocation2 + $0x1c8] sm:$0xff]
      %v798 = vld [vmem:[#allocation2 + $0x1d0] sm:$0xff]
      %v799 = vld [vmem:[#allocation2 + $0x1d8] sm:$0xff]
      %v800 = vld [vmem:[#allocation2 + $0x1e0] sm:$0xff]
      %v801 = vld [vmem:[#allocation2 + $0x1e8] sm:$0xff]
      %v802 = vld [vmem:[#allocation2 + $0x1f0] sm:$0xff]
      %v803 = vld [vmem:[#allocation2 + $0x1f8] sm:$0xff]
      %v804 = vld [vmem:[#allocation2 + $0x200] sm:$0xff]
      %v805 = vld [vmem:[#allocation2 + $0x208] sm:$0xff]
      %v806 = vld [vmem:[#allocation2 + $0x210] sm:$0xff]
      %v807 = vld [vmem:[#allocation2 + $0x218] sm:$0xff]
      %v808 = vld [vmem:[#allocation2 + $0x220] sm:$0xff]
      %v809 = vld [vmem:[#allocation2 + $0x228] sm:$0xff]
      %v810 = vld [vmem:[#allocation2 + $0x230] sm:$0xff]
      %v811 = vld [vmem:[#allocation2 + $0x238] sm:$0xff]
      %813 = vset.pattern.permute.xlu0 0
      %814 = vperm.xlu0 %813, %v272
      %v815 = vpop.permute.xlu0 %814
      %818 = vset.pattern.permute.xlu0 0
      %819 = vperm.xlu0 %818, %v273
      %v820 = vpop.permute.xlu0 %819
      %vm822 = vcmask 130048
      %v824 = vsel %vm822, %v269, 0
      %v827 = vsel %vm822, %v271, 0
      %829 = vmatprep.subr.mxu0 %v741
      %830 = vmatpush1.msra.mxu0 %v740
      %831 = vmatprep.subr.mxu0 %v745
      %832 = vmatpush1.msra.mxu0 %v744
      %833 = vmatprep.subr.mxu0 %v749
      %834 = vmatpush1.msra.mxu0 %v748
      %835 = vmatprep.subr.mxu0 %v753
      %836 = vmatpush1.msra.mxu0 %v752
      %837 = vmatprep.subr.mxu0 %v757
      %838 = vmatpush1.msra.mxu0 %v756
      %839 = vmatprep.subr.mxu0 %v761
      %840 = vmatpush1.msra.mxu0 %v760
      %841 = vmatprep.subr.mxu0 %v765
      %842 = vmatpush1.msra.mxu0 %v764
      %843 = vmatprep.subr.mxu0 %v769
      %844 = vmatpush1.msra.mxu0 %v768
      %845 = vmatprep.subr.mxu0 %v773
      %846 = vmatpush1.msra.mxu0 %v772
      %847 = vmatprep.subr.mxu0 %v777
      %848 = vmatpush1.msra.mxu0 %v776
      %849 = vmatprep.subr.mxu0 %v781
      %850 = vmatpush1.msra.mxu0 %v780
      %851 = vmatprep.subr.mxu0 %v785
      %852 = vmatpush1.msra.mxu0 %v784
      %853 = vmatprep.subr.mxu0 %v789
      %854 = vmatpush1.msra.mxu0 %v788
      %855 = vmatprep.subr.mxu0 %v793
      %856 = vmatpush1.msra.mxu0 %v792
      %857 = vmatprep.subr.mxu0 %v797
      %858 = vmatpush1.msra.mxu0 %v796
      %859 = vmatprep.subr.mxu0 %v801
      %860 = vmatpush1.msra.mxu0 %v800
      %861 = vmatprep.subr.mxu0 %v805
      %862 = vmatpush1.msra.mxu0 %v804
      %863 = vmatprep.subr.mxu0 %v809
      %864 = vmatpush1.msra.mxu0 %v808
      %865 = vmatprep.subr.mxu0 0.0
      %866 = vmatpush1.msra.mxu0 0.0
      %867 = vmatprep.subr.mxu0 0.0
      %868 = vmatpush1.msra.mxu0 0.0
      %869 = vmatprep.subr.mxu0 0.0
      %870 = vmatpush1.msra.mxu0 0.0
      %871 = vmatprep.subr.mxu0 0.0
      %872 = vmatpush1.msra.mxu0 0.0
      %873 = vmatprep.subr.mxu0 0.0
      %874 = vmatpush1.msra.mxu0 0.0
      %875 = vmatprep.subr.mxu0 0.0
      %876 = vmatpush1.msra.mxu0 0.0
      %877 = vmatprep.subr.mxu0 0.0
      %878 = vmatpush1.msra.mxu0 0.0
      %879 = vmatprep.subr.mxu0 0.0
      %880 = vmatpush1.msra.mxu0 0.0
      %881 = vmatprep.subr.mxu0 0.0
      %882 = vmatpush1.msra.mxu0 0.0
      %883 = vmatprep.subr.mxu0 0.0
      %884 = vmatpush1.msra.mxu0 0.0
      %885 = vmatprep.subr.mxu0 0.0
      %886 = vmatpush1.msra.mxu0 0.0
      %887 = vmatprep.subr.mxu0 0.0
      %888 = vmatpush1.msra.mxu0 0.0
      %889 = vmatprep.subr.mxu0 0.0
      %890 = vmatpush1.msra.mxu0 0.0
      %891 = vmatprep.subr.mxu0 0.0
      %892 = vmatpush1.msra.mxu0 0.0
      %893 = vmatprep.mubr.f32.mxu0 %v824
      %894 = vmatmul.mubr.f32.gmra.mrb[0].mxu0 %v268
      %v895 = vpop.f32.mrb[0].mxu0
      %v896 = vadd.f32 %v815, %v895
      %v897 = vpop.f32.mrb[0].mxu0
      %v898 = vadd.f32 %v815, %v897
      %899 = vmatprep.mubr.f32.mxu0 %v827
      %900 = vmatmul.mubr.f32.gmra.mrb[0].mxu0 %v270
      %v901 = vpop.f32.mrb[0].mxu0
      %v902 = vadd.f32 %v820, %v901
      %v903 = vpop.f32.mrb[0].mxu0
      %v904 = vadd.f32 %v820, %v903
      %905 = vdwg.mxu0
      %906 = vmatprep.subr.mxu0 %v743
      %907 = vmatpush1.msra.mxu0 %v742
      %908 = vmatprep.subr.mxu0 %v747
      %909 = vmatpush1.msra.mxu0 %v746
      %910 = vmatprep.subr.mxu0 %v751
      %911 = vmatpush1.msra.mxu0 %v750
      %912 = vmatprep.subr.mxu0 %v755
      %913 = vmatpush1.msra.mxu0 %v754
      %914 = vmatprep.subr.mxu0 %v759
      %915 = vmatpush1.msra.mxu0 %v758
      %916 = vmatprep.subr.mxu0 %v763
      %917 = vmatpush1.msra.mxu0 %v762
      %918 = vmatprep.subr.mxu0 %v767
      %919 = vmatpush1.msra.mxu0 %v766
      %920 = vmatprep.subr.mxu0 %v771
      %921 = vmatpush1.msra.mxu0 %v770
      %922 = vmatprep.subr.mxu0 %v775
      %923 = vmatpush1.msra.mxu0 %v774
      %924 = vmatprep.subr.mxu0 %v779
      %925 = vmatpush1.msra.mxu0 %v778
      %926 = vmatprep.subr.mxu0 %v783
      %927 = vmatpush1.msra.mxu0 %v782
      %928 = vmatprep.subr.mxu0 %v787
      %929 = vmatpush1.msra.mxu0 %v786
      %930 = vmatprep.subr.mxu0 %v791
      %931 = vmatpush1.msra.mxu0 %v790
      %932 = vmatprep.subr.mxu0 %v795
      %933 = vmatpush1.msra.mxu0 %v794
      %934 = vmatprep.subr.mxu0 %v799
      %935 = vmatpush1.msra.mxu0 %v798
      %936 = vmatprep.subr.mxu0 %v803
      %937 = vmatpush1.msra.mxu0 %v802
      %938 = vmatprep.subr.mxu0 %v807
      %939 = vmatpush1.msra.mxu0 %v806
      %940 = vmatprep.subr.mxu0 %v811
      %941 = vmatpush1.msra.mxu0 %v810
      %942 = vmatprep.subr.mxu0 0.0
      %943 = vmatpush1.msra.mxu0 0.0
      %944 = vmatprep.subr.mxu0 0.0
      %945 = vmatpush1.msra.mxu0 0.0
      %946 = vmatprep.subr.mxu0 0.0
      %947 = vmatpush1.msra.mxu0 0.0
      %948 = vmatprep.subr.mxu0 0.0
      %949 = vmatpush1.msra.mxu0 0.0
      %950 = vmatprep.subr.mxu0 0.0
      %951 = vmatpush1.msra.mxu0 0.0
      %952 = vmatprep.subr.mxu0 0.0
      %953 = vmatpush1.msra.mxu0 0.0
      %954 = vmatprep.subr.mxu0 0.0
      %955 = vmatpush1.msra.mxu0 0.0
      %956 = vmatprep.subr.mxu0 0.0
      %957 = vmatpush1.msra.mxu0 0.0
      %958 = vmatprep.subr.mxu0 0.0
      %959 = vmatpush1.msra.mxu0 0.0
      %960 = vmatprep.subr.mxu0 0.0
      %961 = vmatpush1.msra.mxu0 0.0
      %962 = vmatprep.subr.mxu0 0.0
      %963 = vmatpush1.msra.mxu0 0.0
      %964 = vmatprep.subr.mxu0 0.0
      %965 = vmatpush1.msra.mxu0 0.0
      %966 = vmatprep.subr.mxu0 0.0
      %967 = vmatpush1.msra.mxu0 0.0
      %968 = vmatprep.subr.mxu0 0.0
      %969 = vmatpush1.msra.mxu0 0.0
      %970 = vmatprep.mubr.f32.mxu0 %v824
      %971 = vmatmul.mubr.f32.gmra.mrb[0].mxu0 %v268
      %v972 = vpop.f32.mrb[0].mxu0
      %v973 = vadd.f32 %v815, %v972
      %v974 = vpop.f32.mrb[0].mxu0
      %v975 = vadd.f32 %v815, %v974
      %976 = vmatprep.mubr.f32.mxu0 %v827
      %977 = vmatmul.mubr.f32.gmra.mrb[0].mxu0 %v270
      %v978 = vpop.f32.mrb[0].mxu0
      %v979 = vadd.f32 %v820, %v978
      %v980 = vpop.f32.mrb[0].mxu0
      %v981 = vadd.f32 %v820, %v980
      %982 = vdwg.mxu0
      %v983 = vmul.f32 %v896, 0.2
      %v984 = vmul.f32 %v898, 0.2
      %v985 = vmul.f32 %v973, 0.2
      %v986 = vmul.f32 %v975, 0.2
      %v987 = vmul.f32 %v902, 0.2
      %v988 = vmul.f32 %v904, 0.2
      %v989 = vmul.f32 %v979, 0.2
      %v990 = vmul.f32 %v981, 0.2
      %v991 = vmax.f32 %v896, %v983
      %v992 = vmax.f32 %v898, %v984
      %v993 = vmax.f32 %v973, %v985
      %v994 = vmax.f32 %v975, %v986
      %v995 = vmax.f32 %v902, %v987
      %v996 = vmax.f32 %v904, %v988
      %v997 = vmax.f32 %v979, %v989
      %v998 = vmax.f32 %v981, %v990
      %s999 = scalar_lea.vmem %s2, 32
      %v1000 = vld [vmem:[%s999] sm:$0xff]
      %v1001 = vld [vmem:[%s999 + $0x8] sm:$0xff]
      %v1002 = vld [vmem:[%s999 + $0x10] sm:$0xff]
      %v1003 = vld [vmem:[%s999 + $0x18] sm:$0xff]
      %s1004 = scalar_lea.vmem %s3, 16
      %v1005 = vld [vmem:[%s1004] sm:$0xff]
      %v1006 = vld [vmem:[%s1004 + $0x8] sm:$0xff]
      %1007 = vrot.lane.b32.xlu0 %v991, 17
      %v1008 = vpop.permute.xlu0 %1007
      %1009 = vrot.lane.b32.xlu0 %v995, 17
      %v1010 = vpop.permute.xlu0 %1009
      %1011 = vrot.lane.b32.xlu0 %v992, 17
      %v1012 = vpop.permute.xlu0 %1011
      %1013 = vrot.lane.b32.xlu0 %v996, 17
      %v1014 = vpop.permute.xlu0 %1013
      %1015 = vrot.lane.b32.xlu0 %v993, 17
      %v1016 = vpop.permute.xlu0 %1015
      %1017 = vrot.lane.b32.xlu0 %v997, 17
      %v1018 = vpop.permute.xlu0 %1017
      %1019 = vrot.lane.b32.xlu0 %v994, 17
      %v1020 = vpop.permute.xlu0 %1019
      %1021 = vrot.lane.b32.xlu0 %v998, 17
      %v1022 = vpop.permute.xlu0 %1021
      %v1023 = vsel %vm292, %v1016, %v1020
      %v1024 = vsel %vm292, %v1018, %v1022
      %v1025 = vsel %vm292, %v1012, %v1016
      %v1026 = vsel %vm292, %v1014, %v1018
      %v1027 = vsel %vm292, %v1008, %v1012
      %v1028 = vsel %vm292, %v1010, %v1014
      %v1029 = vsel %vm292, %v1020, %v1008
      %v1030 = vsel %vm292, %v1022, %v1010
      %v1031 = vmul.f32 %v1029, %v304
      %v1032 = vmul.f32 %v1027, %v308
      %v1033 = vmul.f32 %v1025, %v312
      %v1034 = vmul.f32 %v1023, %v316
      %v1035 = vmul.f32 %v1030, %v304
      %v1036 = vmul.f32 %v1028, %v308
      %v1037 = vmul.f32 %v1026, %v312
      %v1038 = vmul.f32 %v1024, %v316
      %1039 = vst [vmem:[#allocation2] sm:$0xff] %v1031
      %1040 = vst [vmem:[#allocation2 + $0x8] sm:$0xff] %v1032
      %1041 = vst [vmem:[#allocation2 + $0x10] sm:$0xff] %v1033
      %1042 = vst [vmem:[#allocation2 + $0x18] sm:$0xff] %v1034
      %1043 = vst [vmem:[#allocation2 + $0x20] sm:$0xff] %v1035
      %1044 = vst [vmem:[#allocation2 + $0x28] sm:$0xff] %v1036
      %1045 = vst [vmem:[#allocation2 + $0x30] sm:$0xff] %v1037
      %1046 = vst [vmem:[#allocation2 + $0x38] sm:$0xff] %v1038
      %1047 = vrot.lane.b32.xlu0 %v991, 16
      %v1048 = vpop.permute.xlu0 %1047
      %1049 = vrot.lane.b32.xlu0 %v995, 16
      %v1050 = vpop.permute.xlu0 %1049
      %1051 = vrot.lane.b32.xlu0 %v992, 16
      %v1052 = vpop.permute.xlu0 %1051
      %1053 = vrot.lane.b32.xlu0 %v996, 16
      %v1054 = vpop.permute.xlu0 %1053
      %1055 = vrot.lane.b32.xlu0 %v993, 16
      %v1056 = vpop.permute.xlu0 %1055
      %1057 = vrot.lane.b32.xlu0 %v997, 16
      %v1058 = vpop.permute.xlu0 %1057
      %1059 = vrot.lane.b32.xlu0 %v994, 16
      %v1060 = vpop.permute.xlu0 %1059
      %1061 = vrot.lane.b32.xlu0 %v998, 16
      %v1062 = vpop.permute.xlu0 %1061
      %v1063 = vsel %vm349, %v1056, %v1060
      %v1064 = vsel %vm349, %v1058, %v1062
      %v1065 = vsel %vm349, %v1052, %v1056
      %v1066 = vsel %vm349, %v1054, %v1058
      %v1067 = vsel %vm349, %v1048, %v1052
      %v1068 = vsel %vm349, %v1050, %v1054
      %v1069 = vsel %vm349, %v1060, %v1048
      %v1070 = vsel %vm349, %v1062, %v1050
      %v1071 = vmul.f32 %v1069, %v361
      %v1072 = vmul.f32 %v1067, %v365
      %v1073 = vmul.f32 %v1065, %v369
      %v1074 = vmul.f32 %v1063, %v373
      %v1075 = vmul.f32 %v1070, %v361
      %v1076 = vmul.f32 %v1068, %v365
      %v1077 = vmul.f32 %v1066, %v369
      %v1078 = vmul.f32 %v1064, %v373
      %1079 = vst [vmem:[#allocation2 + $0x40] sm:$0xff] %v1071
      %1080 = vst [vmem:[#allocation2 + $0x48] sm:$0xff] %v1072
      %1081 = vst [vmem:[#allocation2 + $0x50] sm:$0xff] %v1073
      %1082 = vst [vmem:[#allocation2 + $0x58] sm:$0xff] %v1074
      %1083 = vst [vmem:[#allocation2 + $0x60] sm:$0xff] %v1075
      %1084 = vst [vmem:[#allocation2 + $0x68] sm:$0xff] %v1076
      %1085 = vst [vmem:[#allocation2 + $0x70] sm:$0xff] %v1077
      %1086 = vst [vmem:[#allocation2 + $0x78] sm:$0xff] %v1078
      %1087 = vrot.lane.b32.xlu0 %v991, 15
      %v1088 = vpop.permute.xlu0 %1087
      %1089 = vrot.lane.b32.xlu0 %v995, 15
      %v1090 = vpop.permute.xlu0 %1089
      %1091 = vrot.lane.b32.xlu0 %v992, 15
      %v1092 = vpop.permute.xlu0 %1091
      %1093 = vrot.lane.b32.xlu0 %v996, 15
      %v1094 = vpop.permute.xlu0 %1093
      %1095 = vrot.lane.b32.xlu0 %v993, 15
      %v1096 = vpop.permute.xlu0 %1095
      %1097 = vrot.lane.b32.xlu0 %v997, 15
      %v1098 = vpop.permute.xlu0 %1097
      %1099 = vrot.lane.b32.xlu0 %v994, 15
      %v1100 = vpop.permute.xlu0 %1099
      %1101 = vrot.lane.b32.xlu0 %v998, 15
      %v1102 = vpop.permute.xlu0 %1101
      %v1103 = vsel %vm406, %v1096, %v1100
      %v1104 = vsel %vm406, %v1098, %v1102
      %v1105 = vsel %vm406, %v1092, %v1096
      %v1106 = vsel %vm406, %v1094, %v1098
      %v1107 = vsel %vm406, %v1088, %v1092
      %v1108 = vsel %vm406, %v1090, %v1094
      %v1109 = vsel %vm406, %v1100, %v1088
      %v1110 = vsel %vm406, %v1102, %v1090
      %v1111 = vmul.f32 %v1109, %v418
      %v1112 = vmul.f32 %v1107, %v422
      %v1113 = vmul.f32 %v1105, %v426
      %v1114 = vmul.f32 %v1103, %v430
      %v1115 = vmul.f32 %v1110, %v418
      %v1116 = vmul.f32 %v1108, %v422
      %v1117 = vmul.f32 %v1106, %v426
      %v1118 = vmul.f32 %v1104, %v430
      %1119 = vst [vmem:[#allocation2 + $0x80] sm:$0xff] %v1111
      %1120 = vst [vmem:[#allocation2 + $0x88] sm:$0xff] %v1112
      %1121 = vst [vmem:[#allocation2 + $0x90] sm:$0xff] %v1113
      %1122 = vst [vmem:[#allocation2 + $0x98] sm:$0xff] %v1114
      %1123 = vst [vmem:[#allocation2 + $0xa0] sm:$0xff] %v1115
      %1124 = vst [vmem:[#allocation2 + $0xa8] sm:$0xff] %v1116
      %1125 = vst [vmem:[#allocation2 + $0xb0] sm:$0xff] %v1117
      %1126 = vst [vmem:[#allocation2 + $0xb8] sm:$0xff] %v1118
      %1127 = vrot.lane.b32.xlu0 %v991, 1
      %v1128 = vpop.permute.xlu0 %1127
      %1129 = vrot.lane.b32.xlu0 %v995, 1
      %v1130 = vpop.permute.xlu0 %1129
      %1131 = vrot.lane.b32.xlu0 %v992, 1
      %v1132 = vpop.permute.xlu0 %1131
      %1133 = vrot.lane.b32.xlu0 %v996, 1
      %v1134 = vpop.permute.xlu0 %1133
      %1135 = vrot.lane.b32.xlu0 %v993, 1
      %v1136 = vpop.permute.xlu0 %1135
      %1137 = vrot.lane.b32.xlu0 %v997, 1
      %v1138 = vpop.permute.xlu0 %1137
      %1139 = vrot.lane.b32.xlu0 %v994, 1
      %v1140 = vpop.permute.xlu0 %1139
      %1141 = vrot.lane.b32.xlu0 %v998, 1
      %v1142 = vpop.permute.xlu0 %1141
      %v1143 = vsel %vm463, %v1136, %v1140
      %v1144 = vsel %vm463, %v1138, %v1142
      %v1145 = vsel %vm463, %v1132, %v1136
      %v1146 = vsel %vm463, %v1134, %v1138
      %v1147 = vsel %vm463, %v1128, %v1132
      %v1148 = vsel %vm463, %v1130, %v1134
      %v1149 = vsel %vm463, %v1140, %v1128
      %v1150 = vsel %vm463, %v1142, %v1130
      %v1151 = vmul.f32 %v1149, %v475
      %v1152 = vmul.f32 %v1147, %v479
      %v1153 = vmul.f32 %v1145, %v483
      %v1154 = vmul.f32 %v1143, %v487
      %v1155 = vmul.f32 %v1150, %v475
      %v1156 = vmul.f32 %v1148, %v479
      %v1157 = vmul.f32 %v1146, %v483
      %v1158 = vmul.f32 %v1144, %v487
      %1159 = vst [vmem:[#allocation2 + $0xc0] sm:$0xff] %v1151
      %1160 = vst [vmem:[#allocation2 + $0xc8] sm:$0xff] %v1152
      %1161 = vst [vmem:[#allocation2 + $0xd0] sm:$0xff] %v1153
      %1162 = vst [vmem:[#allocation2 + $0xd8] sm:$0xff] %v1154
      %1163 = vst [vmem:[#allocation2 + $0xe0] sm:$0xff] %v1155
      %1164 = vst [vmem:[#allocation2 + $0xe8] sm:$0xff] %v1156
      %1165 = vst [vmem:[#allocation2 + $0xf0] sm:$0xff] %v1157
      %1166 = vst [vmem:[#allocation2 + $0xf8] sm:$0xff] %v1158
      %1167 = vst [vmem:[#allocation2 + $0x100] sm:$0xff] %v991
      %1168 = vst [vmem:[#allocation2 + $0x108] sm:$0xff] %v992
      %1169 = vst [vmem:[#allocation2 + $0x110] sm:$0xff] %v993
      %1170 = vst [vmem:[#allocation2 + $0x118] sm:$0xff] %v994
      %1171 = vst [vmem:[#allocation2 + $0x120] sm:$0xff] %v995
      %1172 = vst [vmem:[#allocation2 + $0x128] sm:$0xff] %v996
      %1173 = vst [vmem:[#allocation2 + $0x130] sm:$0xff] %v997
      %1174 = vst [vmem:[#allocation2 + $0x138] sm:$0xff] %v998
      %1175 = vrot.lane.b32.xlu0 %v991, 127
      %v1176 = vpop.permute.xlu0 %1175
      %1177 = vrot.lane.b32.xlu0 %v995, 127
      %v1178 = vpop.permute.xlu0 %1177
      %1179 = vrot.lane.b32.xlu0 %v992, 127
      %v1180 = vpop.permute.xlu0 %1179
      %1181 = vrot.lane.b32.xlu0 %v996, 127
      %v1182 = vpop.permute.xlu0 %1181
      %1183 = vrot.lane.b32.xlu0 %v993, 127
      %v1184 = vpop.permute.xlu0 %1183
      %1185 = vrot.lane.b32.xlu0 %v997, 127
      %v1186 = vpop.permute.xlu0 %1185
      %1187 = vrot.lane.b32.xlu0 %v994, 127
      %v1188 = vpop.permute.xlu0 %1187
      %1189 = vrot.lane.b32.xlu0 %v998, 127
      %v1190 = vpop.permute.xlu0 %1189
      %v1191 = vsel %vm528, %v1184, %v1188
      %v1192 = vsel %vm528, %v1186, %v1190
      %v1193 = vsel %vm528, %v1180, %v1184
      %v1194 = vsel %vm528, %v1182, %v1186
      %v1195 = vsel %vm528, %v1176, %v1180
      %v1196 = vsel %vm528, %v1178, %v1182
      %v1197 = vsel %vm528, %v1188, %v1176
      %v1198 = vsel %vm528, %v1190, %v1178
      %v1199 = vmul.f32 %v1195, %v540
      %v1200 = vmul.f32 %v1193, %v544
      %v1201 = vmul.f32 %v1191, %v548
      %v1202 = vmul.f32 %v1197, %v552
      %v1203 = vmul.f32 %v1196, %v540
      %v1204 = vmul.f32 %v1194, %v544
      %v1205 = vmul.f32 %v1192, %v548
      %v1206 = vmul.f32 %v1198, %v552
      %1207 = vst [vmem:[#allocation2 + $0x140] sm:$0xff] %v1199
      %1208 = vst [vmem:[#allocation2 + $0x148] sm:$0xff] %v1200
      %1209 = vst [vmem:[#allocation2 + $0x150] sm:$0xff] %v1201
      %1210 = vst [vmem:[#allocation2 + $0x158] sm:$0xff] %v1202
      %1211 = vst [vmem:[#allocation2 + $0x160] sm:$0xff] %v1203
      %1212 = vst [vmem:[#allocation2 + $0x168] sm:$0xff] %v1204
      %1213 = vst [vmem:[#allocation2 + $0x170] sm:$0xff] %v1205
      %1214 = vst [vmem:[#allocation2 + $0x178] sm:$0xff] %v1206
      %1215 = vrot.lane.b32.xlu0 %v991, 113
      %v1216 = vpop.permute.xlu0 %1215
      %1217 = vrot.lane.b32.xlu0 %v995, 113
      %v1218 = vpop.permute.xlu0 %1217
      %1219 = vrot.lane.b32.xlu0 %v992, 113
      %v1220 = vpop.permute.xlu0 %1219
      %1221 = vrot.lane.b32.xlu0 %v996, 113
      %v1222 = vpop.permute.xlu0 %1221
      %1223 = vrot.lane.b32.xlu0 %v993, 113
      %v1224 = vpop.permute.xlu0 %1223
      %1225 = vrot.lane.b32.xlu0 %v997, 113
      %v1226 = vpop.permute.xlu0 %1225
      %1227 = vrot.lane.b32.xlu0 %v994, 113
      %v1228 = vpop.permute.xlu0 %1227
      %1229 = vrot.lane.b32.xlu0 %v998, 113
      %v1230 = vpop.permute.xlu0 %1229
      %v1231 = vsel %vm585, %v1224, %v1228
      %v1232 = vsel %vm585, %v1226, %v1230
      %v1233 = vsel %vm585, %v1220, %v1224
      %v1234 = vsel %vm585, %v1222, %v1226
      %v1235 = vsel %vm585, %v1216, %v1220
      %v1236 = vsel %vm585, %v1218, %v1222
      %v1237 = vsel %vm585, %v1228, %v1216
      %v1238 = vsel %vm585, %v1230, %v1218
      %v1239 = vmul.f32 %v1235, %v597
      %v1240 = vmul.f32 %v1233, %v601
      %v1241 = vmul.f32 %v1231, %v605
      %v1242 = vmul.f32 %v1237, %v609
      %v1243 = vmul.f32 %v1236, %v597
      %v1244 = vmul.f32 %v1234, %v601
      %v1245 = vmul.f32 %v1232, %v605
      %v1246 = vmul.f32 %v1238, %v609
      %1247 = vst [vmem:[#allocation2 + $0x180] sm:$0xff] %v1239
      %1248 = vst [vmem:[#allocation2 + $0x188] sm:$0xff] %v1240
      %1249 = vst [vmem:[#allocation2 + $0x190] sm:$0xff] %v1241
      %1250 = vst [vmem:[#allocation2 + $0x198] sm:$0xff] %v1242
      %1251 = vst [vmem:[#allocation2 + $0x1a0] sm:$0xff] %v1243
      %1252 = vst [vmem:[#allocation2 + $0x1a8] sm:$0xff] %v1244
      %1253 = vst [vmem:[#allocation2 + $0x1b0] sm:$0xff] %v1245
      %1254 = vst [vmem:[#allocation2 + $0x1b8] sm:$0xff] %v1246
      %1255 = vrot.lane.b32.xlu0 %v991, 112
      %v1256 = vpop.permute.xlu0 %1255
      %1257 = vrot.lane.b32.xlu0 %v995, 112
      %v1258 = vpop.permute.xlu0 %1257
      %1259 = vrot.lane.b32.xlu0 %v992, 112
      %v1260 = vpop.permute.xlu0 %1259
      %1261 = vrot.lane.b32.xlu0 %v996, 112
      %v1262 = vpop.permute.xlu0 %1261
      %1263 = vrot.lane.b32.xlu0 %v993, 112
      %v1264 = vpop.permute.xlu0 %1263
      %1265 = vrot.lane.b32.xlu0 %v997, 112
      %v1266 = vpop.permute.xlu0 %1265
      %1267 = vrot.lane.b32.xlu0 %v994, 112
      %v1268 = vpop.permute.xlu0 %1267
      %1269 = vrot.lane.b32.xlu0 %v998, 112
      %v1270 = vpop.permute.xlu0 %1269
      %v1271 = vsel %vm642, %v1264, %v1268
      %v1272 = vsel %vm642, %v1266, %v1270
      %v1273 = vsel %vm642, %v1260, %v1264
      %v1274 = vsel %vm642, %v1262, %v1266
      %v1275 = vsel %vm642, %v1256, %v1260
      %v1276 = vsel %vm642, %v1258, %v1262
      %v1277 = vsel %vm642, %v1268, %v1256
      %v1278 = vsel %vm642, %v1270, %v1258
      %v1279 = vmul.f32 %v1275, %v654
      %v1280 = vmul.f32 %v1273, %v658
      %v1281 = vmul.f32 %v1271, %v662
      %v1282 = vmul.f32 %v1277, %v666
      %v1283 = vmul.f32 %v1276, %v654
      %v1284 = vmul.f32 %v1274, %v658
      %v1285 = vmul.f32 %v1272, %v662
      %v1286 = vmul.f32 %v1278, %v666
      %1287 = vst [vmem:[#allocation2 + $0x1c0] sm:$0xff] %v1279
      %1288 = vst [vmem:[#allocation2 + $0x1c8] sm:$0xff] %v1280
      %1289 = vst [vmem:[#allocation2 + $0x1d0] sm:$0xff] %v1281
      %1290 = vst [vmem:[#allocation2 + $0x1d8] sm:$0xff] %v1282
      %1291 = vst [vmem:[#allocation2 + $0x1e0] sm:$0xff] %v1283
      %1292 = vst [vmem:[#allocation2 + $0x1e8] sm:$0xff] %v1284
      %1293 = vst [vmem:[#allocation2 + $0x1f0] sm:$0xff] %v1285
      %1294 = vst [vmem:[#allocation2 + $0x1f8] sm:$0xff] %v1286
      %1295 = vrot.lane.b32.xlu0 %v991, 111
      %v1296 = vpop.permute.xlu0 %1295
      %1297 = vrot.lane.b32.xlu0 %v995, 111
      %v1298 = vpop.permute.xlu0 %1297
      %1299 = vrot.lane.b32.xlu0 %v992, 111
      %v1300 = vpop.permute.xlu0 %1299
      %1301 = vrot.lane.b32.xlu0 %v996, 111
      %v1302 = vpop.permute.xlu0 %1301
      %1303 = vrot.lane.b32.xlu0 %v993, 111
      %v1304 = vpop.permute.xlu0 %1303
      %1305 = vrot.lane.b32.xlu0 %v997, 111
      %v1306 = vpop.permute.xlu0 %1305
      %1307 = vrot.lane.b32.xlu0 %v994, 111
      %v1308 = vpop.permute.xlu0 %1307
      %1309 = vrot.lane.b32.xlu0 %v998, 111
      %v1310 = vpop.permute.xlu0 %1309
      %v1311 = vsel %vm699, %v1304, %v1308
      %v1312 = vsel %vm699, %v1306, %v1310
      %v1313 = vsel %vm699, %v1300, %v1304
      %v1314 = vsel %vm699, %v1302, %v1306
      %v1315 = vsel %vm699, %v1296, %v1300
      %v1316 = vsel %vm699, %v1298, %v1302
      %v1317 = vsel %vm699, %v1308, %v1296
      %v1318 = vsel %vm699, %v1310, %v1298
      %v1319 = vmul.f32 %v1315, %v711
      %v1320 = vmul.f32 %v1313, %v715
      %v1321 = vmul.f32 %v1311, %v719
      %v1322 = vmul.f32 %v1317, %v723
      %v1323 = vmul.f32 %v1316, %v711
      %v1324 = vmul.f32 %v1314, %v715
      %v1325 = vmul.f32 %v1312, %v719
      %v1326 = vmul.f32 %v1318, %v723
      %1327 = vst [vmem:[#allocation2 + $0x200] sm:$0xff] %v1319
      %1328 = vst [vmem:[#allocation2 + $0x208] sm:$0xff] %v1320
      %1329 = vst [vmem:[#allocation2 + $0x210] sm:$0xff] %v1321
      %1330 = vst [vmem:[#allocation2 + $0x218] sm:$0xff] %v1322
      %1331 = vst [vmem:[#allocation2 + $0x220] sm:$0xff] %v1323
      %1332 = vst [vmem:[#allocation2 + $0x228] sm:$0xff] %v1324
      %1333 = vst [vmem:[#allocation2 + $0x230] sm:$0xff] %v1325
      %1334 = vst [vmem:[#allocation2 + $0x238] sm:$0xff] %v1326
      %v1335 = vld [vmem:[#allocation2] sm:$0xff]
      %v1336 = vld [vmem:[#allocation2 + $0x8] sm:$0xff]
      %v1337 = vld [vmem:[#allocation2 + $0x10] sm:$0xff]
      %v1338 = vld [vmem:[#allocation2 + $0x18] sm:$0xff]
      %v1339 = vld [vmem:[#allocation2 + $0x20] sm:$0xff]
      %v1340 = vld [vmem:[#allocation2 + $0x28] sm:$0xff]
      %v1341 = vld [vmem:[#allocation2 + $0x30] sm:$0xff]
      %v1342 = vld [vmem:[#allocation2 + $0x38] sm:$0xff]
      %v1343 = vld [vmem:[#allocation2 + $0x40] sm:$0xff]
      %v1344 = vld [vmem:[#allocation2 + $0x48] sm:$0xff]
      %v1345 = vld [vmem:[#allocation2 + $0x50] sm:$0xff]
      %v1346 = vld [vmem:[#allocation2 + $0x58] sm:$0xff]
      %v1347 = vld [vmem:[#allocation2 + $0x60] sm:$0xff]
      %v1348 = vld [vmem:[#allocation2 + $0x68] sm:$0xff]
      %v1349 = vld [vmem:[#allocation2 + $0x70] sm:$0xff]
      %v1350 = vld [vmem:[#allocation2 + $0x78] sm:$0xff]
      %v1351 = vld [vmem:[#allocation2 + $0x80] sm:$0xff]
      %v1352 = vld [vmem:[#allocation2 + $0x88] sm:$0xff]
      %v1353 = vld [vmem:[#allocation2 + $0x90] sm:$0xff]
      %v1354 = vld [vmem:[#allocation2 + $0x98] sm:$0xff]
      %v1355 = vld [vmem:[#allocation2 + $0xa0] sm:$0xff]
      %v1356 = vld [vmem:[#allocation2 + $0xa8] sm:$0xff]
      %v1357 = vld [vmem:[#allocation2 + $0xb0] sm:$0xff]
      %v1358 = vld [vmem:[#allocation2 + $0xb8] sm:$0xff]
      %v1359 = vld [vmem:[#allocation2 + $0xc0] sm:$0xff]
      %v1360 = vld [vmem:[#allocation2 + $0xc8] sm:$0xff]
      %v1361 = vld [vmem:[#allocation2 + $0xd0] sm:$0xff]
      %v1362 = vld [vmem:[#allocation2 + $0xd8] sm:$0xff]
      %v1363 = vld [vmem:[#allocation2 + $0xe0] sm:$0xff]
      %v1364 = vld [vmem:[#allocation2 + $0xe8] sm:$0xff]
      %v1365 = vld [vmem:[#allocation2 + $0xf0] sm:$0xff]
      %v1366 = vld [vmem:[#allocation2 + $0xf8] sm:$0xff]
      %v1367 = vld [vmem:[#allocation2 + $0x100] sm:$0xff]
      %v1368 = vld [vmem:[#allocation2 + $0x108] sm:$0xff]
      %v1369 = vld [vmem:[#allocation2 + $0x110] sm:$0xff]
      %v1370 = vld [vmem:[#allocation2 + $0x118] sm:$0xff]
      %v1371 = vld [vmem:[#allocation2 + $0x120] sm:$0xff]
      %v1372 = vld [vmem:[#allocation2 + $0x128] sm:$0xff]
      %v1373 = vld [vmem:[#allocation2 + $0x130] sm:$0xff]
      %v1374 = vld [vmem:[#allocation2 + $0x138] sm:$0xff]
      %v1375 = vld [vmem:[#allocation2 + $0x140] sm:$0xff]
      %v1376 = vld [vmem:[#allocation2 + $0x148] sm:$0xff]
      %v1377 = vld [vmem:[#allocation2 + $0x150] sm:$0xff]
      %v1378 = vld [vmem:[#allocation2 + $0x158] sm:$0xff]
      %v1379 = vld [vmem:[#allocation2 + $0x160] sm:$0xff]
      %v1380 = vld [vmem:[#allocation2 + $0x168] sm:$0xff]
      %v1381 = vld [vmem:[#allocation2 + $0x170] sm:$0xff]
      %v1382 = vld [vmem:[#allocation2 + $0x178] sm:$0xff]
      %v1383 = vld [vmem:[#allocation2 + $0x180] sm:$0xff]
      %v1384 = vld [vmem:[#allocation2 + $0x188] sm:$0xff]
      %v1385 = vld [vmem:[#allocation2 + $0x190] sm:$0xff]
      %v1386 = vld [vmem:[#allocation2 + $0x198] sm:$0xff]
      %v1387 = vld [vmem:[#allocation2 + $0x1a0] sm:$0xff]
      %v1388 = vld [vmem:[#allocation2 + $0x1a8] sm:$0xff]
      %v1389 = vld [vmem:[#allocation2 + $0x1b0] sm:$0xff]
      %v1390 = vld [vmem:[#allocation2 + $0x1b8] sm:$0xff]
      %v1391 = vld [vmem:[#allocation2 + $0x1c0] sm:$0xff]
      %v1392 = vld [vmem:[#allocation2 + $0x1c8] sm:$0xff]
      %v1393 = vld [vmem:[#allocation2 + $0x1d0] sm:$0xff]
      %v1394 = vld [vmem:[#allocation2 + $0x1d8] sm:$0xff]
      %v1395 = vld [vmem:[#allocation2 + $0x1e0] sm:$0xff]
      %v1396 = vld [vmem:[#allocation2 + $0x1e8] sm:$0xff]
      %v1397 = vld [vmem:[#allocation2 + $0x1f0] sm:$0xff]
      %v1398 = vld [vmem:[#allocation2 + $0x1f8] sm:$0xff]
      %v1399 = vld [vmem:[#allocation2 + $0x200] sm:$0xff]
      %v1400 = vld [vmem:[#allocation2 + $0x208] sm:$0xff]
      %v1401 = vld [vmem:[#allocation2 + $0x210] sm:$0xff]
      %v1402 = vld [vmem:[#allocation2 + $0x218] sm:$0xff]
      %v1403 = vld [vmem:[#allocation2 + $0x220] sm:$0xff]
      %v1404 = vld [vmem:[#allocation2 + $0x228] sm:$0xff]
      %v1405 = vld [vmem:[#allocation2 + $0x230] sm:$0xff]
      %v1406 = vld [vmem:[#allocation2 + $0x238] sm:$0xff]
      %1408 = vset.pattern.permute.xlu0 0
      %1409 = vperm.xlu0 %1408, %v1005
      %v1410 = vpop.permute.xlu0 %1409
      %1413 = vset.pattern.permute.xlu0 0
      %1414 = vperm.xlu0 %1413, %v1006
      %v1415 = vpop.permute.xlu0 %1414
      %v1418 = vsel %vm822, %v1001, 0
      %v1421 = vsel %vm822, %v1003, 0
      %1423 = vmatprep.subr.mxu0 %v1336
      %1424 = vmatpush1.msra.mxu0 %v1335
      %1425 = vmatprep.subr.mxu0 %v1340
      %1426 = vmatpush1.msra.mxu0 %v1339
      %1427 = vmatprep.subr.mxu0 %v1344
      %1428 = vmatpush1.msra.mxu0 %v1343
      %1429 = vmatprep.subr.mxu0 %v1348
      %1430 = vmatpush1.msra.mxu0 %v1347
      %1431 = vmatprep.subr.mxu0 %v1352
      %1432 = vmatpush1.msra.mxu0 %v1351
      %1433 = vmatprep.subr.mxu0 %v1356
      %1434 = vmatpush1.msra.mxu0 %v1355
      %1435 = vmatprep.subr.mxu0 %v1360
      %1436 = vmatpush1.msra.mxu0 %v1359
      %1437 = vmatprep.subr.mxu0 %v1364
      %1438 = vmatpush1.msra.mxu0 %v1363
      %1439 = vmatprep.subr.mxu0 %v1368
      %1440 = vmatpush1.msra.mxu0 %v1367
      %1441 = vmatprep.subr.mxu0 %v1372
      %1442 = vmatpush1.msra.mxu0 %v1371
      %1443 = vmatprep.subr.mxu0 %v1376
      %1444 = vmatpush1.msra.mxu0 %v1375
      %1445 = vmatprep.subr.mxu0 %v1380
      %1446 = vmatpush1.msra.mxu0 %v1379
      %1447 = vmatprep.subr.mxu0 %v1384
      %1448 = vmatpush1.msra.mxu0 %v1383
      %1449 = vmatprep.subr.mxu0 %v1388
      %1450 = vmatpush1.msra.mxu0 %v1387
      %1451 = vmatprep.subr.mxu0 %v1392
      %1452 = vmatpush1.msra.mxu0 %v1391
      %1453 = vmatprep.subr.mxu0 %v1396
      %1454 = vmatpush1.msra.mxu0 %v1395
      %1455 = vmatprep.subr.mxu0 %v1400
      %1456 = vmatpush1.msra.mxu0 %v1399
      %1457 = vmatprep.subr.mxu0 %v1404
      %1458 = vmatpush1.msra.mxu0 %v1403
      %1459 = vmatprep.subr.mxu0 0.0
      %1460 = vmatpush1.msra.mxu0 0.0
      %1461 = vmatprep.subr.mxu0 0.0
      %1462 = vmatpush1.msra.mxu0 0.0
      %1463 = vmatprep.subr.mxu0 0.0
      %1464 = vmatpush1.msra.mxu0 0.0
      %1465 = vmatprep.subr.mxu0 0.0
      %1466 = vmatpush1.msra.mxu0 0.0
      %1467 = vmatprep.subr.mxu0 0.0
      %1468 = vmatpush1.msra.mxu0 0.0
      %1469 = vmatprep.subr.mxu0 0.0
      %1470 = vmatpush1.msra.mxu0 0.0
      %1471 = vmatprep.subr.mxu0 0.0
      %1472 = vmatpush1.msra.mxu0 0.0
      %1473 = vmatprep.subr.mxu0 0.0
      %1474 = vmatpush1.msra.mxu0 0.0
      %1475 = vmatprep.subr.mxu0 0.0
      %1476 = vmatpush1.msra.mxu0 0.0
      %1477 = vmatprep.subr.mxu0 0.0
      %1478 = vmatpush1.msra.mxu0 0.0
      %1479 = vmatprep.subr.mxu0 0.0
      %1480 = vmatpush1.msra.mxu0 0.0
      %1481 = vmatprep.subr.mxu0 0.0
      %1482 = vmatpush1.msra.mxu0 0.0
      %1483 = vmatprep.subr.mxu0 0.0
      %1484 = vmatpush1.msra.mxu0 0.0
      %1485 = vmatprep.subr.mxu0 0.0
      %1486 = vmatpush1.msra.mxu0 0.0
      %1487 = vmatprep.mubr.f32.mxu0 %v1418
      %1488 = vmatmul.mubr.f32.gmra.mrb[0].mxu0 %v1000
      %v1489 = vpop.f32.mrb[0].mxu0
      %v1490 = vadd.f32 %v1410, %v1489
      %v1491 = vpop.f32.mrb[0].mxu0
      %v1492 = vadd.f32 %v1410, %v1491
      %1493 = vmatprep.mubr.f32.mxu0 %v1421
      %1494 = vmatmul.mubr.f32.gmra.mrb[0].mxu0 %v1002
      %v1495 = vpop.f32.mrb[0].mxu0
      %v1496 = vadd.f32 %v1415, %v1495
      %v1497 = vpop.f32.mrb[0].mxu0
      %v1498 = vadd.f32 %v1415, %v1497
      %1499 = vdwg.mxu0
      %1500 = vmatprep.subr.mxu0 %v1338
      %1501 = vmatpush1.msra.mxu0 %v1337
      %1502 = vmatprep.subr.mxu0 %v1342
      %1503 = vmatpush1.msra.mxu0 %v1341
      %1504 = vmatprep.subr.mxu0 %v1346
      %1505 = vmatpush1.msra.mxu0 %v1345
      %1506 = vmatprep.subr.mxu0 %v1350
      %1507 = vmatpush1.msra.mxu0 %v1349
      %1508 = vmatprep.subr.mxu0 %v1354
      %1509 = vmatpush1.msra.mxu0 %v1353
      %1510 = vmatprep.subr.mxu0 %v1358
      %1511 = vmatpush1.msra.mxu0 %v1357
      %1512 = vmatprep.subr.mxu0 %v1362
      %1513 = vmatpush1.msra.mxu0 %v1361
      %1514 = vmatprep.subr.mxu0 %v1366
      %1515 = vmatpush1.msra.mxu0 %v1365
      %1516 = vmatprep.subr.mxu0 %v1370
      %1517 = vmatpush1.msra.mxu0 %v1369
      %1518 = vmatprep.subr.mxu0 %v1374
      %1519 = vmatpush1.msra.mxu0 %v1373
      %1520 = vmatprep.subr.mxu0 %v1378
      %1521 = vmatpush1.msra.mxu0 %v1377
      %1522 = vmatprep.subr.mxu0 %v1382
      %1523 = vmatpush1.msra.mxu0 %v1381
      %1524 = vmatprep.subr.mxu0 %v1386
      %1525 = vmatpush1.msra.mxu0 %v1385
      %1526 = vmatprep.subr.mxu0 %v1390
      %1527 = vmatpush1.msra.mxu0 %v1389
      %1528 = vmatprep.subr.mxu0 %v1394
      %1529 = vmatpush1.msra.mxu0 %v1393
      %1530 = vmatprep.subr.mxu0 %v1398
      %1531 = vmatpush1.msra.mxu0 %v1397
      %1532 = vmatprep.subr.mxu0 %v1402
      %1533 = vmatpush1.msra.mxu0 %v1401
      %1534 = vmatprep.subr.mxu0 %v1406
      %1535 = vmatpush1.msra.mxu0 %v1405
      %1536 = vmatprep.subr.mxu0 0.0
      %1537 = vmatpush1.msra.mxu0 0.0
      %1538 = vmatprep.subr.mxu0 0.0
      %1539 = vmatpush1.msra.mxu0 0.0
      %1540 = vmatprep.subr.mxu0 0.0
      %1541 = vmatpush1.msra.mxu0 0.0
      %1542 = vmatprep.subr.mxu0 0.0
      %1543 = vmatpush1.msra.mxu0 0.0
      %1544 = vmatprep.subr.mxu0 0.0
      %1545 = vmatpush1.msra.mxu0 0.0
      %1546 = vmatprep.subr.mxu0 0.0
      %1547 = vmatpush1.msra.mxu0 0.0
      %1548 = vmatprep.subr.mxu0 0.0
      %1549 = vmatpush1.msra.mxu0 0.0
      %1550 = vmatprep.subr.mxu0 0.0
      %1551 = vmatpush1.msra.mxu0 0.0
      %1552 = vmatprep.subr.mxu0 0.0
      %1553 = vmatpush1.msra.mxu0 0.0
      %1554 = vmatprep.subr.mxu0 0.0
      %1555 = vmatpush1.msra.mxu0 0.0
      %1556 = vmatprep.subr.mxu0 0.0
      %1557 = vmatpush1.msra.mxu0 0.0
      %1558 = vmatprep.subr.mxu0 0.0
      %1559 = vmatpush1.msra.mxu0 0.0
      %1560 = vmatprep.subr.mxu0 0.0
      %1561 = vmatpush1.msra.mxu0 0.0
      %1562 = vmatprep.subr.mxu0 0.0
      %1563 = vmatpush1.msra.mxu0 0.0
      %1564 = vmatprep.mubr.f32.mxu0 %v1418
      %1565 = vmatmul.mubr.f32.gmra.mrb[0].mxu0 %v1000
      %v1566 = vpop.f32.mrb[0].mxu0
      %v1567 = vadd.f32 %v1410, %v1566
      %v1568 = vpop.f32.mrb[0].mxu0
      %v1569 = vadd.f32 %v1410, %v1568
      %1570 = vmatprep.mubr.f32.mxu0 %v1421
      %1571 = vmatmul.mubr.f32.gmra.mrb[0].mxu0 %v1002
      %v1572 = vpop.f32.mrb[0].mxu0
      %v1573 = vadd.f32 %v1415, %v1572
      %v1574 = vpop.f32.mrb[0].mxu0
      %v1575 = vadd.f32 %v1415, %v1574
      %1576 = vdwg.mxu0
      %v1577 = vadd.f32 %v1490, %v260
      %v1578 = vadd.f32 %v1492, %v261
      %v1579 = vadd.f32 %v1567, %v262
      %v1580 = vadd.f32 %v1569, %v263
      %v1581 = vadd.f32 %v1496, %v264
      %v1582 = vadd.f32 %v1498, %v265
      %v1583 = vadd.f32 %v1573, %v266
      %v1584 = vadd.f32 %v1575, %v267
      %s1585 = scalar_lea.vmem %s2, 64
      %v1586 = vld [vmem:[%s1585] sm:$0xff]
      %v1587 = vld [vmem:[%s1585 + $0x8] sm:$0xff]
      %v1588 = vld [vmem:[%s1585 + $0x10] sm:$0xff]
      %v1589 = vld [vmem:[%s1585 + $0x18] sm:$0xff]
      %s1590 = scalar_lea.vmem %s3, 32
      %v1591 = vld [vmem:[%s1590] sm:$0xff]
      %v1592 = vld [vmem:[%s1590 + $0x8] sm:$0xff]
      %1593 = vrot.lane.b32.xlu0 %v1577, 17
      %v1594 = vpop.permute.xlu0 %1593
      %1595 = vrot.lane.b32.xlu0 %v1581, 17
      %v1596 = vpop.permute.xlu0 %1595
      %1597 = vrot.lane.b32.xlu0 %v1578, 17
      %v1598 = vpop.permute.xlu0 %1597
      %1599 = vrot.lane.b32.xlu0 %v1582, 17
      %v1600 = vpop.permute.xlu0 %1599
      %1601 = vrot.lane.b32.xlu0 %v1579, 17
      %v1602 = vpop.permute.xlu0 %1601
      %1603 = vrot.lane.b32.xlu0 %v1583, 17
      %v1604 = vpop.permute.xlu0 %1603
      %1605 = vrot.lane.b32.xlu0 %v1580, 17
      %v1606 = vpop.permute.xlu0 %1605
      %1607 = vrot.lane.b32.xlu0 %v1584, 17
      %v1608 = vpop.permute.xlu0 %1607
      %v1609 = vsel %vm292, %v1602, %v1606
      %v1610 = vsel %vm292, %v1604, %v1608
      %v1611 = vsel %vm292, %v1598, %v1602
      %v1612 = vsel %vm292, %v1600, %v1604
      %v1613 = vsel %vm292, %v1594, %v1598
      %v1614 = vsel %vm292, %v1596, %v1600
      %v1615 = vsel %vm292, %v1606, %v1594
      %v1616 = vsel %vm292, %v1608, %v1596
      %v1617 = vmul.f32 %v1615, %v304
      %v1618 = vmul.f32 %v1613, %v308
      %v1619 = vmul.f32 %v1611, %v312
      %v1620 = vmul.f32 %v1609, %v316
      %v1621 = vmul.f32 %v1616, %v304
      %v1622 = vmul.f32 %v1614, %v308
      %v1623 = vmul.f32 %v1612, %v312
      %v1624 = vmul.f32 %v1610, %v316
      %1625 = vst [vmem:[#allocation2] sm:$0xff] %v1617
      %1626 = vst [vmem:[#allocation2 + $0x8] sm:$0xff] %v1618
      %1627 = vst [vmem:[#allocation2 + $0x10] sm:$0xff] %v1619
      %1628 = vst [vmem:[#allocation2 + $0x18] sm:$0xff] %v1620
      %1629 = vst [vmem:[#allocation2 + $0x20] sm:$0xff] %v1621
      %1630 = vst [vmem:[#allocation2 + $0x28] sm:$0xff] %v1622
      %1631 = vst [vmem:[#allocation2 + $0x30] sm:$0xff] %v1623
      %1632 = vst [vmem:[#allocation2 + $0x38] sm:$0xff] %v1624
      %1633 = vrot.lane.b32.xlu0 %v1577, 16
      %v1634 = vpop.permute.xlu0 %1633
      %1635 = vrot.lane.b32.xlu0 %v1581, 16
      %v1636 = vpop.permute.xlu0 %1635
      %1637 = vrot.lane.b32.xlu0 %v1578, 16
      %v1638 = vpop.permute.xlu0 %1637
      %1639 = vrot.lane.b32.xlu0 %v1582, 16
      %v1640 = vpop.permute.xlu0 %1639
      %1641 = vrot.lane.b32.xlu0 %v1579, 16
      %v1642 = vpop.permute.xlu0 %1641
      %1643 = vrot.lane.b32.xlu0 %v1583, 16
      %v1644 = vpop.permute.xlu0 %1643
      %1645 = vrot.lane.b32.xlu0 %v1580, 16
      %v1646 = vpop.permute.xlu0 %1645
      %1647 = vrot.lane.b32.xlu0 %v1584, 16
      %v1648 = vpop.permute.xlu0 %1647
      %v1649 = vsel %vm349, %v1642, %v1646
      %v1650 = vsel %vm349, %v1644, %v1648
      %v1651 = vsel %vm349, %v1638, %v1642
      %v1652 = vsel %vm349, %v1640, %v1644
      %v1653 = vsel %vm349, %v1634, %v1638
      %v1654 = vsel %vm349, %v1636, %v1640
      %v1655 = vsel %vm349, %v1646, %v1634
      %v1656 = vsel %vm349, %v1648, %v1636
      %v1657 = vmul.f32 %v1655, %v361
      %v1658 = vmul.f32 %v1653, %v365
      %v1659 = vmul.f32 %v1651, %v369
      %v1660 = vmul.f32 %v1649, %v373
      %v1661 = vmul.f32 %v1656, %v361
      %v1662 = vmul.f32 %v1654, %v365
      %v1663 = vmul.f32 %v1652, %v369
      %v1664 = vmul.f32 %v1650, %v373
      %1665 = vst [vmem:[#allocation2 + $0x40] sm:$0xff] %v1657
      %1666 = vst [vmem:[#allocation2 + $0x48] sm:$0xff] %v1658
      %1667 = vst [vmem:[#allocation2 + $0x50] sm:$0xff] %v1659
      %1668 = vst [vmem:[#allocation2 + $0x58] sm:$0xff] %v1660
      %1669 = vst [vmem:[#allocation2 + $0x60] sm:$0xff] %v1661
      %1670 = vst [vmem:[#allocation2 + $0x68] sm:$0xff] %v1662
      %1671 = vst [vmem:[#allocation2 + $0x70] sm:$0xff] %v1663
      %1672 = vst [vmem:[#allocation2 + $0x78] sm:$0xff] %v1664
      %1673 = vrot.lane.b32.xlu0 %v1577, 15
      %v1674 = vpop.permute.xlu0 %1673
      %1675 = vrot.lane.b32.xlu0 %v1581, 15
      %v1676 = vpop.permute.xlu0 %1675
      %1677 = vrot.lane.b32.xlu0 %v1578, 15
      %v1678 = vpop.permute.xlu0 %1677
      %1679 = vrot.lane.b32.xlu0 %v1582, 15
      %v1680 = vpop.permute.xlu0 %1679
      %1681 = vrot.lane.b32.xlu0 %v1579, 15
      %v1682 = vpop.permute.xlu0 %1681
      %1683 = vrot.lane.b32.xlu0 %v1583, 15
      %v1684 = vpop.permute.xlu0 %1683
      %1685 = vrot.lane.b32.xlu0 %v1580, 15
      %v1686 = vpop.permute.xlu0 %1685
      %1687 = vrot.lane.b32.xlu0 %v1584, 15
      %v1688 = vpop.permute.xlu0 %1687
      %v1689 = vsel %vm406, %v1682, %v1686
      %v1690 = vsel %vm406, %v1684, %v1688
      %v1691 = vsel %vm406, %v1678, %v1682
      %v1692 = vsel %vm406, %v1680, %v1684
      %v1693 = vsel %vm406, %v1674, %v1678
      %v1694 = vsel %vm406, %v1676, %v1680
      %v1695 = vsel %vm406, %v1686, %v1674
      %v1696 = vsel %vm406, %v1688, %v1676
      %v1697 = vmul.f32 %v1695, %v418
      %v1698 = vmul.f32 %v1693, %v422
      %v1699 = vmul.f32 %v1691, %v426
      %v1700 = vmul.f32 %v1689, %v430
      %v1701 = vmul.f32 %v1696, %v418
      %v1702 = vmul.f32 %v1694, %v422
      %v1703 = vmul.f32 %v1692, %v426
      %v1704 = vmul.f32 %v1690, %v430
      %1705 = vst [vmem:[#allocation2 + $0x80] sm:$0xff] %v1697
      %1706 = vst [vmem:[#allocation2 + $0x88] sm:$0xff] %v1698
      %1707 = vst [vmem:[#allocation2 + $0x90] sm:$0xff] %v1699
      %1708 = vst [vmem:[#allocation2 + $0x98] sm:$0xff] %v1700
      %1709 = vst [vmem:[#allocation2 + $0xa0] sm:$0xff] %v1701
      %1710 = vst [vmem:[#allocation2 + $0xa8] sm:$0xff] %v1702
      %1711 = vst [vmem:[#allocation2 + $0xb0] sm:$0xff] %v1703
      %1712 = vst [vmem:[#allocation2 + $0xb8] sm:$0xff] %v1704
      %1713 = vrot.lane.b32.xlu0 %v1577, 1
      %v1714 = vpop.permute.xlu0 %1713
      %1715 = vrot.lane.b32.xlu0 %v1581, 1
      %v1716 = vpop.permute.xlu0 %1715
      %1717 = vrot.lane.b32.xlu0 %v1578, 1
      %v1718 = vpop.permute.xlu0 %1717
      %1719 = vrot.lane.b32.xlu0 %v1582, 1
      %v1720 = vpop.permute.xlu0 %1719
      %1721 = vrot.lane.b32.xlu0 %v1579, 1
      %v1722 = vpop.permute.xlu0 %1721
      %1723 = vrot.lane.b32.xlu0 %v1583, 1
      %v1724 = vpop.permute.xlu0 %1723
      %1725 = vrot.lane.b32.xlu0 %v1580, 1
      %v1726 = vpop.permute.xlu0 %1725
      %1727 = vrot.lane.b32.xlu0 %v1584, 1
      %v1728 = vpop.permute.xlu0 %1727
      %v1729 = vsel %vm463, %v1722, %v1726
      %v1730 = vsel %vm463, %v1724, %v1728
      %v1731 = vsel %vm463, %v1718, %v1722
      %v1732 = vsel %vm463, %v1720, %v1724
      %v1733 = vsel %vm463, %v1714, %v1718
      %v1734 = vsel %vm463, %v1716, %v1720
      %v1735 = vsel %vm463, %v1726, %v1714
      %v1736 = vsel %vm463, %v1728, %v1716
      %v1737 = vmul.f32 %v1735, %v475
      %v1738 = vmul.f32 %v1733, %v479
      %v1739 = vmul.f32 %v1731, %v483
      %v1740 = vmul.f32 %v1729, %v487
      %v1741 = vmul.f32 %v1736, %v475
      %v1742 = vmul.f32 %v1734, %v479
      %v1743 = vmul.f32 %v1732, %v483
      %v1744 = vmul.f32 %v1730, %v487
      %1745 = vst [vmem:[#allocation2 + $0xc0] sm:$0xff] %v1737
      %1746 = vst [vmem:[#allocation2 + $0xc8] sm:$0xff] %v1738
      %1747 = vst [vmem:[#allocation2 + $0xd0] sm:$0xff] %v1739
      %1748 = vst [vmem:[#allocation2 + $0xd8] sm:$0xff] %v1740
      %1749 = vst [vmem:[#allocation2 + $0xe0] sm:$0xff] %v1741
      %1750 = vst [vmem:[#allocation2 + $0xe8] sm:$0xff] %v1742
      %1751 = vst [vmem:[#allocation2 + $0xf0] sm:$0xff] %v1743
      %1752 = vst [vmem:[#allocation2 + $0xf8] sm:$0xff] %v1744
      %1753 = vst [vmem:[#allocation2 + $0x100] sm:$0xff] %v1577
      %1754 = vst [vmem:[#allocation2 + $0x108] sm:$0xff] %v1578
      %1755 = vst [vmem:[#allocation2 + $0x110] sm:$0xff] %v1579
      %1756 = vst [vmem:[#allocation2 + $0x118] sm:$0xff] %v1580
      %1757 = vst [vmem:[#allocation2 + $0x120] sm:$0xff] %v1581
      %1758 = vst [vmem:[#allocation2 + $0x128] sm:$0xff] %v1582
      %1759 = vst [vmem:[#allocation2 + $0x130] sm:$0xff] %v1583
      %1760 = vst [vmem:[#allocation2 + $0x138] sm:$0xff] %v1584
      %1761 = vrot.lane.b32.xlu0 %v1577, 127
      %v1762 = vpop.permute.xlu0 %1761
      %1763 = vrot.lane.b32.xlu0 %v1581, 127
      %v1764 = vpop.permute.xlu0 %1763
      %1765 = vrot.lane.b32.xlu0 %v1578, 127
      %v1766 = vpop.permute.xlu0 %1765
      %1767 = vrot.lane.b32.xlu0 %v1582, 127
      %v1768 = vpop.permute.xlu0 %1767
      %1769 = vrot.lane.b32.xlu0 %v1579, 127
      %v1770 = vpop.permute.xlu0 %1769
      %1771 = vrot.lane.b32.xlu0 %v1583, 127
      %v1772 = vpop.permute.xlu0 %1771
      %1773 = vrot.lane.b32.xlu0 %v1580, 127
      %v1774 = vpop.permute.xlu0 %1773
      %1775 = vrot.lane.b32.xlu0 %v1584, 127
      %v1776 = vpop.permute.xlu0 %1775
      %v1777 = vsel %vm528, %v1770, %v1774
      %v1778 = vsel %vm528, %v1772, %v1776
      %v1779 = vsel %vm528, %v1766, %v1770
      %v1780 = vsel %vm528, %v1768, %v1772
      %v1781 = vsel %vm528, %v1762, %v1766
      %v1782 = vsel %vm528, %v1764, %v1768
      %v1783 = vsel %vm528, %v1774, %v1762
      %v1784 = vsel %vm528, %v1776, %v1764
      %v1785 = vmul.f32 %v1781, %v540
      %v1786 = vmul.f32 %v1779, %v544
      %v1787 = vmul.f32 %v1777, %v548
      %v1788 = vmul.f32 %v1783, %v552
      %v1789 = vmul.f32 %v1782, %v540
      %v1790 = vmul.f32 %v1780, %v544
      %v1791 = vmul.f32 %v1778, %v548
      %v1792 = vmul.f32 %v1784, %v552
      %1793 = vst [vmem:[#allocation2 + $0x140] sm:$0xff] %v1785
      %1794 = vst [vmem:[#allocation2 + $0x148] sm:$0xff] %v1786
      %1795 = vst [vmem:[#allocation2 + $0x150] sm:$0xff] %v1787
      %1796 = vst [vmem:[#allocation2 + $0x158] sm:$0xff] %v1788
      %1797 = vst [vmem:[#allocation2 + $0x160] sm:$0xff] %v1789
      %1798 = vst [vmem:[#allocation2 + $0x168] sm:$0xff] %v1790
      %1799 = vst [vmem:[#allocation2 + $0x170] sm:$0xff] %v1791
      %1800 = vst [vmem:[#allocation2 + $0x178] sm:$0xff] %v1792
      %1801 = vrot.lane.b32.xlu0 %v1577, 113
      %v1802 = vpop.permute.xlu0 %1801
      %1803 = vrot.lane.b32.xlu0 %v1581, 113
      %v1804 = vpop.permute.xlu0 %1803
      %1805 = vrot.lane.b32.xlu0 %v1578, 113
      %v1806 = vpop.permute.xlu0 %1805
      %1807 = vrot.lane.b32.xlu0 %v1582, 113
      %v1808 = vpop.permute.xlu0 %1807
      %1809 = vrot.lane.b32.xlu0 %v1579, 113
      %v1810 = vpop.permute.xlu0 %1809
      %1811 = vrot.lane.b32.xlu0 %v1583, 113
      %v1812 = vpop.permute.xlu0 %1811
      %1813 = vrot.lane.b32.xlu0 %v1580, 113
      %v1814 = vpop.permute.xlu0 %1813
      %1815 = vrot.lane.b32.xlu0 %v1584, 113
      %v1816 = vpop.permute.xlu0 %1815
      %v1817 = vsel %vm585, %v1810, %v1814
      %v1818 = vsel %vm585, %v1812, %v1816
      %v1819 = vsel %vm585, %v1806, %v1810
      %v1820 = vsel %vm585, %v1808, %v1812
      %v1821 = vsel %vm585, %v1802, %v1806
      %v1822 = vsel %vm585, %v1804, %v1808
      %v1823 = vsel %vm585, %v1814, %v1802
      %v1824 = vsel %vm585, %v1816, %v1804
      %v1825 = vmul.f32 %v1821, %v597
      %v1826 = vmul.f32 %v1819, %v601
      %v1827 = vmul.f32 %v1817, %v605
      %v1828 = vmul.f32 %v1823, %v609
      %v1829 = vmul.f32 %v1822, %v597
      %v1830 = vmul.f32 %v1820, %v601
      %v1831 = vmul.f32 %v1818, %v605
      %v1832 = vmul.f32 %v1824, %v609
      %1833 = vst [vmem:[#allocation2 + $0x180] sm:$0xff] %v1825
      %1834 = vst [vmem:[#allocation2 + $0x188] sm:$0xff] %v1826
      %1835 = vst [vmem:[#allocation2 + $0x190] sm:$0xff] %v1827
      %1836 = vst [vmem:[#allocation2 + $0x198] sm:$0xff] %v1828
      %1837 = vst [vmem:[#allocation2 + $0x1a0] sm:$0xff] %v1829
      %1838 = vst [vmem:[#allocation2 + $0x1a8] sm:$0xff] %v1830
      %1839 = vst [vmem:[#allocation2 + $0x1b0] sm:$0xff] %v1831
      %1840 = vst [vmem:[#allocation2 + $0x1b8] sm:$0xff] %v1832
      %1841 = vrot.lane.b32.xlu0 %v1577, 112
      %v1842 = vpop.permute.xlu0 %1841
      %1843 = vrot.lane.b32.xlu0 %v1581, 112
      %v1844 = vpop.permute.xlu0 %1843
      %1845 = vrot.lane.b32.xlu0 %v1578, 112
      %v1846 = vpop.permute.xlu0 %1845
      %1847 = vrot.lane.b32.xlu0 %v1582, 112
      %v1848 = vpop.permute.xlu0 %1847
      %1849 = vrot.lane.b32.xlu0 %v1579, 112
      %v1850 = vpop.permute.xlu0 %1849
      %1851 = vrot.lane.b32.xlu0 %v1583, 112
      %v1852 = vpop.permute.xlu0 %1851
      %1853 = vrot.lane.b32.xlu0 %v1580, 112
      %v1854 = vpop.permute.xlu0 %1853
      %1855 = vrot.lane.b32.xlu0 %v1584, 112
      %v1856 = vpop.permute.xlu0 %1855
      %v1857 = vsel %vm642, %v1850, %v1854
      %v1858 = vsel %vm642, %v1852, %v1856
      %v1859 = vsel %vm642, %v1846, %v1850
      %v1860 = vsel %vm642, %v1848, %v1852
      %v1861 = vsel %vm642, %v1842, %v1846
      %v1862 = vsel %vm642, %v1844, %v1848
      %v1863 = vsel %vm642, %v1854, %v1842
      %v1864 = vsel %vm642, %v1856, %v1844
      %v1865 = vmul.f32 %v1861, %v654
      %v1866 = vmul.f32 %v1859, %v658
      %v1867 = vmul.f32 %v1857, %v662
      %v1868 = vmul.f32 %v1863, %v666
      %v1869 = vmul.f32 %v1862, %v654
      %v1870 = vmul.f32 %v1860, %v658
      %v1871 = vmul.f32 %v1858, %v662
      %v1872 = vmul.f32 %v1864, %v666
      %1873 = vst [vmem:[#allocation2 + $0x1c0] sm:$0xff] %v1865
      %1874 = vst [vmem:[#allocation2 + $0x1c8] sm:$0xff] %v1866
      %1875 = vst [vmem:[#allocation2 + $0x1d0] sm:$0xff] %v1867
      %1876 = vst [vmem:[#allocation2 + $0x1d8] sm:$0xff] %v1868
      %1877 = vst [vmem:[#allocation2 + $0x1e0] sm:$0xff] %v1869
      %1878 = vst [vmem:[#allocation2 + $0x1e8] sm:$0xff] %v1870
      %1879 = vst [vmem:[#allocation2 + $0x1f0] sm:$0xff] %v1871
      %1880 = vst [vmem:[#allocation2 + $0x1f8] sm:$0xff] %v1872
      %1881 = vrot.lane.b32.xlu0 %v1577, 111
      %v1882 = vpop.permute.xlu0 %1881
      %1883 = vrot.lane.b32.xlu0 %v1581, 111
      %v1884 = vpop.permute.xlu0 %1883
      %1885 = vrot.lane.b32.xlu0 %v1578, 111
      %v1886 = vpop.permute.xlu0 %1885
      %1887 = vrot.lane.b32.xlu0 %v1582, 111
      %v1888 = vpop.permute.xlu0 %1887
      %1889 = vrot.lane.b32.xlu0 %v1579, 111
      %v1890 = vpop.permute.xlu0 %1889
      %1891 = vrot.lane.b32.xlu0 %v1583, 111
      %v1892 = vpop.permute.xlu0 %1891
      %1893 = vrot.lane.b32.xlu0 %v1580, 111
      %v1894 = vpop.permute.xlu0 %1893
      %1895 = vrot.lane.b32.xlu0 %v1584, 111
      %v1896 = vpop.permute.xlu0 %1895
      %v1897 = vsel %vm699, %v1890, %v1894
      %v1898 = vsel %vm699, %v1892, %v1896
      %v1899 = vsel %vm699, %v1886, %v1890
      %v1900 = vsel %vm699, %v1888, %v1892
      %v1901 = vsel %vm699, %v1882, %v1886
      %v1902 = vsel %vm699, %v1884, %v1888
      %v1903 = vsel %vm699, %v1894, %v1882
      %v1904 = vsel %vm699, %v1896, %v1884
      %v1905 = vmul.f32 %v1901, %v711
      %v1906 = vmul.f32 %v1899, %v715
      %v1907 = vmul.f32 %v1897, %v719
      %v1908 = vmul.f32 %v1903, %v723
      %v1909 = vmul.f32 %v1902, %v711
      %v1910 = vmul.f32 %v1900, %v715
      %v1911 = vmul.f32 %v1898, %v719
      %v1912 = vmul.f32 %v1904, %v723
      %1913 = vst [vmem:[#allocation2 + $0x200] sm:$0xff] %v1905
      %1914 = vst [vmem:[#allocation2 + $0x208] sm:$0xff] %v1906
      %1915 = vst [vmem:[#allocation2 + $0x210] sm:$0xff] %v1907
      %1916 = vst [vmem:[#allocation2 + $0x218] sm:$0xff] %v1908
      %1917 = vst [vmem:[#allocation2 + $0x220] sm:$0xff] %v1909
      %1918 = vst [vmem:[#allocation2 + $0x228] sm:$0xff] %v1910
      %1919 = vst [vmem:[#allocation2 + $0x230] sm:$0xff] %v1911
      %1920 = vst [vmem:[#allocation2 + $0x238] sm:$0xff] %v1912
      %v1921 = vld [vmem:[#allocation2] sm:$0xff]
      %v1922 = vld [vmem:[#allocation2 + $0x8] sm:$0xff]
      %v1923 = vld [vmem:[#allocation2 + $0x10] sm:$0xff]
      %v1924 = vld [vmem:[#allocation2 + $0x18] sm:$0xff]
      %v1925 = vld [vmem:[#allocation2 + $0x20] sm:$0xff]
      %v1926 = vld [vmem:[#allocation2 + $0x28] sm:$0xff]
      %v1927 = vld [vmem:[#allocation2 + $0x30] sm:$0xff]
      %v1928 = vld [vmem:[#allocation2 + $0x38] sm:$0xff]
      %v1929 = vld [vmem:[#allocation2 + $0x40] sm:$0xff]
      %v1930 = vld [vmem:[#allocation2 + $0x48] sm:$0xff]
      %v1931 = vld [vmem:[#allocation2 + $0x50] sm:$0xff]
      %v1932 = vld [vmem:[#allocation2 + $0x58] sm:$0xff]
      %v1933 = vld [vmem:[#allocation2 + $0x60] sm:$0xff]
      %v1934 = vld [vmem:[#allocation2 + $0x68] sm:$0xff]
      %v1935 = vld [vmem:[#allocation2 + $0x70] sm:$0xff]
      %v1936 = vld [vmem:[#allocation2 + $0x78] sm:$0xff]
      %v1937 = vld [vmem:[#allocation2 + $0x80] sm:$0xff]
      %v1938 = vld [vmem:[#allocation2 + $0x88] sm:$0xff]
      %v1939 = vld [vmem:[#allocation2 + $0x90] sm:$0xff]
      %v1940 = vld [vmem:[#allocation2 + $0x98] sm:$0xff]
      %v1941 = vld [vmem:[#allocation2 + $0xa0] sm:$0xff]
      %v1942 = vld [vmem:[#allocation2 + $0xa8] sm:$0xff]
      %v1943 = vld [vmem:[#allocation2 + $0xb0] sm:$0xff]
      %v1944 = vld [vmem:[#allocation2 + $0xb8] sm:$0xff]
      %v1945 = vld [vmem:[#allocation2 + $0xc0] sm:$0xff]
      %v1946 = vld [vmem:[#allocation2 + $0xc8] sm:$0xff]
      %v1947 = vld [vmem:[#allocation2 + $0xd0] sm:$0xff]
      %v1948 = vld [vmem:[#allocation2 + $0xd8] sm:$0xff]
      %v1949 = vld [vmem:[#allocation2 + $0xe0] sm:$0xff]
      %v1950 = vld [vmem:[#allocation2 + $0xe8] sm:$0xff]
      %v1951 = vld [vmem:[#allocation2 + $0xf0] sm:$0xff]
      %v1952 = vld [vmem:[#allocation2 + $0xf8] sm:$0xff]
      %v1953 = vld [vmem:[#allocation2 + $0x100] sm:$0xff]
      %v1954 = vld [vmem:[#allocation2 + $0x108] sm:$0xff]
      %v1955 = vld [vmem:[#allocation2 + $0x110] sm:$0xff]
      %v1956 = vld [vmem:[#allocation2 + $0x118] sm:$0xff]
      %v1957 = vld [vmem:[#allocation2 + $0x120] sm:$0xff]
      %v1958 = vld [vmem:[#allocation2 + $0x128] sm:$0xff]
      %v1959 = vld [vmem:[#allocation2 + $0x130] sm:$0xff]
      %v1960 = vld [vmem:[#allocation2 + $0x138] sm:$0xff]
      %v1961 = vld [vmem:[#allocation2 + $0x140] sm:$0xff]
      %v1962 = vld [vmem:[#allocation2 + $0x148] sm:$0xff]
      %v1963 = vld [vmem:[#allocation2 + $0x150] sm:$0xff]
      %v1964 = vld [vmem:[#allocation2 + $0x158] sm:$0xff]
      %v1965 = vld [vmem:[#allocation2 + $0x160] sm:$0xff]
      %v1966 = vld [vmem:[#allocation2 + $0x168] sm:$0xff]
      %v1967 = vld [vmem:[#allocation2 + $0x170] sm:$0xff]
      %v1968 = vld [vmem:[#allocation2 + $0x178] sm:$0xff]
      %v1969 = vld [vmem:[#allocation2 + $0x180] sm:$0xff]
      %v1970 = vld [vmem:[#allocation2 + $0x188] sm:$0xff]
      %v1971 = vld [vmem:[#allocation2 + $0x190] sm:$0xff]
      %v1972 = vld [vmem:[#allocation2 + $0x198] sm:$0xff]
      %v1973 = vld [vmem:[#allocation2 + $0x1a0] sm:$0xff]
      %v1974 = vld [vmem:[#allocation2 + $0x1a8] sm:$0xff]
      %v1975 = vld [vmem:[#allocation2 + $0x1b0] sm:$0xff]
      %v1976 = vld [vmem:[#allocation2 + $0x1b8] sm:$0xff]
      %v1977 = vld [vmem:[#allocation2 + $0x1c0] sm:$0xff]
      %v1978 = vld [vmem:[#allocation2 + $0x1c8] sm:$0xff]
      %v1979 = vld [vmem:[#allocation2 + $0x1d0] sm:$0xff]
      %v1980 = vld [vmem:[#allocation2 + $0x1d8] sm:$0xff]
      %v1981 = vld [vmem:[#allocation2 + $0x1e0] sm:$0xff]
      %v1982 = vld [vmem:[#allocation2 + $0x1e8] sm:$0xff]
      %v1983 = vld [vmem:[#allocation2 + $0x1f0] sm:$0xff]
      %v1984 = vld [vmem:[#allocation2 + $0x1f8] sm:$0xff]
      %v1985 = vld [vmem:[#allocation2 + $0x200] sm:$0xff]
      %v1986 = vld [vmem:[#allocation2 + $0x208] sm:$0xff]
      %v1987 = vld [vmem:[#allocation2 + $0x210] sm:$0xff]
      %v1988 = vld [vmem:[#allocation2 + $0x218] sm:$0xff]
      %v1989 = vld [vmem:[#allocation2 + $0x220] sm:$0xff]
      %v1990 = vld [vmem:[#allocation2 + $0x228] sm:$0xff]
      %v1991 = vld [vmem:[#allocation2 + $0x230] sm:$0xff]
      %v1992 = vld [vmem:[#allocation2 + $0x238] sm:$0xff]
      %1994 = vset.pattern.permute.xlu0 0
      %1995 = vperm.xlu0 %1994, %v1591
      %v1996 = vpop.permute.xlu0 %1995
      %1999 = vset.pattern.permute.xlu0 0
      %2000 = vperm.xlu0 %1999, %v1592
      %v2001 = vpop.permute.xlu0 %2000
      %v2004 = vsel %vm822, %v1587, 0
      %v2007 = vsel %vm822, %v1589, 0
      %2009 = vmatprep.subr.mxu0 %v1922
      %2010 = vmatpush1.msra.mxu0 %v1921
      %2011 = vmatprep.subr.mxu0 %v1926
      %2012 = vmatpush1.msra.mxu0 %v1925
      %2013 = vmatprep.subr.mxu0 %v1930
      %2014 = vmatpush1.msra.mxu0 %v1929
      %2015 = vmatprep.subr.mxu0 %v1934
      %2016 = vmatpush1.msra.mxu0 %v1933
      %2017 = vmatprep.subr.mxu0 %v1938
      %2018 = vmatpush1.msra.mxu0 %v1937
      %2019 = vmatprep.subr.mxu0 %v1942
      %2020 = vmatpush1.msra.mxu0 %v1941
      %2021 = vmatprep.subr.mxu0 %v1946
      %2022 = vmatpush1.msra.mxu0 %v1945
      %2023 = vmatprep.subr.mxu0 %v1950
      %2024 = vmatpush1.msra.mxu0 %v1949
      %2025 = vmatprep.subr.mxu0 %v1954
      %2026 = vmatpush1.msra.mxu0 %v1953
      %2027 = vmatprep.subr.mxu0 %v1958
      %2028 = vmatpush1.msra.mxu0 %v1957
      %2029 = vmatprep.subr.mxu0 %v1962
      %2030 = vmatpush1.msra.mxu0 %v1961
      %2031 = vmatprep.subr.mxu0 %v1966
      %2032 = vmatpush1.msra.mxu0 %v1965
      %2033 = vmatprep.subr.mxu0 %v1970
      %2034 = vmatpush1.msra.mxu0 %v1969
      %2035 = vmatprep.subr.mxu0 %v1974
      %2036 = vmatpush1.msra.mxu0 %v1973
      %2037 = vmatprep.subr.mxu0 %v1978
      %2038 = vmatpush1.msra.mxu0 %v1977
      %2039 = vmatprep.subr.mxu0 %v1982
      %2040 = vmatpush1.msra.mxu0 %v1981
      %2041 = vmatprep.subr.mxu0 %v1986
      %2042 = vmatpush1.msra.mxu0 %v1985
      %2043 = vmatprep.subr.mxu0 %v1990
      %2044 = vmatpush1.msra.mxu0 %v1989
      %2045 = vmatprep.subr.mxu0 0.0
      %2046 = vmatpush1.msra.mxu0 0.0
      %2047 = vmatprep.subr.mxu0 0.0
      %2048 = vmatpush1.msra.mxu0 0.0
      %2049 = vmatprep.subr.mxu0 0.0
      %2050 = vmatpush1.msra.mxu0 0.0
      %2051 = vmatprep.subr.mxu0 0.0
      %2052 = vmatpush1.msra.mxu0 0.0
      %2053 = vmatprep.subr.mxu0 0.0
      %2054 = vmatpush1.msra.mxu0 0.0
      %2055 = vmatprep.subr.mxu0 0.0
      %2056 = vmatpush1.msra.mxu0 0.0
      %2057 = vmatprep.subr.mxu0 0.0
      %2058 = vmatpush1.msra.mxu0 0.0
      %2059 = vmatprep.subr.mxu0 0.0
      %2060 = vmatpush1.msra.mxu0 0.0
      %2061 = vmatprep.subr.mxu0 0.0
      %2062 = vmatpush1.msra.mxu0 0.0
      %2063 = vmatprep.subr.mxu0 0.0
      %2064 = vmatpush1.msra.mxu0 0.0
      %2065 = vmatprep.subr.mxu0 0.0
      %2066 = vmatpush1.msra.mxu0 0.0
      %2067 = vmatprep.subr.mxu0 0.0
      %2068 = vmatpush1.msra.mxu0 0.0
      %2069 = vmatprep.subr.mxu0 0.0
      %2070 = vmatpush1.msra.mxu0 0.0
      %2071 = vmatprep.subr.mxu0 0.0
      %2072 = vmatpush1.msra.mxu0 0.0
      %2073 = vmatprep.mubr.f32.mxu0 %v2004
      %2074 = vmatmul.mubr.f32.gmra.mrb[0].mxu0 %v1586
      %v2075 = vpop.f32.mrb[0].mxu0
      %v2076 = vadd.f32 %v1996, %v2075
      %v2077 = vpop.f32.mrb[0].mxu0
      %v2078 = vadd.f32 %v1996, %v2077
      %2079 = vmatprep.mubr.f32.mxu0 %v2007
      %2080 = vmatmul.mubr.f32.gmra.mrb[0].mxu0 %v1588
      %v2081 = vpop.f32.mrb[0].mxu0
      %v2082 = vadd.f32 %v2001, %v2081
      %v2083 = vpop.f32.mrb[0].mxu0
      %v2084 = vadd.f32 %v2001, %v2083
      %2085 = vdwg.mxu0
      %2086 = vmatprep.subr.mxu0 %v1924
      %2087 = vmatpush1.msra.mxu0 %v1923
      %2088 = vmatprep.subr.mxu0 %v1928
      %2089 = vmatpush1.msra.mxu0 %v1927
      %2090 = vmatprep.subr.mxu0 %v1932
      %2091 = vmatpush1.msra.mxu0 %v1931
      %2092 = vmatprep.subr.mxu0 %v1936
      %2093 = vmatpush1.msra.mxu0 %v1935
      %2094 = vmatprep.subr.mxu0 %v1940
      %2095 = vmatpush1.msra.mxu0 %v1939
      %2096 = vmatprep.subr.mxu0 %v1944
      %2097 = vmatpush1.msra.mxu0 %v1943
      %2098 = vmatprep.subr.mxu0 %v1948
      %2099 = vmatpush1.msra.mxu0 %v1947
      %2100 = vmatprep.subr.mxu0 %v1952
      %2101 = vmatpush1.msra.mxu0 %v1951
      %2102 = vmatprep.subr.mxu0 %v1956
      %2103 = vmatpush1.msra.mxu0 %v1955
      %2104 = vmatprep.subr.mxu0 %v1960
      %2105 = vmatpush1.msra.mxu0 %v1959
      %2106 = vmatprep.subr.mxu0 %v1964
      %2107 = vmatpush1.msra.mxu0 %v1963
      %2108 = vmatprep.subr.mxu0 %v1968
      %2109 = vmatpush1.msra.mxu0 %v1967
      %2110 = vmatprep.subr.mxu0 %v1972
      %2111 = vmatpush1.msra.mxu0 %v1971
      %2112 = vmatprep.subr.mxu0 %v1976
      %2113 = vmatpush1.msra.mxu0 %v1975
      %2114 = vmatprep.subr.mxu0 %v1980
      %2115 = vmatpush1.msra.mxu0 %v1979
      %2116 = vmatprep.subr.mxu0 %v1984
      %2117 = vmatpush1.msra.mxu0 %v1983
      %2118 = vmatprep.subr.mxu0 %v1988
      %2119 = vmatpush1.msra.mxu0 %v1987
      %2120 = vmatprep.subr.mxu0 %v1992
      %2121 = vmatpush1.msra.mxu0 %v1991
      %2122 = vmatprep.subr.mxu0 0.0
      %2123 = vmatpush1.msra.mxu0 0.0
      %2124 = vmatprep.subr.mxu0 0.0
      %2125 = vmatpush1.msra.mxu0 0.0
      %2126 = vmatprep.subr.mxu0 0.0
      %2127 = vmatpush1.msra.mxu0 0.0
      %2128 = vmatprep.subr.mxu0 0.0
      %2129 = vmatpush1.msra.mxu0 0.0
      %2130 = vmatprep.subr.mxu0 0.0
      %2131 = vmatpush1.msra.mxu0 0.0
      %2132 = vmatprep.subr.mxu0 0.0
      %2133 = vmatpush1.msra.mxu0 0.0
      %2134 = vmatprep.subr.mxu0 0.0
      %2135 = vmatpush1.msra.mxu0 0.0
      %2136 = vmatprep.subr.mxu0 0.0
      %2137 = vmatpush1.msra.mxu0 0.0
      %2138 = vmatprep.subr.mxu0 0.0
      %2139 = vmatpush1.msra.mxu0 0.0
      %2140 = vmatprep.subr.mxu0 0.0
      %2141 = vmatpush1.msra.mxu0 0.0
      %2142 = vmatprep.subr.mxu0 0.0
      %2143 = vmatpush1.msra.mxu0 0.0
      %2144 = vmatprep.subr.mxu0 0.0
      %2145 = vmatpush1.msra.mxu0 0.0
      %2146 = vmatprep.subr.mxu0 0.0
      %2147 = vmatpush1.msra.mxu0 0.0
      %2148 = vmatprep.subr.mxu0 0.0
      %2149 = vmatpush1.msra.mxu0 0.0
      %2150 = vmatprep.mubr.f32.mxu0 %v2004
      %2151 = vmatmul.mubr.f32.gmra.mrb[0].mxu0 %v1586
      %v2152 = vpop.f32.mrb[0].mxu0
      %v2153 = vadd.f32 %v1996, %v2152
      %v2154 = vpop.f32.mrb[0].mxu0
      %v2155 = vadd.f32 %v1996, %v2154
      %2156 = vmatprep.mubr.f32.mxu0 %v2007
      %2157 = vmatmul.mubr.f32.gmra.mrb[0].mxu0 %v1588
      %v2158 = vpop.f32.mrb[0].mxu0
      %v2159 = vadd.f32 %v2001, %v2158
      %v2160 = vpop.f32.mrb[0].mxu0
      %v2161 = vadd.f32 %v2001, %v2160
      %2162 = vdwg.mxu0
      %v2163 = vmul.f32 %v2076, 0.2
      %v2164 = vmul.f32 %v2078, 0.2
      %v2165 = vmul.f32 %v2153, 0.2
      %v2166 = vmul.f32 %v2155, 0.2
      %v2167 = vmul.f32 %v2082, 0.2
      %v2168 = vmul.f32 %v2084, 0.2
      %v2169 = vmul.f32 %v2159, 0.2
      %v2170 = vmul.f32 %v2161, 0.2
      %v2171 = vmax.f32 %v2076, %v2163
      %v2172 = vmax.f32 %v2078, %v2164
      %v2173 = vmax.f32 %v2153, %v2165
      %v2174 = vmax.f32 %v2155, %v2166
      %v2175 = vmax.f32 %v2082, %v2167
      %v2176 = vmax.f32 %v2084, %v2168
      %v2177 = vmax.f32 %v2159, %v2169
      %v2178 = vmax.f32 %v2161, %v2170
      %s2179 = scalar_lea.vmem %s2, 96
      %v2180 = vld [vmem:[%s2179] sm:$0xff]
      %v2181 = vld [vmem:[%s2179 + $0x8] sm:$0xff]
      %v2182 = vld [vmem:[%s2179 + $0x10] sm:$0xff]
      %v2183 = vld [vmem:[%s2179 + $0x18] sm:$0xff]
      %s2184 = scalar_lea.vmem %s3, 48
      %v2185 = vld [vmem:[%s2184] sm:$0xff]
      %v2186 = vld [vmem:[%s2184 + $0x8] sm:$0xff]
      %2187 = vrot.lane.b32.xlu0 %v2171, 17
      %v2188 = vpop.permute.xlu0 %2187
      %2189 = vrot.lane.b32.xlu0 %v2175, 17
      %v2190 = vpop.permute.xlu0 %2189
      %2191 = vrot.lane.b32.xlu0 %v2172, 17
      %v2192 = vpop.permute.xlu0 %2191
      %2193 = vrot.lane.b32.xlu0 %v2176, 17
      %v2194 = vpop.permute.xlu0 %2193
      %2195 = vrot.lane.b32.xlu0 %v2173, 17
      %v2196 = vpop.permute.xlu0 %2195
      %2197 = vrot.lane.b32.xlu0 %v2177, 17
      %v2198 = vpop.permute.xlu0 %2197
      %2199 = vrot.lane.b32.xlu0 %v2174, 17
      %v2200 = vpop.permute.xlu0 %2199
      %2201 = vrot.lane.b32.xlu0 %v2178, 17
      %v2202 = vpop.permute.xlu0 %2201
      %v2203 = vsel %vm292, %v2196, %v2200
      %v2204 = vsel %vm292, %v2198, %v2202
      %v2205 = vsel %vm292, %v2192, %v2196
      %v2206 = vsel %vm292, %v2194, %v2198
      %v2207 = vsel %vm292, %v2188, %v2192
      %v2208 = vsel %vm292, %v2190, %v2194
      %v2209 = vsel %vm292, %v2200, %v2188
      %v2210 = vsel %vm292, %v2202, %v2190
      %v2211 = vmul.f32 %v2209, %v304
      %v2212 = vmul.f32 %v2207, %v308
      %v2213 = vmul.f32 %v2205, %v312
      %v2214 = vmul.f32 %v2203, %v316
      %v2215 = vmul.f32 %v2210, %v304
      %v2216 = vmul.f32 %v2208, %v308
      %v2217 = vmul.f32 %v2206, %v312
      %v2218 = vmul.f32 %v2204, %v316
      %2219 = vst [vmem:[#allocation2] sm:$0xff] %v2211
      %2220 = vst [vmem:[#allocation2 + $0x8] sm:$0xff] %v2212
      %2221 = vst [vmem:[#allocation2 + $0x10] sm:$0xff] %v2213
      %2222 = vst [vmem:[#allocation2 + $0x18] sm:$0xff] %v2214
      %2223 = vst [vmem:[#allocation2 + $0x20] sm:$0xff] %v2215
      %2224 = vst [vmem:[#allocation2 + $0x28] sm:$0xff] %v2216
      %2225 = vst [vmem:[#allocation2 + $0x30] sm:$0xff] %v2217
      %2226 = vst [vmem:[#allocation2 + $0x38] sm:$0xff] %v2218
      %2227 = vrot.lane.b32.xlu0 %v2171, 16
      %v2228 = vpop.permute.xlu0 %2227
      %2229 = vrot.lane.b32.xlu0 %v2175, 16
      %v2230 = vpop.permute.xlu0 %2229
      %2231 = vrot.lane.b32.xlu0 %v2172, 16
      %v2232 = vpop.permute.xlu0 %2231
      %2233 = vrot.lane.b32.xlu0 %v2176, 16
      %v2234 = vpop.permute.xlu0 %2233
      %2235 = vrot.lane.b32.xlu0 %v2173, 16
      %v2236 = vpop.permute.xlu0 %2235
      %2237 = vrot.lane.b32.xlu0 %v2177, 16
      %v2238 = vpop.permute.xlu0 %2237
      %2239 = vrot.lane.b32.xlu0 %v2174, 16
      %v2240 = vpop.permute.xlu0 %2239
      %2241 = vrot.lane.b32.xlu0 %v2178, 16
      %v2242 = vpop.permute.xlu0 %2241
      %v2243 = vsel %vm349, %v2236, %v2240
      %v2244 = vsel %vm349, %v2238, %v2242
      %v2245 = vsel %vm349, %v2232, %v2236
      %v2246 = vsel %vm349, %v2234, %v2238
      %v2247 = vsel %vm349, %v2228, %v2232
      %v2248 = vsel %vm349, %v2230, %v2234
      %v2249 = vsel %vm349, %v2240, %v2228
      %v2250 = vsel %vm349, %v2242, %v2230
      %v2251 = vmul.f32 %v2249, %v361
      %v2252 = vmul.f32 %v2247, %v365
      %v2253 = vmul.f32 %v2245, %v369
      %v2254 = vmul.f32 %v2243, %v373
      %v2255 = vmul.f32 %v2250, %v361
      %v2256 = vmul.f32 %v2248, %v365
      %v2257 = vmul.f32 %v2246, %v369
      %v2258 = vmul.f32 %v2244, %v373
      %2259 = vst [vmem:[#allocation2 + $0x40] sm:$0xff] %v2251
      %2260 = vst [vmem:[#allocation2 + $0x48] sm:$0xff] %v2252
      %2261 = vst [vmem:[#allocation2 + $0x50] sm:$0xff] %v2253
      %2262 = vst [vmem:[#allocation2 + $0x58] sm:$0xff] %v2254
      %2263 = vst [vmem:[#allocation2 + $0x60] sm:$0xff] %v2255
      %2264 = vst [vmem:[#allocation2 + $0x68] sm:$0xff] %v2256
      %2265 = vst [vmem:[#allocation2 + $0x70] sm:$0xff] %v2257
      %2266 = vst [vmem:[#allocation2 + $0x78] sm:$0xff] %v2258
      %2267 = vrot.lane.b32.xlu0 %v2171, 15
      %v2268 = vpop.permute.xlu0 %2267
      %2269 = vrot.lane.b32.xlu0 %v2175, 15
      %v2270 = vpop.permute.xlu0 %2269
      %2271 = vrot.lane.b32.xlu0 %v2172, 15
      %v2272 = vpop.permute.xlu0 %2271
      %2273 = vrot.lane.b32.xlu0 %v2176, 15
      %v2274 = vpop.permute.xlu0 %2273
      %2275 = vrot.lane.b32.xlu0 %v2173, 15
      %v2276 = vpop.permute.xlu0 %2275
      %2277 = vrot.lane.b32.xlu0 %v2177, 15
      %v2278 = vpop.permute.xlu0 %2277
      %2279 = vrot.lane.b32.xlu0 %v2174, 15
      %v2280 = vpop.permute.xlu0 %2279
      %2281 = vrot.lane.b32.xlu0 %v2178, 15
      %v2282 = vpop.permute.xlu0 %2281
      %v2283 = vsel %vm406, %v2276, %v2280
      %v2284 = vsel %vm406, %v2278, %v2282
      %v2285 = vsel %vm406, %v2272, %v2276
      %v2286 = vsel %vm406, %v2274, %v2278
      %v2287 = vsel %vm406, %v2268, %v2272
      %v2288 = vsel %vm406, %v2270, %v2274
      %v2289 = vsel %vm406, %v2280, %v2268
      %v2290 = vsel %vm406, %v2282, %v2270
      %v2291 = vmul.f32 %v2289, %v418
      %v2292 = vmul.f32 %v2287, %v422
      %v2293 = vmul.f32 %v2285, %v426
      %v2294 = vmul.f32 %v2283, %v430
      %v2295 = vmul.f32 %v2290, %v418
      %v2296 = vmul.f32 %v2288, %v422
      %v2297 = vmul.f32 %v2286, %v426
      %v2298 = vmul.f32 %v2284, %v430
      %2299 = vst [vmem:[#allocation2 + $0x80] sm:$0xff] %v2291
      %2300 = vst [vmem:[#allocation2 + $0x88] sm:$0xff] %v2292
      %2301 = vst [vmem:[#allocation2 + $0x90] sm:$0xff] %v2293
      %2302 = vst [vmem:[#allocation2 + $0x98] sm:$0xff] %v2294
      %2303 = vst [vmem:[#allocation2 + $0xa0] sm:$0xff] %v2295
      %2304 = vst [vmem:[#allocation2 + $0xa8] sm:$0xff] %v2296
      %2305 = vst [vmem:[#allocation2 + $0xb0] sm:$0xff] %v2297
      %2306 = vst [vmem:[#allocation2 + $0xb8] sm:$0xff] %v2298
      %2307 = vrot.lane.b32.xlu0 %v2171, 1
      %v2308 = vpop.permute.xlu0 %2307
      %2309 = vrot.lane.b32.xlu0 %v2175, 1
      %v2310 = vpop.permute.xlu0 %2309
      %2311 = vrot.lane.b32.xlu0 %v2172, 1
      %v2312 = vpop.permute.xlu0 %2311
      %2313 = vrot.lane.b32.xlu0 %v2176, 1
      %v2314 = vpop.permute.xlu0 %2313
      %2315 = vrot.lane.b32.xlu0 %v2173, 1
      %v2316 = vpop.permute.xlu0 %2315
      %2317 = vrot.lane.b32.xlu0 %v2177, 1
      %v2318 = vpop.permute.xlu0 %2317
      %2319 = vrot.lane.b32.xlu0 %v2174, 1
      %v2320 = vpop.permute.xlu0 %2319
      %2321 = vrot.lane.b32.xlu0 %v2178, 1
      %v2322 = vpop.permute.xlu0 %2321
      %v2323 = vsel %vm463, %v2316, %v2320
      %v2324 = vsel %vm463, %v2318, %v2322
      %v2325 = vsel %vm463, %v2312, %v2316
      %v2326 = vsel %vm463, %v2314, %v2318
      %v2327 = vsel %vm463, %v2308, %v2312
      %v2328 = vsel %vm463, %v2310, %v2314
      %v2329 = vsel %vm463, %v2320, %v2308
      %v2330 = vsel %vm463, %v2322, %v2310
      %v2331 = vmul.f32 %v2329, %v475
      %v2332 = vmul.f32 %v2327, %v479
      %v2333 = vmul.f32 %v2325, %v483
      %v2334 = vmul.f32 %v2323, %v487
      %v2335 = vmul.f32 %v2330, %v475
      %v2336 = vmul.f32 %v2328, %v479
      %v2337 = vmul.f32 %v2326, %v483
      %v2338 = vmul.f32 %v2324, %v487
      %2339 = vst [vmem:[#allocation2 + $0xc0] sm:$0xff] %v2331
      %2340 = vst [vmem:[#allocation2 + $0xc8] sm:$0xff] %v2332
      %2341 = vst [vmem:[#allocation2 + $0xd0] sm:$0xff] %v2333
      %2342 = vst [vmem:[#allocation2 + $0xd8] sm:$0xff] %v2334
      %2343 = vst [vmem:[#allocation2 + $0xe0] sm:$0xff] %v2335
      %2344 = vst [vmem:[#allocation2 + $0xe8] sm:$0xff] %v2336
      %2345 = vst [vmem:[#allocation2 + $0xf0] sm:$0xff] %v2337
      %2346 = vst [vmem:[#allocation2 + $0xf8] sm:$0xff] %v2338
      %2347 = vst [vmem:[#allocation2 + $0x100] sm:$0xff] %v2171
      %2348 = vst [vmem:[#allocation2 + $0x108] sm:$0xff] %v2172
      %2349 = vst [vmem:[#allocation2 + $0x110] sm:$0xff] %v2173
      %2350 = vst [vmem:[#allocation2 + $0x118] sm:$0xff] %v2174
      %2351 = vst [vmem:[#allocation2 + $0x120] sm:$0xff] %v2175
      %2352 = vst [vmem:[#allocation2 + $0x128] sm:$0xff] %v2176
      %2353 = vst [vmem:[#allocation2 + $0x130] sm:$0xff] %v2177
      %2354 = vst [vmem:[#allocation2 + $0x138] sm:$0xff] %v2178
      %2355 = vrot.lane.b32.xlu0 %v2171, 127
      %v2356 = vpop.permute.xlu0 %2355
      %2357 = vrot.lane.b32.xlu0 %v2175, 127
      %v2358 = vpop.permute.xlu0 %2357
      %2359 = vrot.lane.b32.xlu0 %v2172, 127
      %v2360 = vpop.permute.xlu0 %2359
      %2361 = vrot.lane.b32.xlu0 %v2176, 127
      %v2362 = vpop.permute.xlu0 %2361
      %2363 = vrot.lane.b32.xlu0 %v2173, 127
      %v2364 = vpop.permute.xlu0 %2363
      %2365 = vrot.lane.b32.xlu0 %v2177, 127
      %v2366 = vpop.permute.xlu0 %2365
      %2367 = vrot.lane.b32.xlu0 %v2174, 127
      %v2368 = vpop.permute.xlu0 %2367
      %2369 = vrot.lane.b32.xlu0 %v2178, 127
      %v2370 = vpop.permute.xlu0 %2369
      %v2371 = vsel %vm528, %v2364, %v2368
      %v2372 = vsel %vm528, %v2366, %v2370
      %v2373 = vsel %vm528, %v2360, %v2364
      %v2374 = vsel %vm528, %v2362, %v2366
      %v2375 = vsel %vm528, %v2356, %v2360
      %v2376 = vsel %vm528, %v2358, %v2362
      %v2377 = vsel %vm528, %v2368, %v2356
      %v2378 = vsel %vm528, %v2370, %v2358
      %v2379 = vmul.f32 %v2375, %v540
      %v2380 = vmul.f32 %v2373, %v544
      %v2381 = vmul.f32 %v2371, %v548
      %v2382 = vmul.f32 %v2377, %v552
      %v2383 = vmul.f32 %v2376, %v540
      %v2384 = vmul.f32 %v2374, %v544
      %v2385 = vmul.f32 %v2372, %v548
      %v2386 = vmul.f32 %v2378, %v552
      %2387 = vst [vmem:[#allocation2 + $0x140] sm:$0xff] %v2379
      %2388 = vst [vmem:[#allocation2 + $0x148] sm:$0xff] %v2380
      %2389 = vst [vmem:[#allocation2 + $0x150] sm:$0xff] %v2381
      %2390 = vst [vmem:[#allocation2 + $0x158] sm:$0xff] %v2382
      %2391 = vst [vmem:[#allocation2 + $0x160] sm:$0xff] %v2383
      %2392 = vst [vmem:[#allocation2 + $0x168] sm:$0xff] %v2384
      %2393 = vst [vmem:[#allocation2 + $0x170] sm:$0xff] %v2385
      %2394 = vst [vmem:[#allocation2 + $0x178] sm:$0xff] %v2386
      %2395 = vrot.lane.b32.xlu0 %v2171, 113
      %v2396 = vpop.permute.xlu0 %2395
      %2397 = vrot.lane.b32.xlu0 %v2175, 113
      %v2398 = vpop.permute.xlu0 %2397
      %2399 = vrot.lane.b32.xlu0 %v2172, 113
      %v2400 = vpop.permute.xlu0 %2399
      %2401 = vrot.lane.b32.xlu0 %v2176, 113
      %v2402 = vpop.permute.xlu0 %2401
      %2403 = vrot.lane.b32.xlu0 %v2173, 113
      %v2404 = vpop.permute.xlu0 %2403
      %2405 = vrot.lane.b32.xlu0 %v2177, 113
      %v2406 = vpop.permute.xlu0 %2405
      %2407 = vrot.lane.b32.xlu0 %v2174, 113
      %v2408 = vpop.permute.xlu0 %2407
      %2409 = vrot.lane.b32.xlu0 %v2178, 113
      %v2410 = vpop.permute.xlu0 %2409
      %v2411 = vsel %vm585, %v2404, %v2408
      %v2412 = vsel %vm585, %v2406, %v2410
      %v2413 = vsel %vm585, %v2400, %v2404
      %v2414 = vsel %vm585, %v2402, %v2406
      %v2415 = vsel %vm585, %v2396, %v2400
      %v2416 = vsel %vm585, %v2398, %v2402
      %v2417 = vsel %vm585, %v2408, %v2396
      %v2418 = vsel %vm585, %v2410, %v2398
      %v2419 = vmul.f32 %v2415, %v597
      %v2420 = vmul.f32 %v2413, %v601
      %v2421 = vmul.f32 %v2411, %v605
      %v2422 = vmul.f32 %v2417, %v609
      %v2423 = vmul.f32 %v2416, %v597
      %v2424 = vmul.f32 %v2414, %v601
      %v2425 = vmul.f32 %v2412, %v605
      %v2426 = vmul.f32 %v2418, %v609
      %2427 = vst [vmem:[#allocation2 + $0x180] sm:$0xff] %v2419
      %2428 = vst [vmem:[#allocation2 + $0x188] sm:$0xff] %v2420
      %2429 = vst [vmem:[#allocation2 + $0x190] sm:$0xff] %v2421
      %2430 = vst [vmem:[#allocation2 + $0x198] sm:$0xff] %v2422
      %2431 = vst [vmem:[#allocation2 + $0x1a0] sm:$0xff] %v2423
      %2432 = vst [vmem:[#allocation2 + $0x1a8] sm:$0xff] %v2424
      %2433 = vst [vmem:[#allocation2 + $0x1b0] sm:$0xff] %v2425
      %2434 = vst [vmem:[#allocation2 + $0x1b8] sm:$0xff] %v2426
      %2435 = vrot.lane.b32.xlu0 %v2171, 112
      %v2436 = vpop.permute.xlu0 %2435
      %2437 = vrot.lane.b32.xlu0 %v2175, 112
      %v2438 = vpop.permute.xlu0 %2437
      %2439 = vrot.lane.b32.xlu0 %v2172, 112
      %v2440 = vpop.permute.xlu0 %2439
      %2441 = vrot.lane.b32.xlu0 %v2176, 112
      %v2442 = vpop.permute.xlu0 %2441
      %2443 = vrot.lane.b32.xlu0 %v2173, 112
      %v2444 = vpop.permute.xlu0 %2443
      %2445 = vrot.lane.b32.xlu0 %v2177, 112
      %v2446 = vpop.permute.xlu0 %2445
      %2447 = vrot.lane.b32.xlu0 %v2174, 112
      %v2448 = vpop.permute.xlu0 %2447
      %2449 = vrot.lane.b32.xlu0 %v2178, 112
      %v2450 = vpop.permute.xlu0 %2449
      %v2451 = vsel %vm642, %v2444, %v2448
      %v2452 = vsel %vm642, %v2446, %v2450
      %v2453 = vsel %vm642, %v2440, %v2444
      %v2454 = vsel %vm642, %v2442, %v2446
      %v2455 = vsel %vm642, %v2436, %v2440
      %v2456 = vsel %vm642, %v2438, %v2442
      %v2457 = vsel %vm642, %v2448, %v2436
      %v2458 = vsel %vm642, %v2450, %v2438
      %v2459 = vmul.f32 %v2455, %v654
      %v2460 = vmul.f32 %v2453, %v658
      %v2461 = vmul.f32 %v2451, %v662
      %v2462 = vmul.f32 %v2457, %v666
      %v2463 = vmul.f32 %v2456, %v654
      %v2464 = vmul.f32 %v2454, %v658
      %v2465 = vmul.f32 %v2452, %v662
      %v2466 = vmul.f32 %v2458, %v666
      %2467 = vst [vmem:[#allocation2 + $0x1c0] sm:$0xff] %v2459
      %2468 = vst [vmem:[#allocation2 + $0x1c8] sm:$0xff] %v2460
      %2469 = vst [vmem:[#allocation2 + $0x1d0] sm:$0xff] %v2461
      %2470 = vst [vmem:[#allocation2 + $0x1d8] sm:$0xff] %v2462
      %2471 = vst [vmem:[#allocation2 + $0x1e0] sm:$0xff] %v2463
      %2472 = vst [vmem:[#allocation2 + $0x1e8] sm:$0xff] %v2464
      %2473 = vst [vmem:[#allocation2 + $0x1f0] sm:$0xff] %v2465
      %2474 = vst [vmem:[#allocation2 + $0x1f8] sm:$0xff] %v2466
      %2475 = vrot.lane.b32.xlu0 %v2171, 111
      %v2476 = vpop.permute.xlu0 %2475
      %2477 = vrot.lane.b32.xlu0 %v2175, 111
      %v2478 = vpop.permute.xlu0 %2477
      %2479 = vrot.lane.b32.xlu0 %v2172, 111
      %v2480 = vpop.permute.xlu0 %2479
      %2481 = vrot.lane.b32.xlu0 %v2176, 111
      %v2482 = vpop.permute.xlu0 %2481
      %2483 = vrot.lane.b32.xlu0 %v2173, 111
      %v2484 = vpop.permute.xlu0 %2483
      %2485 = vrot.lane.b32.xlu0 %v2177, 111
      %v2486 = vpop.permute.xlu0 %2485
      %2487 = vrot.lane.b32.xlu0 %v2174, 111
      %v2488 = vpop.permute.xlu0 %2487
      %2489 = vrot.lane.b32.xlu0 %v2178, 111
      %v2490 = vpop.permute.xlu0 %2489
      %v2491 = vsel %vm699, %v2484, %v2488
      %v2492 = vsel %vm699, %v2486, %v2490
      %v2493 = vsel %vm699, %v2480, %v2484
      %v2494 = vsel %vm699, %v2482, %v2486
      %v2495 = vsel %vm699, %v2476, %v2480
      %v2496 = vsel %vm699, %v2478, %v2482
      %v2497 = vsel %vm699, %v2488, %v2476
      %v2498 = vsel %vm699, %v2490, %v2478
      %v2499 = vmul.f32 %v2495, %v711
      %v2500 = vmul.f32 %v2493, %v715
      %v2501 = vmul.f32 %v2491, %v719
      %v2502 = vmul.f32 %v2497, %v723
      %v2503 = vmul.f32 %v2496, %v711
      %v2504 = vmul.f32 %v2494, %v715
      %v2505 = vmul.f32 %v2492, %v719
      %v2506 = vmul.f32 %v2498, %v723
      %2507 = vst [vmem:[#allocation2 + $0x200] sm:$0xff] %v2499
      %2508 = vst [vmem:[#allocation2 + $0x208] sm:$0xff] %v2500
      %2509 = vst [vmem:[#allocation2 + $0x210] sm:$0xff] %v2501
      %2510 = vst [vmem:[#allocation2 + $0x218] sm:$0xff] %v2502
      %2511 = vst [vmem:[#allocation2 + $0x220] sm:$0xff] %v2503
      %2512 = vst [vmem:[#allocation2 + $0x228] sm:$0xff] %v2504
      %2513 = vst [vmem:[#allocation2 + $0x230] sm:$0xff] %v2505
      %2514 = vst [vmem:[#allocation2 + $0x238] sm:$0xff] %v2506
      %v2515 = vld [vmem:[#allocation2] sm:$0xff]
      %v2516 = vld [vmem:[#allocation2 + $0x8] sm:$0xff]
      %v2517 = vld [vmem:[#allocation2 + $0x10] sm:$0xff]
      %v2518 = vld [vmem:[#allocation2 + $0x18] sm:$0xff]
      %v2519 = vld [vmem:[#allocation2 + $0x20] sm:$0xff]
      %v2520 = vld [vmem:[#allocation2 + $0x28] sm:$0xff]
      %v2521 = vld [vmem:[#allocation2 + $0x30] sm:$0xff]
      %v2522 = vld [vmem:[#allocation2 + $0x38] sm:$0xff]
      %v2523 = vld [vmem:[#allocation2 + $0x40] sm:$0xff]
      %v2524 = vld [vmem:[#allocation2 + $0x48] sm:$0xff]
      %v2525 = vld [vmem:[#allocation2 + $0x50] sm:$0xff]
      %v2526 = vld [vmem:[#allocation2 + $0x58] sm:$0xff]
      %v2527 = vld [vmem:[#allocation2 + $0x60] sm:$0xff]
      %v2528 = vld [vmem:[#allocation2 + $0x68] sm:$0xff]
      %v2529 = vld [vmem:[#allocation2 + $0x70] sm:$0xff]
      %v2530 = vld [vmem:[#allocation2 + $0x78] sm:$0xff]
      %v2531 = vld [vmem:[#allocation2 + $0x80] sm:$0xff]
      %v2532 = vld [vmem:[#allocation2 + $0x88] sm:$0xff]
      %v2533 = vld [vmem:[#allocation2 + $0x90] sm:$0xff]
      %v2534 = vld [vmem:[#allocation2 + $0x98] sm:$0xff]
      %v2535 = vld [vmem:[#allocation2 + $0xa0] sm:$0xff]
      %v2536 = vld [vmem:[#allocation2 + $0xa8] sm:$0xff]
      %v2537 = vld [vmem:[#allocation2 + $0xb0] sm:$0xff]
      %v2538 = vld [vmem:[#allocation2 + $0xb8] sm:$0xff]
      %v2539 = vld [vmem:[#allocation2 + $0xc0] sm:$0xff]
      %v2540 = vld [vmem:[#allocation2 + $0xc8] sm:$0xff]
      %v2541 = vld [vmem:[#allocation2 + $0xd0] sm:$0xff]
      %v2542 = vld [vmem:[#allocation2 + $0xd8] sm:$0xff]
      %v2543 = vld [vmem:[#allocation2 + $0xe0] sm:$0xff]
      %v2544 = vld [vmem:[#allocation2 + $0xe8] sm:$0xff]
      %v2545 = vld [vmem:[#allocation2 + $0xf0] sm:$0xff]
      %v2546 = vld [vmem:[#allocation2 + $0xf8] sm:$0xff]
      %v2547 = vld [vmem:[#allocation2 + $0x100] sm:$0xff]
      %v2548 = vld [vmem:[#allocation2 + $0x108] sm:$0xff]
      %v2549 = vld [vmem:[#allocation2 + $0x110] sm:$0xff]
      %v2550 = vld [vmem:[#allocation2 + $0x118] sm:$0xff]
      %v2551 = vld [vmem:[#allocation2 + $0x120] sm:$0xff]
      %v2552 = vld [vmem:[#allocation2 + $0x128] sm:$0xff]
      %v2553 = vld [vmem:[#allocation2 + $0x130] sm:$0xff]
      %v2554 = vld [vmem:[#allocation2 + $0x138] sm:$0xff]
      %v2555 = vld [vmem:[#allocation2 + $0x140] sm:$0xff]
      %v2556 = vld [vmem:[#allocation2 + $0x148] sm:$0xff]
      %v2557 = vld [vmem:[#allocation2 + $0x150] sm:$0xff]
      %v2558 = vld [vmem:[#allocation2 + $0x158] sm:$0xff]
      %v2559 = vld [vmem:[#allocation2 + $0x160] sm:$0xff]
      %v2560 = vld [vmem:[#allocation2 + $0x168] sm:$0xff]
      %v2561 = vld [vmem:[#allocation2 + $0x170] sm:$0xff]
      %v2562 = vld [vmem:[#allocation2 + $0x178] sm:$0xff]
      %v2563 = vld [vmem:[#allocation2 + $0x180] sm:$0xff]
      %v2564 = vld [vmem:[#allocation2 + $0x188] sm:$0xff]
      %v2565 = vld [vmem:[#allocation2 + $0x190] sm:$0xff]
      %v2566 = vld [vmem:[#allocation2 + $0x198] sm:$0xff]
      %v2567 = vld [vmem:[#allocation2 + $0x1a0] sm:$0xff]
      %v2568 = vld [vmem:[#allocation2 + $0x1a8] sm:$0xff]
      %v2569 = vld [vmem:[#allocation2 + $0x1b0] sm:$0xff]
      %v2570 = vld [vmem:[#allocation2 + $0x1b8] sm:$0xff]
      %v2571 = vld [vmem:[#allocation2 + $0x1c0] sm:$0xff]
      %v2572 = vld [vmem:[#allocation2 + $0x1c8] sm:$0xff]
      %v2573 = vld [vmem:[#allocation2 + $0x1d0] sm:$0xff]
      %v2574 = vld [vmem:[#allocation2 + $0x1d8] sm:$0xff]
      %v2575 = vld [vmem:[#allocation2 + $0x1e0] sm:$0xff]
      %v2576 = vld [vmem:[#allocation2 + $0x1e8] sm:$0xff]
      %v2577 = vld [vmem:[#allocation2 + $0x1f0] sm:$0xff]
      %v2578 = vld [vmem:[#allocation2 + $0x1f8] sm:$0xff]
      %v2579 = vld [vmem:[#allocation2 + $0x200] sm:$0xff]
      %v2580 = vld [vmem:[#allocation2 + $0x208] sm:$0xff]
      %v2581 = vld [vmem:[#allocation2 + $0x210] sm:$0xff]
      %v2582 = vld [vmem:[#allocation2 + $0x218] sm:$0xff]
      %v2583 = vld [vmem:[#allocation2 + $0x220] sm:$0xff]
      %v2584 = vld [vmem:[#allocation2 + $0x228] sm:$0xff]
      %v2585 = vld [vmem:[#allocation2 + $0x230] sm:$0xff]
      %v2586 = vld [vmem:[#allocation2 + $0x238] sm:$0xff]
      %2588 = vset.pattern.permute.xlu0 0
      %2589 = vperm.xlu0 %2588, %v2185
      %v2590 = vpop.permute.xlu0 %2589
      %2593 = vset.pattern.permute.xlu0 0
      %2594 = vperm.xlu0 %2593, %v2186
      %v2595 = vpop.permute.xlu0 %2594
      %v2598 = vsel %vm822, %v2181, 0
      %v2601 = vsel %vm822, %v2183, 0
      %2603 = vmatprep.subr.mxu0 %v2516
      %2604 = vmatpush1.msra.mxu0 %v2515
      %2605 = vmatprep.subr.mxu0 %v2520
      %2606 = vmatpush1.msra.mxu0 %v2519
      %2607 = vmatprep.subr.mxu0 %v2524
      %2608 = vmatpush1.msra.mxu0 %v2523
      %2609 = vmatprep.subr.mxu0 %v2528
      %2610 = vmatpush1.msra.mxu0 %v2527
      %2611 = vmatprep.subr.mxu0 %v2532
      %2612 = vmatpush1.msra.mxu0 %v2531
      %2613 = vmatprep.subr.mxu0 %v2536
      %2614 = vmatpush1.msra.mxu0 %v2535
      %2615 = vmatprep.subr.mxu0 %v2540
      %2616 = vmatpush1.msra.mxu0 %v2539
      %2617 = vmatprep.subr.mxu0 %v2544
      %2618 = vmatpush1.msra.mxu0 %v2543
      %2619 = vmatprep.subr.mxu0 %v2548
      %2620 = vmatpush1.msra.mxu0 %v2547
      %2621 = vmatprep.subr.mxu0 %v2552
      %2622 = vmatpush1.msra.mxu0 %v2551
      %2623 = vmatprep.subr.mxu0 %v2556
      %2624 = vmatpush1.msra.mxu0 %v2555
      %2625 = vmatprep.subr.mxu0 %v2560
      %2626 = vmatpush1.msra.mxu0 %v2559
      %2627 = vmatprep.subr.mxu0 %v2564
      %2628 = vmatpush1.msra.mxu0 %v2563
      %2629 = vmatprep.subr.mxu0 %v2568
      %2630 = vmatpush1.msra.mxu0 %v2567
      %2631 = vmatprep.subr.mxu0 %v2572
      %2632 = vmatpush1.msra.mxu0 %v2571
      %2633 = vmatprep.subr.mxu0 %v2576
      %2634 = vmatpush1.msra.mxu0 %v2575
      %2635 = vmatprep.subr.mxu0 %v2580
      %2636 = vmatpush1.msra.mxu0 %v2579
      %2637 = vmatprep.subr.mxu0 %v2584
      %2638 = vmatpush1.msra.mxu0 %v2583
      %2639 = vmatprep.subr.mxu0 0.0
      %2640 = vmatpush1.msra.mxu0 0.0
      %2641 = vmatprep.subr.mxu0 0.0
      %2642 = vmatpush1.msra.mxu0 0.0
      %2643 = vmatprep.subr.mxu0 0.0
      %2644 = vmatpush1.msra.mxu0 0.0
      %2645 = vmatprep.subr.mxu0 0.0
      %2646 = vmatpush1.msra.mxu0 0.0
      %2647 = vmatprep.subr.mxu0 0.0
      %2648 = vmatpush1.msra.mxu0 0.0
      %2649 = vmatprep.subr.mxu0 0.0
      %2650 = vmatpush1.msra.mxu0 0.0
      %2651 = vmatprep.subr.mxu0 0.0
      %2652 = vmatpush1.msra.mxu0 0.0
      %2653 = vmatprep.subr.mxu0 0.0
      %2654 = vmatpush1.msra.mxu0 0.0
      %2655 = vmatprep.subr.mxu0 0.0
      %2656 = vmatpush1.msra.mxu0 0.0
      %2657 = vmatprep.subr.mxu0 0.0
      %2658 = vmatpush1.msra.mxu0 0.0
      %2659 = vmatprep.subr.mxu0 0.0
      %2660 = vmatpush1.msra.mxu0 0.0
      %2661 = vmatprep.subr.mxu0 0.0
      %2662 = vmatpush1.msra.mxu0 0.0
      %2663 = vmatprep.subr.mxu0 0.0
      %2664 = vmatpush1.msra.mxu0 0.0
      %2665 = vmatprep.subr.mxu0 0.0
      %2666 = vmatpush1.msra.mxu0 0.0
      %2667 = vmatprep.mubr.f32.mxu0 %v2598
      %2668 = vmatmul.mubr.f32.gmra.mrb[0].mxu0 %v2180
      %v2669 = vpop.f32.mrb[0].mxu0
      %v2670 = vadd.f32 %v2590, %v2669
      %v2671 = vpop.f32.mrb[0].mxu0
      %v2672 = vadd.f32 %v2590, %v2671
      %2673 = vmatprep.mubr.f32.mxu0 %v2601
      %2674 = vmatmul.mubr.f32.gmra.mrb[0].mxu0 %v2182
      %v2675 = vpop.f32.mrb[0].mxu0
      %v2676 = vadd.f32 %v2595, %v2675
      %v2677 = vpop.f32.mrb[0].mxu0
      %v2678 = vadd.f32 %v2595, %v2677
      %2679 = vdwg.mxu0
      %2680 = vmatprep.subr.mxu0 %v2518
      %2681 = vmatpush1.msra.mxu0 %v2517
      %2682 = vmatprep.subr.mxu0 %v2522
      %2683 = vmatpush1.msra.mxu0 %v2521
      %2684 = vmatprep.subr.mxu0 %v2526
      %2685 = vmatpush1.msra.mxu0 %v2525
      %2686 = vmatprep.subr.mxu0 %v2530
      %2687 = vmatpush1.msra.mxu0 %v2529
      %2688 = vmatprep.subr.mxu0 %v2534
      %2689 = vmatpush1.msra.mxu0 %v2533
      %2690 = vmatprep.subr.mxu0 %v2538
      %2691 = vmatpush1.msra.mxu0 %v2537
      %2692 = vmatprep.subr.mxu0 %v2542
      %2693 = vmatpush1.msra.mxu0 %v2541
      %2694 = vmatprep.subr.mxu0 %v2546
      %2695 = vmatpush1.msra.mxu0 %v2545
      %2696 = vmatprep.subr.mxu0 %v2550
      %2697 = vmatpush1.msra.mxu0 %v2549
      %2698 = vmatprep.subr.mxu0 %v2554
      %2699 = vmatpush1.msra.mxu0 %v2553
      %2700 = vmatprep.subr.mxu0 %v2558
      %2701 = vmatpush1.msra.mxu0 %v2557
      %2702 = vmatprep.subr.mxu0 %v2562
      %2703 = vmatpush1.msra.mxu0 %v2561
      %2704 = vmatprep.subr.mxu0 %v2566
      %2705 = vmatpush1.msra.mxu0 %v2565
      %2706 = vmatprep.subr.mxu0 %v2570
      %2707 = vmatpush1.msra.mxu0 %v2569
      %2708 = vmatprep.subr.mxu0 %v2574
      %2709 = vmatpush1.msra.mxu0 %v2573
      %2710 = vmatprep.subr.mxu0 %v2578
      %2711 = vmatpush1.msra.mxu0 %v2577
      %2712 = vmatprep.subr.mxu0 %v2582
      %2713 = vmatpush1.msra.mxu0 %v2581
      %2714 = vmatprep.subr.mxu0 %v2586
      %2715 = vmatpush1.msra.mxu0 %v2585
      %2716 = vmatprep.subr.mxu0 0.0
      %2717 = vmatpush1.msra.mxu0 0.0
      %2718 = vmatprep.subr.mxu0 0.0
      %2719 = vmatpush1.msra.mxu0 0.0
      %2720 = vmatprep.subr.mxu0 0.0
      %2721 = vmatpush1.msra.mxu0 0.0
      %2722 = vmatprep.subr.mxu0 0.0
      %2723 = vmatpush1.msra.mxu0 0.0
      %2724 = vmatprep.subr.mxu0 0.0
      %2725 = vmatpush1.msra.mxu0 0.0
      %2726 = vmatprep.subr.mxu0 0.0
      %2727 = vmatpush1.msra.mxu0 0.0
      %2728 = vmatprep.subr.mxu0 0.0
      %2729 = vmatpush1.msra.mxu0 0.0
      %2730 = vmatprep.subr.mxu0 0.0
      %2731 = vmatpush1.msra.mxu0 0.0
      %2732 = vmatprep.subr.mxu0 0.0
      %2733 = vmatpush1.msra.mxu0 0.0
      %2734 = vmatprep.subr.mxu0 0.0
      %2735 = vmatpush1.msra.mxu0 0.0
      %2736 = vmatprep.subr.mxu0 0.0
      %2737 = vmatpush1.msra.mxu0 0.0
      %2738 = vmatprep.subr.mxu0 0.0
      %2739 = vmatpush1.msra.mxu0 0.0
      %2740 = vmatprep.subr.mxu0 0.0
      %2741 = vmatpush1.msra.mxu0 0.0
      %2742 = vmatprep.subr.mxu0 0.0
      %2743 = vmatpush1.msra.mxu0 0.0
      %2744 = vmatprep.mubr.f32.mxu0 %v2598
      %2745 = vmatmul.mubr.f32.gmra.mrb[0].mxu0 %v2180
      %v2746 = vpop.f32.mrb[0].mxu0
      %v2747 = vadd.f32 %v2590, %v2746
      %v2748 = vpop.f32.mrb[0].mxu0
      %v2749 = vadd.f32 %v2590, %v2748
      %2750 = vmatprep.mubr.f32.mxu0 %v2601
      %2751 = vmatmul.mubr.f32.gmra.mrb[0].mxu0 %v2182
      %v2752 = vpop.f32.mrb[0].mxu0
      %v2753 = vadd.f32 %v2595, %v2752
      %v2754 = vpop.f32.mrb[0].mxu0
      %v2755 = vadd.f32 %v2595, %v2754
      %2756 = vdwg.mxu0
      %v2757 = vadd.f32 %v2670, %v1577
      %v2758 = vadd.f32 %v2672, %v1578
      %v2759 = vadd.f32 %v2747, %v1579
      %v2760 = vadd.f32 %v2749, %v1580
      %v2761 = vadd.f32 %v2676, %v1581
      %v2762 = vadd.f32 %v2678, %v1582
      %v2763 = vadd.f32 %v2753, %v1583
      %v2764 = vadd.f32 %v2755, %v1584
      %s2765 = scalar_lea.vmem %s2, 128
      %v2766 = vld [vmem:[%s2765] sm:$0xff]
      %v2767 = vld [vmem:[%s2765 + $0x8] sm:$0xff]
      %v2768 = vld [vmem:[%s2765 + $0x10] sm:$0xff]
      %v2769 = vld [vmem:[%s2765 + $0x18] sm:$0xff]
      %s2770 = scalar_lea.vmem %s3, 64
      %v2771 = vld [vmem:[%s2770] sm:$0xff]
      %v2772 = vld [vmem:[%s2770 + $0x8] sm:$0xff]
      %2773 = vrot.lane.b32.xlu0 %v2757, 17
      %v2774 = vpop.permute.xlu0 %2773
      %2775 = vrot.lane.b32.xlu0 %v2761, 17
      %v2776 = vpop.permute.xlu0 %2775
      %2777 = vrot.lane.b32.xlu0 %v2758, 17
      %v2778 = vpop.permute.xlu0 %2777
      %2779 = vrot.lane.b32.xlu0 %v2762, 17
      %v2780 = vpop.permute.xlu0 %2779
      %2781 = vrot.lane.b32.xlu0 %v2759, 17
      %v2782 = vpop.permute.xlu0 %2781
      %2783 = vrot.lane.b32.xlu0 %v2763, 17
      %v2784 = vpop.permute.xlu0 %2783
      %2785 = vrot.lane.b32.xlu0 %v2760, 17
      %v2786 = vpop.permute.xlu0 %2785
      %2787 = vrot.lane.b32.xlu0 %v2764, 17
      %v2788 = vpop.permute.xlu0 %2787
      %v2789 = vsel %vm292, %v2782, %v2786
      %v2790 = vsel %vm292, %v2784, %v2788
      %v2791 = vsel %vm292, %v2778, %v2782
      %v2792 = vsel %vm292, %v2780, %v2784
      %v2793 = vsel %vm292, %v2774, %v2778
      %v2794 = vsel %vm292, %v2776, %v2780
      %v2795 = vsel %vm292, %v2786, %v2774
      %v2796 = vsel %vm292, %v2788, %v2776
      %v2797 = vmul.f32 %v2795, %v304
      %v2798 = vmul.f32 %v2793, %v308
      %v2799 = vmul.f32 %v2791, %v312
      %v2800 = vmul.f32 %v2789, %v316
      %v2801 = vmul.f32 %v2796, %v304
      %v2802 = vmul.f32 %v2794, %v308
      %v2803 = vmul.f32 %v2792, %v312
      %v2804 = vmul.f32 %v2790, %v316
      %2805 = vst [vmem:[#allocation2] sm:$0xff] %v2797
      %2806 = vst [vmem:[#allocation2 + $0x8] sm:$0xff] %v2798
      %2807 = vst [vmem:[#allocation2 + $0x10] sm:$0xff] %v2799
      %2808 = vst [vmem:[#allocation2 + $0x18] sm:$0xff] %v2800
      %2809 = vst [vmem:[#allocation2 + $0x20] sm:$0xff] %v2801
      %2810 = vst [vmem:[#allocation2 + $0x28] sm:$0xff] %v2802
      %2811 = vst [vmem:[#allocation2 + $0x30] sm:$0xff] %v2803
      %2812 = vst [vmem:[#allocation2 + $0x38] sm:$0xff] %v2804
      %2813 = vrot.lane.b32.xlu0 %v2757, 16
      %v2814 = vpop.permute.xlu0 %2813
      %2815 = vrot.lane.b32.xlu0 %v2761, 16
      %v2816 = vpop.permute.xlu0 %2815
      %2817 = vrot.lane.b32.xlu0 %v2758, 16
      %v2818 = vpop.permute.xlu0 %2817
      %2819 = vrot.lane.b32.xlu0 %v2762, 16
      %v2820 = vpop.permute.xlu0 %2819
      %2821 = vrot.lane.b32.xlu0 %v2759, 16
      %v2822 = vpop.permute.xlu0 %2821
      %2823 = vrot.lane.b32.xlu0 %v2763, 16
      %v2824 = vpop.permute.xlu0 %2823
      %2825 = vrot.lane.b32.xlu0 %v2760, 16
      %v2826 = vpop.permute.xlu0 %2825
      %2827 = vrot.lane.b32.xlu0 %v2764, 16
      %v2828 = vpop.permute.xlu0 %2827
      %v2829 = vsel %vm349, %v2822, %v2826
      %v2830 = vsel %vm349, %v2824, %v2828
      %v2831 = vsel %vm349, %v2818, %v2822
      %v2832 = vsel %vm349, %v2820, %v2824
      %v2833 = vsel %vm349, %v2814, %v2818
      %v2834 = vsel %vm349, %v2816, %v2820
      %v2835 = vsel %vm349, %v2826, %v2814
      %v2836 = vsel %vm349, %v2828, %v2816
      %v2837 = vmul.f32 %v2835, %v361
      %v2838 = vmul.f32 %v2833, %v365
      %v2839 = vmul.f32 %v2831, %v369
      %v2840 = vmul.f32 %v2829, %v373
      %v2841 = vmul.f32 %v2836, %v361
      %v2842 = vmul.f32 %v2834, %v365
      %v2843 = vmul.f32 %v2832, %v369
      %v2844 = vmul.f32 %v2830, %v373
      %2845 = vst [vmem:[#allocation2 + $0x40] sm:$0xff] %v2837
      %2846 = vst [vmem:[#allocation2 + $0x48] sm:$0xff] %v2838
      %2847 = vst [vmem:[#allocation2 + $0x50] sm:$0xff] %v2839
      %2848 = vst [vmem:[#allocation2 + $0x58] sm:$0xff] %v2840
      %2849 = vst [vmem:[#allocation2 + $0x60] sm:$0xff] %v2841
      %2850 = vst [vmem:[#allocation2 + $0x68] sm:$0xff] %v2842
      %2851 = vst [vmem:[#allocation2 + $0x70] sm:$0xff] %v2843
      %2852 = vst [vmem:[#allocation2 + $0x78] sm:$0xff] %v2844
      %2853 = vrot.lane.b32.xlu0 %v2757, 15
      %v2854 = vpop.permute.xlu0 %2853
      %2855 = vrot.lane.b32.xlu0 %v2761, 15
      %v2856 = vpop.permute.xlu0 %2855
      %2857 = vrot.lane.b32.xlu0 %v2758, 15
      %v2858 = vpop.permute.xlu0 %2857
      %2859 = vrot.lane.b32.xlu0 %v2762, 15
      %v2860 = vpop.permute.xlu0 %2859
      %2861 = vrot.lane.b32.xlu0 %v2759, 15
      %v2862 = vpop.permute.xlu0 %2861
      %2863 = vrot.lane.b32.xlu0 %v2763, 15
      %v2864 = vpop.permute.xlu0 %2863
      %2865 = vrot.lane.b32.xlu0 %v2760, 15
      %v2866 = vpop.permute.xlu0 %2865
      %2867 = vrot.lane.b32.xlu0 %v2764, 15
      %v2868 = vpop.permute.xlu0 %2867
      %v2869 = vsel %vm406, %v2862, %v2866
      %v2870 = vsel %vm406, %v2864, %v2868
      %v2871 = vsel %vm406, %v2858, %v2862
      %v2872 = vsel %vm406, %v2860, %v2864
      %v2873 = vsel %vm406, %v2854, %v2858
      %v2874 = vsel %vm406, %v2856, %v2860
      %v2875 = vsel %vm406, %v2866, %v2854
      %v2876 = vsel %vm406, %v2868, %v2856
      %v2877 = vmul.f32 %v2875, %v418
      %v2878 = vmul.f32 %v2873, %v422
      %v2879 = vmul.f32 %v2871, %v426
      %v2880 = vmul.f32 %v2869, %v430
      %v2881 = vmul.f32 %v2876, %v418
      %v2882 = vmul.f32 %v2874, %v422
      %v2883 = vmul.f32 %v2872, %v426
      %v2884 = vmul.f32 %v2870, %v430
      %2885 = vst [vmem:[#allocation2 + $0x80] sm:$0xff] %v2877
      %2886 = vst [vmem:[#allocation2 + $0x88] sm:$0xff] %v2878
      %2887 = vst [vmem:[#allocation2 + $0x90] sm:$0xff] %v2879
      %2888 = vst [vmem:[#allocation2 + $0x98] sm:$0xff] %v2880
      %2889 = vst [vmem:[#allocation2 + $0xa0] sm:$0xff] %v2881
      %2890 = vst [vmem:[#allocation2 + $0xa8] sm:$0xff] %v2882
      %2891 = vst [vmem:[#allocation2 + $0xb0] sm:$0xff] %v2883
      %2892 = vst [vmem:[#allocation2 + $0xb8] sm:$0xff] %v2884
      %2893 = vrot.lane.b32.xlu0 %v2757, 1
      %v2894 = vpop.permute.xlu0 %2893
      %2895 = vrot.lane.b32.xlu0 %v2761, 1
      %v2896 = vpop.permute.xlu0 %2895
      %2897 = vrot.lane.b32.xlu0 %v2758, 1
      %v2898 = vpop.permute.xlu0 %2897
      %2899 = vrot.lane.b32.xlu0 %v2762, 1
      %v2900 = vpop.permute.xlu0 %2899
      %2901 = vrot.lane.b32.xlu0 %v2759, 1
      %v2902 = vpop.permute.xlu0 %2901
      %2903 = vrot.lane.b32.xlu0 %v2763, 1
      %v2904 = vpop.permute.xlu0 %2903
      %2905 = vrot.lane.b32.xlu0 %v2760, 1
      %v2906 = vpop.permute.xlu0 %2905
      %2907 = vrot.lane.b32.xlu0 %v2764, 1
      %v2908 = vpop.permute.xlu0 %2907
      %v2909 = vsel %vm463, %v2902, %v2906
      %v2910 = vsel %vm463, %v2904, %v2908
      %v2911 = vsel %vm463, %v2898, %v2902
      %v2912 = vsel %vm463, %v2900, %v2904
      %v2913 = vsel %vm463, %v2894, %v2898
      %v2914 = vsel %vm463, %v2896, %v2900
      %v2915 = vsel %vm463, %v2906, %v2894
      %v2916 = vsel %vm463, %v2908, %v2896
      %v2917 = vmul.f32 %v2915, %v475
      %v2918 = vmul.f32 %v2913, %v479
      %v2919 = vmul.f32 %v2911, %v483
      %v2920 = vmul.f32 %v2909, %v487
      %v2921 = vmul.f32 %v2916, %v475
      %v2922 = vmul.f32 %v2914, %v479
      %v2923 = vmul.f32 %v2912, %v483
      %v2924 = vmul.f32 %v2910, %v487
      %2925 = vst [vmem:[#allocation2 + $0xc0] sm:$0xff] %v2917
      %2926 = vst [vmem:[#allocation2 + $0xc8] sm:$0xff] %v2918
      %2927 = vst [vmem:[#allocation2 + $0xd0] sm:$0xff] %v2919
      %2928 = vst [vmem:[#allocation2 + $0xd8] sm:$0xff] %v2920
      %2929 = vst [vmem:[#allocation2 + $0xe0] sm:$0xff] %v2921
      %2930 = vst [vmem:[#allocation2 + $0xe8] sm:$0xff] %v2922
      %2931 = vst [vmem:[#allocation2 + $0xf0] sm:$0xff] %v2923
      %2932 = vst [vmem:[#allocation2 + $0xf8] sm:$0xff] %v2924
      %2933 = vst [vmem:[#allocation2 + $0x100] sm:$0xff] %v2757
      %2934 = vst [vmem:[#allocation2 + $0x108] sm:$0xff] %v2758
      %2935 = vst [vmem:[#allocation2 + $0x110] sm:$0xff] %v2759
      %2936 = vst [vmem:[#allocation2 + $0x118] sm:$0xff] %v2760
      %2937 = vst [vmem:[#allocation2 + $0x120] sm:$0xff] %v2761
      %2938 = vst [vmem:[#allocation2 + $0x128] sm:$0xff] %v2762
      %2939 = vst [vmem:[#allocation2 + $0x130] sm:$0xff] %v2763
      %2940 = vst [vmem:[#allocation2 + $0x138] sm:$0xff] %v2764
      %2941 = vrot.lane.b32.xlu0 %v2757, 127
      %v2942 = vpop.permute.xlu0 %2941
      %2943 = vrot.lane.b32.xlu0 %v2761, 127
      %v2944 = vpop.permute.xlu0 %2943
      %2945 = vrot.lane.b32.xlu0 %v2758, 127
      %v2946 = vpop.permute.xlu0 %2945
      %2947 = vrot.lane.b32.xlu0 %v2762, 127
      %v2948 = vpop.permute.xlu0 %2947
      %2949 = vrot.lane.b32.xlu0 %v2759, 127
      %v2950 = vpop.permute.xlu0 %2949
      %2951 = vrot.lane.b32.xlu0 %v2763, 127
      %v2952 = vpop.permute.xlu0 %2951
      %2953 = vrot.lane.b32.xlu0 %v2760, 127
      %v2954 = vpop.permute.xlu0 %2953
      %2955 = vrot.lane.b32.xlu0 %v2764, 127
      %v2956 = vpop.permute.xlu0 %2955
      %v2957 = vsel %vm528, %v2950, %v2954
      %v2958 = vsel %vm528, %v2952, %v2956
      %v2959 = vsel %vm528, %v2946, %v2950
      %v2960 = vsel %vm528, %v2948, %v2952
      %v2961 = vsel %vm528, %v2942, %v2946
      %v2962 = vsel %vm528, %v2944, %v2948
      %v2963 = vsel %vm528, %v2954, %v2942
      %v2964 = vsel %vm528, %v2956, %v2944
      %v2965 = vmul.f32 %v2961, %v540
      %v2966 = vmul.f32 %v2959, %v544
      %v2967 = vmul.f32 %v2957, %v548
      %v2968 = vmul.f32 %v2963, %v552
      %v2969 = vmul.f32 %v2962, %v540
      %v2970 = vmul.f32 %v2960, %v544
      %v2971 = vmul.f32 %v2958, %v548
      %v2972 = vmul.f32 %v2964, %v552
      %2973 = vst [vmem:[#allocation2 + $0x140] sm:$0xff] %v2965
      %2974 = vst [vmem:[#allocation2 + $0x148] sm:$0xff] %v2966
      %2975 = vst [vmem:[#allocation2 + $0x150] sm:$0xff] %v2967
      %2976 = vst [vmem:[#allocation2 + $0x158] sm:$0xff] %v2968
      %2977 = vst [vmem:[#allocation2 + $0x160] sm:$0xff] %v2969
      %2978 = vst [vmem:[#allocation2 + $0x168] sm:$0xff] %v2970
      %2979 = vst [vmem:[#allocation2 + $0x170] sm:$0xff] %v2971
      %2980 = vst [vmem:[#allocation2 + $0x178] sm:$0xff] %v2972
      %2981 = vrot.lane.b32.xlu0 %v2757, 113
      %v2982 = vpop.permute.xlu0 %2981
      %2983 = vrot.lane.b32.xlu0 %v2761, 113
      %v2984 = vpop.permute.xlu0 %2983
      %2985 = vrot.lane.b32.xlu0 %v2758, 113
      %v2986 = vpop.permute.xlu0 %2985
      %2987 = vrot.lane.b32.xlu0 %v2762, 113
      %v2988 = vpop.permute.xlu0 %2987
      %2989 = vrot.lane.b32.xlu0 %v2759, 113
      %v2990 = vpop.permute.xlu0 %2989
      %2991 = vrot.lane.b32.xlu0 %v2763, 113
      %v2992 = vpop.permute.xlu0 %2991
      %2993 = vrot.lane.b32.xlu0 %v2760, 113
      %v2994 = vpop.permute.xlu0 %2993
      %2995 = vrot.lane.b32.xlu0 %v2764, 113
      %v2996 = vpop.permute.xlu0 %2995
      %v2997 = vsel %vm585, %v2990, %v2994
      %v2998 = vsel %vm585, %v2992, %v2996
      %v2999 = vsel %vm585, %v2986, %v2990
      %v3000 = vsel %vm585, %v2988, %v2992
      %v3001 = vsel %vm585, %v2982, %v2986
      %v3002 = vsel %vm585, %v2984, %v2988
      %v3003 = vsel %vm585, %v2994, %v2982
      %v3004 = vsel %vm585, %v2996, %v2984
      %v3005 = vmul.f32 %v3001, %v597
      %v3006 = vmul.f32 %v2999, %v601
      %v3007 = vmul.f32 %v2997, %v605
      %v3008 = vmul.f32 %v3003, %v609
      %v3009 = vmul.f32 %v3002, %v597
      %v3010 = vmul.f32 %v3000, %v601
      %v3011 = vmul.f32 %v2998, %v605
      %v3012 = vmul.f32 %v3004, %v609
      %3013 = vst [vmem:[#allocation2 + $0x180] sm:$0xff] %v3005
      %3014 = vst [vmem:[#allocation2 + $0x188] sm:$0xff] %v3006
      %3015 = vst [vmem:[#allocation2 + $0x190] sm:$0xff] %v3007
      %3016 = vst [vmem:[#allocation2 + $0x198] sm:$0xff] %v3008
      %3017 = vst [vmem:[#allocation2 + $0x1a0] sm:$0xff] %v3009
      %3018 = vst [vmem:[#allocation2 + $0x1a8] sm:$0xff] %v3010
      %3019 = vst [vmem:[#allocation2 + $0x1b0] sm:$0xff] %v3011
      %3020 = vst [vmem:[#allocation2 + $0x1b8] sm:$0xff] %v3012
      %3021 = vrot.lane.b32.xlu0 %v2757, 112
      %v3022 = vpop.permute.xlu0 %3021
      %3023 = vrot.lane.b32.xlu0 %v2761, 112
      %v3024 = vpop.permute.xlu0 %3023
      %3025 = vrot.lane.b32.xlu0 %v2758, 112
      %v3026 = vpop.permute.xlu0 %3025
      %3027 = vrot.lane.b32.xlu0 %v2762, 112
      %v3028 = vpop.permute.xlu0 %3027
      %3029 = vrot.lane.b32.xlu0 %v2759, 112
      %v3030 = vpop.permute.xlu0 %3029
      %3031 = vrot.lane.b32.xlu0 %v2763, 112
      %v3032 = vpop.permute.xlu0 %3031
      %3033 = vrot.lane.b32.xlu0 %v2760, 112
      %v3034 = vpop.permute.xlu0 %3033
      %3035 = vrot.lane.b32.xlu0 %v2764, 112
      %v3036 = vpop.permute.xlu0 %3035
      %v3037 = vsel %vm642, %v3030, %v3034
      %v3038 = vsel %vm642, %v3032, %v3036
      %v3039 = vsel %vm642, %v3026, %v3030
      %v3040 = vsel %vm642, %v3028, %v3032
      %v3041 = vsel %vm642, %v3022, %v3026
      %v3042 = vsel %vm642, %v3024, %v3028
      %v3043 = vsel %vm642, %v3034, %v3022
      %v3044 = vsel %vm642, %v3036, %v3024
      %v3045 = vmul.f32 %v3041, %v654
      %v3046 = vmul.f32 %v3039, %v658
      %v3047 = vmul.f32 %v3037, %v662
      %v3048 = vmul.f32 %v3043, %v666
      %v3049 = vmul.f32 %v3042, %v654
      %v3050 = vmul.f32 %v3040, %v658
      %v3051 = vmul.f32 %v3038, %v662
      %v3052 = vmul.f32 %v3044, %v666
      %3053 = vst [vmem:[#allocation2 + $0x1c0] sm:$0xff] %v3045
      %3054 = vst [vmem:[#allocation2 + $0x1c8] sm:$0xff] %v3046
      %3055 = vst [vmem:[#allocation2 + $0x1d0] sm:$0xff] %v3047
      %3056 = vst [vmem:[#allocation2 + $0x1d8] sm:$0xff] %v3048
      %3057 = vst [vmem:[#allocation2 + $0x1e0] sm:$0xff] %v3049
      %3058 = vst [vmem:[#allocation2 + $0x1e8] sm:$0xff] %v3050
      %3059 = vst [vmem:[#allocation2 + $0x1f0] sm:$0xff] %v3051
      %3060 = vst [vmem:[#allocation2 + $0x1f8] sm:$0xff] %v3052
      %3061 = vrot.lane.b32.xlu0 %v2757, 111
      %v3062 = vpop.permute.xlu0 %3061
      %3063 = vrot.lane.b32.xlu0 %v2761, 111
      %v3064 = vpop.permute.xlu0 %3063
      %3065 = vrot.lane.b32.xlu0 %v2758, 111
      %v3066 = vpop.permute.xlu0 %3065
      %3067 = vrot.lane.b32.xlu0 %v2762, 111
      %v3068 = vpop.permute.xlu0 %3067
      %3069 = vrot.lane.b32.xlu0 %v2759, 111
      %v3070 = vpop.permute.xlu0 %3069
      %3071 = vrot.lane.b32.xlu0 %v2763, 111
      %v3072 = vpop.permute.xlu0 %3071
      %3073 = vrot.lane.b32.xlu0 %v2760, 111
      %v3074 = vpop.permute.xlu0 %3073
      %3075 = vrot.lane.b32.xlu0 %v2764, 111
      %v3076 = vpop.permute.xlu0 %3075
      %v3077 = vsel %vm699, %v3070, %v3074
      %v3078 = vsel %vm699, %v3072, %v3076
      %v3079 = vsel %vm699, %v3066, %v3070
      %v3080 = vsel %vm699, %v3068, %v3072
      %v3081 = vsel %vm699, %v3062, %v3066
      %v3082 = vsel %vm699, %v3064, %v3068
      %v3083 = vsel %vm699, %v3074, %v3062
      %v3084 = vsel %vm699, %v3076, %v3064
      %v3085 = vmul.f32 %v3081, %v711
      %v3086 = vmul.f32 %v3079, %v715
      %v3087 = vmul.f32 %v3077, %v719
      %v3088 = vmul.f32 %v3083, %v723
      %v3089 = vmul.f32 %v3082, %v711
      %v3090 = vmul.f32 %v3080, %v715
      %v3091 = vmul.f32 %v3078, %v719
      %v3092 = vmul.f32 %v3084, %v723
      %3093 = vst [vmem:[#allocation2 + $0x200] sm:$0xff] %v3085
      %3094 = vst [vmem:[#allocation2 + $0x208] sm:$0xff] %v3086
      %3095 = vst [vmem:[#allocation2 + $0x210] sm:$0xff] %v3087
      %3096 = vst [vmem:[#allocation2 + $0x218] sm:$0xff] %v3088
      %3097 = vst [vmem:[#allocation2 + $0x220] sm:$0xff] %v3089
      %3098 = vst [vmem:[#allocation2 + $0x228] sm:$0xff] %v3090
      %3099 = vst [vmem:[#allocation2 + $0x230] sm:$0xff] %v3091
      %3100 = vst [vmem:[#allocation2 + $0x238] sm:$0xff] %v3092
      %v3101 = vld [vmem:[#allocation2] sm:$0xff]
      %v3102 = vld [vmem:[#allocation2 + $0x8] sm:$0xff]
      %v3103 = vld [vmem:[#allocation2 + $0x10] sm:$0xff]
      %v3104 = vld [vmem:[#allocation2 + $0x18] sm:$0xff]
      %v3105 = vld [vmem:[#allocation2 + $0x20] sm:$0xff]
      %v3106 = vld [vmem:[#allocation2 + $0x28] sm:$0xff]
      %v3107 = vld [vmem:[#allocation2 + $0x30] sm:$0xff]
      %v3108 = vld [vmem:[#allocation2 + $0x38] sm:$0xff]
      %v3109 = vld [vmem:[#allocation2 + $0x40] sm:$0xff]
      %v3110 = vld [vmem:[#allocation2 + $0x48] sm:$0xff]
      %v3111 = vld [vmem:[#allocation2 + $0x50] sm:$0xff]
      %v3112 = vld [vmem:[#allocation2 + $0x58] sm:$0xff]
      %v3113 = vld [vmem:[#allocation2 + $0x60] sm:$0xff]
      %v3114 = vld [vmem:[#allocation2 + $0x68] sm:$0xff]
      %v3115 = vld [vmem:[#allocation2 + $0x70] sm:$0xff]
      %v3116 = vld [vmem:[#allocation2 + $0x78] sm:$0xff]
      %v3117 = vld [vmem:[#allocation2 + $0x80] sm:$0xff]
      %v3118 = vld [vmem:[#allocation2 + $0x88] sm:$0xff]
      %v3119 = vld [vmem:[#allocation2 + $0x90] sm:$0xff]
      %v3120 = vld [vmem:[#allocation2 + $0x98] sm:$0xff]
      %v3121 = vld [vmem:[#allocation2 + $0xa0] sm:$0xff]
      %v3122 = vld [vmem:[#allocation2 + $0xa8] sm:$0xff]
      %v3123 = vld [vmem:[#allocation2 + $0xb0] sm:$0xff]
      %v3124 = vld [vmem:[#allocation2 + $0xb8] sm:$0xff]
      %v3125 = vld [vmem:[#allocation2 + $0xc0] sm:$0xff]
      %v3126 = vld [vmem:[#allocation2 + $0xc8] sm:$0xff]
      %v3127 = vld [vmem:[#allocation2 + $0xd0] sm:$0xff]
      %v3128 = vld [vmem:[#allocation2 + $0xd8] sm:$0xff]
      %v3129 = vld [vmem:[#allocation2 + $0xe0] sm:$0xff]
      %v3130 = vld [vmem:[#allocation2 + $0xe8] sm:$0xff]
      %v3131 = vld [vmem:[#allocation2 + $0xf0] sm:$0xff]
      %v3132 = vld [vmem:[#allocation2 + $0xf8] sm:$0xff]
      %v3133 = vld [vmem:[#allocation2 + $0x100] sm:$0xff]
      %v3134 = vld [vmem:[#allocation2 + $0x108] sm:$0xff]
      %v3135 = vld [vmem:[#allocation2 + $0x110] sm:$0xff]
      %v3136 = vld [vmem:[#allocation2 + $0x118] sm:$0xff]
      %v3137 = vld [vmem:[#allocation2 + $0x120] sm:$0xff]
      %v3138 = vld [vmem:[#allocation2 + $0x128] sm:$0xff]
      %v3139 = vld [vmem:[#allocation2 + $0x130] sm:$0xff]
      %v3140 = vld [vmem:[#allocation2 + $0x138] sm:$0xff]
      %v3141 = vld [vmem:[#allocation2 + $0x140] sm:$0xff]
      %v3142 = vld [vmem:[#allocation2 + $0x148] sm:$0xff]
      %v3143 = vld [vmem:[#allocation2 + $0x150] sm:$0xff]
      %v3144 = vld [vmem:[#allocation2 + $0x158] sm:$0xff]
      %v3145 = vld [vmem:[#allocation2 + $0x160] sm:$0xff]
      %v3146 = vld [vmem:[#allocation2 + $0x168] sm:$0xff]
      %v3147 = vld [vmem:[#allocation2 + $0x170] sm:$0xff]
      %v3148 = vld [vmem:[#allocation2 + $0x178] sm:$0xff]
      %v3149 = vld [vmem:[#allocation2 + $0x180] sm:$0xff]
      %v3150 = vld [vmem:[#allocation2 + $0x188] sm:$0xff]
      %v3151 = vld [vmem:[#allocation2 + $0x190] sm:$0xff]
      %v3152 = vld [vmem:[#allocation2 + $0x198] sm:$0xff]
      %v3153 = vld [vmem:[#allocation2 + $0x1a0] sm:$0xff]
      %v3154 = vld [vmem:[#allocation2 + $0x1a8] sm:$0xff]
      %v3155 = vld [vmem:[#allocation2 + $0x1b0] sm:$0xff]
      %v3156 = vld [vmem:[#allocation2 + $0x1b8] sm:$0xff]
      %v3157 = vld [vmem:[#allocation2 + $0x1c0] sm:$0xff]
      %v3158 = vld [vmem:[#allocation2 + $0x1c8] sm:$0xff]
      %v3159 = vld [vmem:[#allocation2 + $0x1d0] sm:$0xff]
      %v3160 = vld [vmem:[#allocation2 + $0x1d8] sm:$0xff]
      %v3161 = vld [vmem:[#allocation2 + $0x1e0] sm:$0xff]
      %v3162 = vld [vmem:[#allocation2 + $0x1e8] sm:$0xff]
      %v3163 = vld [vmem:[#allocation2 + $0x1f0] sm:$0xff]
      %v3164 = vld [vmem:[#allocation2 + $0x1f8] sm:$0xff]
      %v3165 = vld [vmem:[#allocation2 + $0x200] sm:$0xff]
      %v3166 = vld [vmem:[#allocation2 + $0x208] sm:$0xff]
      %v3167 = vld [vmem:[#allocation2 + $0x210] sm:$0xff]
      %v3168 = vld [vmem:[#allocation2 + $0x218] sm:$0xff]
      %v3169 = vld [vmem:[#allocation2 + $0x220] sm:$0xff]
      %v3170 = vld [vmem:[#allocation2 + $0x228] sm:$0xff]
      %v3171 = vld [vmem:[#allocation2 + $0x230] sm:$0xff]
      %v3172 = vld [vmem:[#allocation2 + $0x238] sm:$0xff]
      %3174 = vset.pattern.permute.xlu0 0
      %3175 = vperm.xlu0 %3174, %v2771
      %v3176 = vpop.permute.xlu0 %3175
      %3179 = vset.pattern.permute.xlu0 0
      %3180 = vperm.xlu0 %3179, %v2772
      %v3181 = vpop.permute.xlu0 %3180
      %v3184 = vsel %vm822, %v2767, 0
      %v3187 = vsel %vm822, %v2769, 0
      %3189 = vmatprep.subr.mxu0 %v3102
      %3190 = vmatpush1.msra.mxu0 %v3101
      %3191 = vmatprep.subr.mxu0 %v3106
      %3192 = vmatpush1.msra.mxu0 %v3105
      %3193 = vmatprep.subr.mxu0 %v3110
      %3194 = vmatpush1.msra.mxu0 %v3109
      %3195 = vmatprep.subr.mxu0 %v3114
      %3196 = vmatpush1.msra.mxu0 %v3113
      %3197 = vmatprep.subr.mxu0 %v3118
      %3198 = vmatpush1.msra.mxu0 %v3117
      %3199 = vmatprep.subr.mxu0 %v3122
      %3200 = vmatpush1.msra.mxu0 %v3121
      %3201 = vmatprep.subr.mxu0 %v3126
      %3202 = vmatpush1.msra.mxu0 %v3125
      %3203 = vmatprep.subr.mxu0 %v3130
      %3204 = vmatpush1.msra.mxu0 %v3129
      %3205 = vmatprep.subr.mxu0 %v3134
      %3206 = vmatpush1.msra.mxu0 %v3133
      %3207 = vmatprep.subr.mxu0 %v3138
      %3208 = vmatpush1.msra.mxu0 %v3137
      %3209 = vmatprep.subr.mxu0 %v3142
      %3210 = vmatpush1.msra.mxu0 %v3141
      %3211 = vmatprep.subr.mxu0 %v3146
      %3212 = vmatpush1.msra.mxu0 %v3145
      %3213 = vmatprep.subr.mxu0 %v3150
      %3214 = vmatpush1.msra.mxu0 %v3149
      %3215 = vmatprep.subr.mxu0 %v3154
      %3216 = vmatpush1.msra.mxu0 %v3153
      %3217 = vmatprep.subr.mxu0 %v3158
      %3218 = vmatpush1.msra.mxu0 %v3157
      %3219 = vmatprep.subr.mxu0 %v3162
      %3220 = vmatpush1.msra.mxu0 %v3161
      %3221 = vmatprep.subr.mxu0 %v3166
      %3222 = vmatpush1.msra.mxu0 %v3165
      %3223 = vmatprep.subr.mxu0 %v3170
      %3224 = vmatpush1.msra.mxu0 %v3169
      %3225 = vmatprep.subr.mxu0 0.0
      %3226 = vmatpush1.msra.mxu0 0.0
      %3227 = vmatprep.subr.mxu0 0.0
      %3228 = vmatpush1.msra.mxu0 0.0
      %3229 = vmatprep.subr.mxu0 0.0
      %3230 = vmatpush1.msra.mxu0 0.0
      %3231 = vmatprep.subr.mxu0 0.0
      %3232 = vmatpush1.msra.mxu0 0.0
      %3233 = vmatprep.subr.mxu0 0.0
      %3234 = vmatpush1.msra.mxu0 0.0
      %3235 = vmatprep.subr.mxu0 0.0
      %3236 = vmatpush1.msra.mxu0 0.0
      %3237 = vmatprep.subr.mxu0 0.0
      %3238 = vmatpush1.msra.mxu0 0.0
      %3239 = vmatprep.subr.mxu0 0.0
      %3240 = vmatpush1.msra.mxu0 0.0
      %3241 = vmatprep.subr.mxu0 0.0
      %3242 = vmatpush1.msra.mxu0 0.0
      %3243 = vmatprep.subr.mxu0 0.0
      %3244 = vmatpush1.msra.mxu0 0.0
      %3245 = vmatprep.subr.mxu0 0.0
      %3246 = vmatpush1.msra.mxu0 0.0
      %3247 = vmatprep.subr.mxu0 0.0
      %3248 = vmatpush1.msra.mxu0 0.0
      %3249 = vmatprep.subr.mxu0 0.0
      %3250 = vmatpush1.msra.mxu0 0.0
      %3251 = vmatprep.subr.mxu0 0.0
      %3252 = vmatpush1.msra.mxu0 0.0
      %3253 = vmatprep.mubr.f32.mxu0 %v3184
      %3254 = vmatmul.mubr.f32.gmra.mrb[0].mxu0 %v2766
      %v3255 = vpop.f32.mrb[0].mxu0
      %v3256 = vadd.f32 %v3176, %v3255
      %v3257 = vpop.f32.mrb[0].mxu0
      %v3258 = vadd.f32 %v3176, %v3257
      %3259 = vmatprep.mubr.f32.mxu0 %v3187
      %3260 = vmatmul.mubr.f32.gmra.mrb[0].mxu0 %v2768
      %v3261 = vpop.f32.mrb[0].mxu0
      %v3262 = vadd.f32 %v3181, %v3261
      %v3263 = vpop.f32.mrb[0].mxu0
      %v3264 = vadd.f32 %v3181, %v3263
      %3265 = vdwg.mxu0
      %3266 = vmatprep.subr.mxu0 %v3104
      %3267 = vmatpush1.msra.mxu0 %v3103
      %3268 = vmatprep.subr.mxu0 %v3108
      %3269 = vmatpush1.msra.mxu0 %v3107
      %3270 = vmatprep.subr.mxu0 %v3112
      %3271 = vmatpush1.msra.mxu0 %v3111
      %3272 = vmatprep.subr.mxu0 %v3116
      %3273 = vmatpush1.msra.mxu0 %v3115
      %3274 = vmatprep.subr.mxu0 %v3120
      %3275 = vmatpush1.msra.mxu0 %v3119
      %3276 = vmatprep.subr.mxu0 %v3124
      %3277 = vmatpush1.msra.mxu0 %v3123
      %3278 = vmatprep.subr.mxu0 %v3128
      %3279 = vmatpush1.msra.mxu0 %v3127
      %3280 = vmatprep.subr.mxu0 %v3132
      %3281 = vmatpush1.msra.mxu0 %v3131
      %3282 = vmatprep.subr.mxu0 %v3136
      %3283 = vmatpush1.msra.mxu0 %v3135
      %3284 = vmatprep.subr.mxu0 %v3140
      %3285 = vmatpush1.msra.mxu0 %v3139
      %3286 = vmatprep.subr.mxu0 %v3144
      %3287 = vmatpush1.msra.mxu0 %v3143
      %3288 = vmatprep.subr.mxu0 %v3148
      %3289 = vmatpush1.msra.mxu0 %v3147
      %3290 = vmatprep.subr.mxu0 %v3152
      %3291 = vmatpush1.msra.mxu0 %v3151
      %3292 = vmatprep.subr.mxu0 %v3156
      %3293 = vmatpush1.msra.mxu0 %v3155
      %3294 = vmatprep.subr.mxu0 %v3160
      %3295 = vmatpush1.msra.mxu0 %v3159
      %3296 = vmatprep.subr.mxu0 %v3164
      %3297 = vmatpush1.msra.mxu0 %v3163
      %3298 = vmatprep.subr.mxu0 %v3168
      %3299 = vmatpush1.msra.mxu0 %v3167
      %3300 = vmatprep.subr.mxu0 %v3172
      %3301 = vmatpush1.msra.mxu0 %v3171
      %3302 = vmatprep.subr.mxu0 0.0
      %3303 = vmatpush1.msra.mxu0 0.0
      %3304 = vmatprep.subr.mxu0 0.0
      %3305 = vmatpush1.msra.mxu0 0.0
      %3306 = vmatprep.subr.mxu0 0.0
      %3307 = vmatpush1.msra.mxu0 0.0
      %3308 = vmatprep.subr.mxu0 0.0
      %3309 = vmatpush1.msra.mxu0 0.0
      %3310 = vmatprep.subr.mxu0 0.0
      %3311 = vmatpush1.msra.mxu0 0.0
      %3312 = vmatprep.subr.mxu0 0.0
      %3313 = vmatpush1.msra.mxu0 0.0
      %3314 = vmatprep.subr.mxu0 0.0
      %3315 = vmatpush1.msra.mxu0 0.0
      %3316 = vmatprep.subr.mxu0 0.0
      %3317 = vmatpush1.msra.mxu0 0.0
      %3318 = vmatprep.subr.mxu0 0.0
      %3319 = vmatpush1.msra.mxu0 0.0
      %3320 = vmatprep.subr.mxu0 0.0
      %3321 = vmatpush1.msra.mxu0 0.0
      %3322 = vmatprep.subr.mxu0 0.0
      %3323 = vmatpush1.msra.mxu0 0.0
      %3324 = vmatprep.subr.mxu0 0.0
      %3325 = vmatpush1.msra.mxu0 0.0
      %3326 = vmatprep.subr.mxu0 0.0
      %3327 = vmatpush1.msra.mxu0 0.0
      %3328 = vmatprep.subr.mxu0 0.0
      %3329 = vmatpush1.msra.mxu0 0.0
      %3330 = vmatprep.mubr.f32.mxu0 %v3184
      %3331 = vmatmul.mubr.f32.gmra.mrb[0].mxu0 %v2766
      %v3332 = vpop.f32.mrb[0].mxu0
      %v3333 = vadd.f32 %v3176, %v3332
      %v3334 = vpop.f32.mrb[0].mxu0
      %v3335 = vadd.f32 %v3176, %v3334
      %3336 = vmatprep.mubr.f32.mxu0 %v3187
      %3337 = vmatmul.mubr.f32.gmra.mrb[0].mxu0 %v2768
      %v3338 = vpop.f32.mrb[0].mxu0
      %v3339 = vadd.f32 %v3181, %v3338
      %v3340 = vpop.f32.mrb[0].mxu0
      %v3341 = vadd.f32 %v3181, %v3340
      %3342 = vdwg.mxu0
      %v3343 = vmul.f32 %v3256, 0.2
      %v3344 = vmul.f32 %v3258, 0.2
      %v3345 = vmul.f32 %v3333, 0.2
      %v3346 = vmul.f32 %v3335, 0.2
      %v3347 = vmul.f32 %v3262, 0.2
      %v3348 = vmul.f32 %v3264, 0.2
      %v3349 = vmul.f32 %v3339, 0.2
      %v3350 = vmul.f32 %v3341, 0.2
      %v3351 = vmax.f32 %v3256, %v3343
      %v3352 = vmax.f32 %v3258, %v3344
      %v3353 = vmax.f32 %v3333, %v3345
      %v3354 = vmax.f32 %v3335, %v3346
      %v3355 = vmax.f32 %v3262, %v3347
      %v3356 = vmax.f32 %v3264, %v3348
      %v3357 = vmax.f32 %v3339, %v3349
      %v3358 = vmax.f32 %v3341, %v3350
      %v3359 = vld [vmem:[%s4] sm:$0xff]
      %v3360 = vld [vmem:[%s4 + $0x8] sm:$0xff]
      %v3361 = vld [vmem:[%s5] sm:$0xff]
      %3362 = vrot.lane.b32.xlu0 %v3351, 17
      %v3363 = vpop.permute.xlu0 %3362
      %3364 = vrot.lane.b32.xlu0 %v3355, 17
      %v3365 = vpop.permute.xlu0 %3364
      %3366 = vrot.lane.b32.xlu0 %v3352, 17
      %v3367 = vpop.permute.xlu0 %3366
      %3368 = vrot.lane.b32.xlu0 %v3356, 17
      %v3369 = vpop.permute.xlu0 %3368
      %3370 = vrot.lane.b32.xlu0 %v3353, 17
      %v3371 = vpop.permute.xlu0 %3370
      %3372 = vrot.lane.b32.xlu0 %v3357, 17
      %v3373 = vpop.permute.xlu0 %3372
      %3374 = vrot.lane.b32.xlu0 %v3354, 17
      %v3375 = vpop.permute.xlu0 %3374
      %3376 = vrot.lane.b32.xlu0 %v3358, 17
      %v3377 = vpop.permute.xlu0 %3376
      %v3378 = vsel %vm292, %v3371, %v3375
      %v3379 = vsel %vm292, %v3373, %v3377
      %v3380 = vsel %vm292, %v3367, %v3371
      %v3381 = vsel %vm292, %v3369, %v3373
      %v3382 = vsel %vm292, %v3363, %v3367
      %v3383 = vsel %vm292, %v3365, %v3369
      %v3384 = vsel %vm292, %v3375, %v3363
      %v3385 = vsel %vm292, %v3377, %v3365
      %v3386 = vmul.f32 %v3384, %v304
      %v3387 = vmul.f32 %v3382, %v308
      %v3388 = vmul.f32 %v3380, %v312
      %v3389 = vmul.f32 %v3378, %v316
      %v3390 = vmul.f32 %v3385, %v304
      %v3391 = vmul.f32 %v3383, %v308
      %v3392 = vmul.f32 %v3381, %v312
      %v3393 = vmul.f32 %v3379, %v316
      %3394 = vst [vmem:[#allocation2] sm:$0xff] %v3386
      %3395 = vst [vmem:[#allocation2 + $0x8] sm:$0xff] %v3387
      %3396 = vst [vmem:[#allocation2 + $0x10] sm:$0xff] %v3388
      %3397 = vst [vmem:[#allocation2 + $0x18] sm:$0xff] %v3389
      %3398 = vst [vmem:[#allocation2 + $0x20] sm:$0xff] %v3390
      %3399 = vst [vmem:[#allocation2 + $0x28] sm:$0xff] %v3391
      %3400 = vst [vmem:[#allocation2 + $0x30] sm:$0xff] %v3392
      %3401 = vst [vmem:[#allocation2 + $0x38] sm:$0xff] %v3393
      %3402 = vrot.lane.b32.xlu0 %v3351, 16
      %v3403 = vpop.permute.xlu0 %3402
      %3404 = vrot.lane.b32.xlu0 %v3355, 16
      %v3405 = vpop.permute.xlu0 %3404
      %3406 = vrot.lane.b32.xlu0 %v3352, 16
      %v3407 = vpop.permute.xlu0 %3406
      %3408 = vrot.lane.b32.xlu0 %v3356, 16
      %v3409 = vpop.permute.xlu0 %3408
      %3410 = vrot.lane.b32.xlu0 %v3353, 16
      %v3411 = vpop.permute.xlu0 %3410
      %3412 = vrot.lane.b32.xlu0 %v3357, 16
      %v3413 = vpop.permute.xlu0 %3412
      %3414 = vrot.lane.b32.xlu0 %v3354, 16
      %v3415 = vpop.permute.xlu0 %3414
      %3416 = vrot.lane.b32.xlu0 %v3358, 16
      %v3417 = vpop.permute.xlu0 %3416
      %v3418 = vsel %vm349, %v3411, %v3415
      %v3419 = vsel %vm349, %v3413, %v3417
      %v3420 = vsel %vm349, %v3407, %v3411
      %v3421 = vsel %vm349, %v3409, %v3413
      %v3422 = vsel %vm349, %v3403, %v3407
      %v3423 = vsel %vm349, %v3405, %v3409
      %v3424 = vsel %vm349, %v3415, %v3403
      %v3425 = vsel %vm349, %v3417, %v3405
      %v3426 = vmul.f32 %v3424, %v361
      %v3427 = vmul.f32 %v3422, %v365
      %v3428 = vmul.f32 %v3420, %v369
      %v3429 = vmul.f32 %v3418, %v373
      %v3430 = vmul.f32 %v3425, %v361
      %v3431 = vmul.f32 %v3423, %v365
      %v3432 = vmul.f32 %v3421, %v369
      %v3433 = vmul.f32 %v3419, %v373
      %3434 = vst [vmem:[#allocation2 + $0x40] sm:$0xff] %v3426
      %3435 = vst [vmem:[#allocation2 + $0x48] sm:$0xff] %v3427
      %3436 = vst [vmem:[#allocation2 + $0x50] sm:$0xff] %v3428
      %3437 = vst [vmem:[#allocation2 + $0x58] sm:$0xff] %v3429
      %3438 = vst [vmem:[#allocation2 + $0x60] sm:$0xff] %v3430
      %3439 = vst [vmem:[#allocation2 + $0x68] sm:$0xff] %v3431
      %3440 = vst [vmem:[#allocation2 + $0x70] sm:$0xff] %v3432
      %3441 = vst [vmem:[#allocation2 + $0x78] sm:$0xff] %v3433
      %3442 = vrot.lane.b32.xlu0 %v3351, 15
      %v3443 = vpop.permute.xlu0 %3442
      %3444 = vrot.lane.b32.xlu0 %v3355, 15
      %v3445 = vpop.permute.xlu0 %3444
      %3446 = vrot.lane.b32.xlu0 %v3352, 15
      %v3447 = vpop.permute.xlu0 %3446
      %3448 = vrot.lane.b32.xlu0 %v3356, 15
      %v3449 = vpop.permute.xlu0 %3448
      %3450 = vrot.lane.b32.xlu0 %v3353, 15
      %v3451 = vpop.permute.xlu0 %3450
      %3452 = vrot.lane.b32.xlu0 %v3357, 15
      %v3453 = vpop.permute.xlu0 %3452
      %3454 = vrot.lane.b32.xlu0 %v3354, 15
      %v3455 = vpop.permute.xlu0 %3454
      %3456 = vrot.lane.b32.xlu0 %v3358, 15
      %v3457 = vpop.permute.xlu0 %3456
      %v3458 = vsel %vm406, %v3451, %v3455
      %v3459 = vsel %vm406, %v3453, %v3457
      %v3460 = vsel %vm406, %v3447, %v3451
      %v3461 = vsel %vm406, %v3449, %v3453
      %v3462 = vsel %vm406, %v3443, %v3447
      %v3463 = vsel %vm406, %v3445, %v3449
      %v3464 = vsel %vm406, %v3455, %v3443
      %v3465 = vsel %vm406, %v3457, %v3445
      %v3466 = vmul.f32 %v3464, %v418
      %v3467 = vmul.f32 %v3462, %v422
      %v3468 = vmul.f32 %v3460, %v426
      %v3469 = vmul.f32 %v3458, %v430
      %v3470 = vmul.f32 %v3465, %v418
      %v3471 = vmul.f32 %v3463, %v422
      %v3472 = vmul.f32 %v3461, %v426
      %v3473 = vmul.f32 %v3459, %v430
      %3474 = vst [vmem:[#allocation2 + $0x80] sm:$0xff] %v3466
      %3475 = vst [vmem:[#allocation2 + $0x88] sm:$0xff] %v3467
      %3476 = vst [vmem:[#allocation2 + $0x90] sm:$0xff] %v3468
      %3477 = vst [vmem:[#allocation2 + $0x98] sm:$0xff] %v3469
      %3478 = vst [vmem:[#allocation2 + $0xa0] sm:$0xff] %v3470
      %3479 = vst [vmem:[#allocation2 + $0xa8] sm:$0xff] %v3471
      %3480 = vst [vmem:[#allocation2 + $0xb0] sm:$0xff] %v3472
      %3481 = vst [vmem:[#allocation2 + $0xb8] sm:$0xff] %v3473
      %3482 = vrot.lane.b32.xlu0 %v3351, 1
      %v3483 = vpop.permute.xlu0 %3482
      %3484 = vrot.lane.b32.xlu0 %v3355, 1
      %v3485 = vpop.permute.xlu0 %3484
      %3486 = vrot.lane.b32.xlu0 %v3352, 1
      %v3487 = vpop.permute.xlu0 %3486
      %3488 = vrot.lane.b32.xlu0 %v3356, 1
      %v3489 = vpop.permute.xlu0 %3488
      %3490 = vrot.lane.b32.xlu0 %v3353, 1
      %v3491 = vpop.permute.xlu0 %3490
      %3492 = vrot.lane.b32.xlu0 %v3357, 1
      %v3493 = vpop.permute.xlu0 %3492
      %3494 = vrot.lane.b32.xlu0 %v3354, 1
      %v3495 = vpop.permute.xlu0 %3494
      %3496 = vrot.lane.b32.xlu0 %v3358, 1
      %v3497 = vpop.permute.xlu0 %3496
      %v3498 = vsel %vm463, %v3491, %v3495
      %v3499 = vsel %vm463, %v3493, %v3497
      %v3500 = vsel %vm463, %v3487, %v3491
      %v3501 = vsel %vm463, %v3489, %v3493
      %v3502 = vsel %vm463, %v3483, %v3487
      %v3503 = vsel %vm463, %v3485, %v3489
      %v3504 = vsel %vm463, %v3495, %v3483
      %v3505 = vsel %vm463, %v3497, %v3485
      %v3506 = vmul.f32 %v3504, %v475
      %v3507 = vmul.f32 %v3502, %v479
      %v3508 = vmul.f32 %v3500, %v483
      %v3509 = vmul.f32 %v3498, %v487
      %v3510 = vmul.f32 %v3505, %v475
      %v3511 = vmul.f32 %v3503, %v479
      %v3512 = vmul.f32 %v3501, %v483
      %v3513 = vmul.f32 %v3499, %v487
      %3514 = vst [vmem:[#allocation2 + $0xc0] sm:$0xff] %v3506
      %3515 = vst [vmem:[#allocation2 + $0xc8] sm:$0xff] %v3507
      %3516 = vst [vmem:[#allocation2 + $0xd0] sm:$0xff] %v3508
      %3517 = vst [vmem:[#allocation2 + $0xd8] sm:$0xff] %v3509
      %3518 = vst [vmem:[#allocation2 + $0xe0] sm:$0xff] %v3510
      %3519 = vst [vmem:[#allocation2 + $0xe8] sm:$0xff] %v3511
      %3520 = vst [vmem:[#allocation2 + $0xf0] sm:$0xff] %v3512
      %3521 = vst [vmem:[#allocation2 + $0xf8] sm:$0xff] %v3513
      %3522 = vst [vmem:[#allocation2 + $0x100] sm:$0xff] %v3351
      %3523 = vst [vmem:[#allocation2 + $0x108] sm:$0xff] %v3352
      %3524 = vst [vmem:[#allocation2 + $0x110] sm:$0xff] %v3353
      %3525 = vst [vmem:[#allocation2 + $0x118] sm:$0xff] %v3354
      %3526 = vst [vmem:[#allocation2 + $0x120] sm:$0xff] %v3355
      %3527 = vst [vmem:[#allocation2 + $0x128] sm:$0xff] %v3356
      %3528 = vst [vmem:[#allocation2 + $0x130] sm:$0xff] %v3357
      %3529 = vst [vmem:[#allocation2 + $0x138] sm:$0xff] %v3358
      %3530 = vrot.lane.b32.xlu0 %v3351, 127
      %v3531 = vpop.permute.xlu0 %3530
      %3532 = vrot.lane.b32.xlu0 %v3355, 127
      %v3533 = vpop.permute.xlu0 %3532
      %3534 = vrot.lane.b32.xlu0 %v3352, 127
      %v3535 = vpop.permute.xlu0 %3534
      %3536 = vrot.lane.b32.xlu0 %v3356, 127
      %v3537 = vpop.permute.xlu0 %3536
      %3538 = vrot.lane.b32.xlu0 %v3353, 127
      %v3539 = vpop.permute.xlu0 %3538
      %3540 = vrot.lane.b32.xlu0 %v3357, 127
      %v3541 = vpop.permute.xlu0 %3540
      %3542 = vrot.lane.b32.xlu0 %v3354, 127
      %v3543 = vpop.permute.xlu0 %3542
      %3544 = vrot.lane.b32.xlu0 %v3358, 127
      %v3545 = vpop.permute.xlu0 %3544
      %v3546 = vsel %vm528, %v3539, %v3543
      %v3547 = vsel %vm528, %v3541, %v3545
      %v3548 = vsel %vm528, %v3535, %v3539
      %v3549 = vsel %vm528, %v3537, %v3541
      %v3550 = vsel %vm528, %v3531, %v3535
      %v3551 = vsel %vm528, %v3533, %v3537
      %v3552 = vsel %vm528, %v3543, %v3531
      %v3553 = vsel %vm528, %v3545, %v3533
      %v3554 = vmul.f32 %v3550, %v540
      %v3555 = vmul.f32 %v3548, %v544
      %v3556 = vmul.f32 %v3546, %v548
      %v3557 = vmul.f32 %v3552, %v552
      %v3558 = vmul.f32 %v3551, %v540
      %v3559 = vmul.f32 %v3549, %v544
      %v3560 = vmul.f32 %v3547, %v548
      %v3561 = vmul.f32 %v3553, %v552
      %3562 = vst [vmem:[#allocation2 + $0x140] sm:$0xff] %v3554
      %3563 = vst [vmem:[#allocation2 + $0x148] sm:$0xff] %v3555
      %3564 = vst [vmem:[#allocation2 + $0x150] sm:$0xff] %v3556
      %3565 = vst [vmem:[#allocation2 + $0x158] sm:$0xff] %v3557
      %3566 = vst [vmem:[#allocation2 + $0x160] sm:$0xff] %v3558
      %3567 = vst [vmem:[#allocation2 + $0x168] sm:$0xff] %v3559
      %3568 = vst [vmem:[#allocation2 + $0x170] sm:$0xff] %v3560
      %3569 = vst [vmem:[#allocation2 + $0x178] sm:$0xff] %v3561
      %3570 = vrot.lane.b32.xlu0 %v3351, 113
      %v3571 = vpop.permute.xlu0 %3570
      %3572 = vrot.lane.b32.xlu0 %v3355, 113
      %v3573 = vpop.permute.xlu0 %3572
      %3574 = vrot.lane.b32.xlu0 %v3352, 113
      %v3575 = vpop.permute.xlu0 %3574
      %3576 = vrot.lane.b32.xlu0 %v3356, 113
      %v3577 = vpop.permute.xlu0 %3576
      %3578 = vrot.lane.b32.xlu0 %v3353, 113
      %v3579 = vpop.permute.xlu0 %3578
      %3580 = vrot.lane.b32.xlu0 %v3357, 113
      %v3581 = vpop.permute.xlu0 %3580
      %3582 = vrot.lane.b32.xlu0 %v3354, 113
      %v3583 = vpop.permute.xlu0 %3582
      %3584 = vrot.lane.b32.xlu0 %v3358, 113
      %v3585 = vpop.permute.xlu0 %3584
      %v3586 = vsel %vm585, %v3579, %v3583
      %v3587 = vsel %vm585, %v3581, %v3585
      %v3588 = vsel %vm585, %v3575, %v3579
      %v3589 = vsel %vm585, %v3577, %v3581
      %v3590 = vsel %vm585, %v3571, %v3575
      %v3591 = vsel %vm585, %v3573, %v3577
      %v3592 = vsel %vm585, %v3583, %v3571
      %v3593 = vsel %vm585, %v3585, %v3573
      %v3594 = vmul.f32 %v3590, %v597
      %v3595 = vmul.f32 %v3588, %v601
      %v3596 = vmul.f32 %v3586, %v605
      %v3597 = vmul.f32 %v3592, %v609
      %v3598 = vmul.f32 %v3591, %v597
      %v3599 = vmul.f32 %v3589, %v601
      %v3600 = vmul.f32 %v3587, %v605
      %v3601 = vmul.f32 %v3593, %v609
      %3602 = vst [vmem:[#allocation2 + $0x180] sm:$0xff] %v3594
      %3603 = vst [vmem:[#allocation2 + $0x188] sm:$0xff] %v3595
      %3604 = vst [vmem:[#allocation2 + $0x190] sm:$0xff] %v3596
      %3605 = vst [vmem:[#allocation2 + $0x198] sm:$0xff] %v3597
      %3606 = vst [vmem:[#allocation2 + $0x1a0] sm:$0xff] %v3598
      %3607 = vst [vmem:[#allocation2 + $0x1a8] sm:$0xff] %v3599
      %3608 = vst [vmem:[#allocation2 + $0x1b0] sm:$0xff] %v3600
      %3609 = vst [vmem:[#allocation2 + $0x1b8] sm:$0xff] %v3601
      %3610 = vrot.lane.b32.xlu0 %v3351, 112
      %v3611 = vpop.permute.xlu0 %3610
      %3612 = vrot.lane.b32.xlu0 %v3355, 112
      %v3613 = vpop.permute.xlu0 %3612
      %3614 = vrot.lane.b32.xlu0 %v3352, 112
      %v3615 = vpop.permute.xlu0 %3614
      %3616 = vrot.lane.b32.xlu0 %v3356, 112
      %v3617 = vpop.permute.xlu0 %3616
      %3618 = vrot.lane.b32.xlu0 %v3353, 112
      %v3619 = vpop.permute.xlu0 %3618
      %3620 = vrot.lane.b32.xlu0 %v3357, 112
      %v3621 = vpop.permute.xlu0 %3620
      %3622 = vrot.lane.b32.xlu0 %v3354, 112
      %v3623 = vpop.permute.xlu0 %3622
      %3624 = vrot.lane.b32.xlu0 %v3358, 112
      %v3625 = vpop.permute.xlu0 %3624
      %v3626 = vsel %vm642, %v3619, %v3623
      %v3627 = vsel %vm642, %v3621, %v3625
      %v3628 = vsel %vm642, %v3615, %v3619
      %v3629 = vsel %vm642, %v3617, %v3621
      %v3630 = vsel %vm642, %v3611, %v3615
      %v3631 = vsel %vm642, %v3613, %v3617
      %v3632 = vsel %vm642, %v3623, %v3611
      %v3633 = vsel %vm642, %v3625, %v3613
      %v3634 = vmul.f32 %v3630, %v654
      %v3635 = vmul.f32 %v3628, %v658
      %v3636 = vmul.f32 %v3626, %v662
      %v3637 = vmul.f32 %v3632, %v666
      %v3638 = vmul.f32 %v3631, %v654
      %v3639 = vmul.f32 %v3629, %v658
      %v3640 = vmul.f32 %v3627, %v662
      %v3641 = vmul.f32 %v3633, %v666
      %3642 = vst [vmem:[#allocation2 + $0x1c0] sm:$0xff] %v3634
      %3643 = vst [vmem:[#allocation2 + $0x1c8] sm:$0xff] %v3635
      %3644 = vst [vmem:[#allocation2 + $0x1d0] sm:$0xff] %v3636
      %3645 = vst [vmem:[#allocation2 + $0x1d8] sm:$0xff] %v3637
      %3646 = vst [vmem:[#allocation2 + $0x1e0] sm:$0xff] %v3638
      %3647 = vst [vmem:[#allocation2 + $0x1e8] sm:$0xff] %v3639
      %3648 = vst [vmem:[#allocation2 + $0x1f0] sm:$0xff] %v3640
      %3649 = vst [vmem:[#allocation2 + $0x1f8] sm:$0xff] %v3641
      %3650 = vrot.lane.b32.xlu0 %v3351, 111
      %v3651 = vpop.permute.xlu0 %3650
      %3652 = vrot.lane.b32.xlu0 %v3355, 111
      %v3653 = vpop.permute.xlu0 %3652
      %3654 = vrot.lane.b32.xlu0 %v3352, 111
      %v3655 = vpop.permute.xlu0 %3654
      %3656 = vrot.lane.b32.xlu0 %v3356, 111
      %v3657 = vpop.permute.xlu0 %3656
      %3658 = vrot.lane.b32.xlu0 %v3353, 111
      %v3659 = vpop.permute.xlu0 %3658
      %3660 = vrot.lane.b32.xlu0 %v3357, 111
      %v3661 = vpop.permute.xlu0 %3660
      %3662 = vrot.lane.b32.xlu0 %v3354, 111
      %v3663 = vpop.permute.xlu0 %3662
      %3664 = vrot.lane.b32.xlu0 %v3358, 111
      %v3665 = vpop.permute.xlu0 %3664
      %v3666 = vsel %vm699, %v3659, %v3663
      %v3667 = vsel %vm699, %v3661, %v3665
      %v3668 = vsel %vm699, %v3655, %v3659
      %v3669 = vsel %vm699, %v3657, %v3661
      %v3670 = vsel %vm699, %v3651, %v3655
      %v3671 = vsel %vm699, %v3653, %v3657
      %v3672 = vsel %vm699, %v3663, %v3651
      %v3673 = vsel %vm699, %v3665, %v3653
      %v3674 = vmul.f32 %v3670, %v711
      %v3675 = vmul.f32 %v3668, %v715
      %v3676 = vmul.f32 %v3666, %v719
      %v3677 = vmul.f32 %v3672, %v723
      %v3678 = vmul.f32 %v3671, %v711
      %v3679 = vmul.f32 %v3669, %v715
      %v3680 = vmul.f32 %v3667, %v719
      %v3681 = vmul.f32 %v3673, %v723
      %3682 = vst [vmem:[#allocation2 + $0x200] sm:$0xff] %v3674
      %3683 = vst [vmem:[#allocation2 + $0x208] sm:$0xff] %v3675
      %3684 = vst [vmem:[#allocation2 + $0x210] sm:$0xff] %v3676
      %3685 = vst [vmem:[#allocation2 + $0x218] sm:$0xff] %v3677
      %3686 = vst [vmem:[#allocation2 + $0x220] sm:$0xff] %v3678
      %3687 = vst [vmem:[#allocation2 + $0x228] sm:$0xff] %v3679
      %3688 = vst [vmem:[#allocation2 + $0x230] sm:$0xff] %v3680
      %3689 = vst [vmem:[#allocation2 + $0x238] sm:$0xff] %v3681
      %v3690 = vld [vmem:[#allocation2] sm:$0xff]
      %v3691 = vld [vmem:[#allocation2 + $0x8] sm:$0xff]
      %v3692 = vld [vmem:[#allocation2 + $0x10] sm:$0xff]
      %v3693 = vld [vmem:[#allocation2 + $0x18] sm:$0xff]
      %v3694 = vld [vmem:[#allocation2 + $0x20] sm:$0xff]
      %v3695 = vld [vmem:[#allocation2 + $0x28] sm:$0xff]
      %v3696 = vld [vmem:[#allocation2 + $0x30] sm:$0xff]
      %v3697 = vld [vmem:[#allocation2 + $0x38] sm:$0xff]
      %v3698 = vld [vmem:[#allocation2 + $0x40] sm:$0xff]
      %v3699 = vld [vmem:[#allocation2 + $0x48] sm:$0xff]
      %v3700 = vld [vmem:[#allocation2 + $0x50] sm:$0xff]
      %v3701 = vld [vmem:[#allocation2 + $0x58] sm:$0xff]
      %v3702 = vld [vmem:[#allocation2 + $0x60] sm:$0xff]
      %v3703 = vld [vmem:[#allocation2 + $0x68] sm:$0xff]
      %v3704 = vld [vmem:[#allocation2 + $0x70] sm:$0xff]
      %v3705 = vld [vmem:[#allocation2 + $0x78] sm:$0xff]
      %v3706 = vld [vmem:[#allocation2 + $0x80] sm:$0xff]
      %v3707 = vld [vmem:[#allocation2 + $0x88] sm:$0xff]
      %v3708 = vld [vmem:[#allocation2 + $0x90] sm:$0xff]
      %v3709 = vld [vmem:[#allocation2 + $0x98] sm:$0xff]
      %v3710 = vld [vmem:[#allocation2 + $0xa0] sm:$0xff]
      %v3711 = vld [vmem:[#allocation2 + $0xa8] sm:$0xff]
      %v3712 = vld [vmem:[#allocation2 + $0xb0] sm:$0xff]
      %v3713 = vld [vmem:[#allocation2 + $0xb8] sm:$0xff]
      %v3714 = vld [vmem:[#allocation2 + $0xc0] sm:$0xff]
      %v3715 = vld [vmem:[#allocation2 + $0xc8] sm:$0xff]
      %v3716 = vld [vmem:[#allocation2 + $0xd0] sm:$0xff]
      %v3717 = vld [vmem:[#allocation2 + $0xd8] sm:$0xff]
      %v3718 = vld [vmem:[#allocation2 + $0xe0] sm:$0xff]
      %v3719 = vld [vmem:[#allocation2 + $0xe8] sm:$0xff]
      %v3720 = vld [vmem:[#allocation2 + $0xf0] sm:$0xff]
      %v3721 = vld [vmem:[#allocation2 + $0xf8] sm:$0xff]
      %v3722 = vld [vmem:[#allocation2 + $0x100] sm:$0xff]
      %v3723 = vld [vmem:[#allocation2 + $0x108] sm:$0xff]
      %v3724 = vld [vmem:[#allocation2 + $0x110] sm:$0xff]
      %v3725 = vld [vmem:[#allocation2 + $0x118] sm:$0xff]
      %v3726 = vld [vmem:[#allocation2 + $0x120] sm:$0xff]
      %v3727 = vld [vmem:[#allocation2 + $0x128] sm:$0xff]
      %v3728 = vld [vmem:[#allocation2 + $0x130] sm:$0xff]
      %v3729 = vld [vmem:[#allocation2 + $0x138] sm:$0xff]
      %v3730 = vld [vmem:[#allocation2 + $0x140] sm:$0xff]
      %v3731 = vld [vmem:[#allocation2 + $0x148] sm:$0xff]
      %v3732 = vld [vmem:[#allocation2 + $0x150] sm:$0xff]
      %v3733 = vld [vmem:[#allocation2 + $0x158] sm:$0xff]
      %v3734 = vld [vmem:[#allocation2 + $0x160] sm:$0xff]
      %v3735 = vld [vmem:[#allocation2 + $0x168] sm:$0xff]
      %v3736 = vld [vmem:[#allocation2 + $0x170] sm:$0xff]
      %v3737 = vld [vmem:[#allocation2 + $0x178] sm:$0xff]
      %v3738 = vld [vmem:[#allocation2 + $0x180] sm:$0xff]
      %v3739 = vld [vmem:[#allocation2 + $0x188] sm:$0xff]
      %v3740 = vld [vmem:[#allocation2 + $0x190] sm:$0xff]
      %v3741 = vld [vmem:[#allocation2 + $0x198] sm:$0xff]
      %v3742 = vld [vmem:[#allocation2 + $0x1a0] sm:$0xff]
      %v3743 = vld [vmem:[#allocation2 + $0x1a8] sm:$0xff]
      %v3744 = vld [vmem:[#allocation2 + $0x1b0] sm:$0xff]
      %v3745 = vld [vmem:[#allocation2 + $0x1b8] sm:$0xff]
      %v3746 = vld [vmem:[#allocation2 + $0x1c0] sm:$0xff]
      %v3747 = vld [vmem:[#allocation2 + $0x1c8] sm:$0xff]
      %v3748 = vld [vmem:[#allocation2 + $0x1d0] sm:$0xff]
      %v3749 = vld [vmem:[#allocation2 + $0x1d8] sm:$0xff]
      %v3750 = vld [vmem:[#allocation2 + $0x1e0] sm:$0xff]
      %v3751 = vld [vmem:[#allocation2 + $0x1e8] sm:$0xff]
      %v3752 = vld [vmem:[#allocation2 + $0x1f0] sm:$0xff]
      %v3753 = vld [vmem:[#allocation2 + $0x1f8] sm:$0xff]
      %v3754 = vld [vmem:[#allocation2 + $0x200] sm:$0xff]
      %v3755 = vld [vmem:[#allocation2 + $0x208] sm:$0xff]
      %v3756 = vld [vmem:[#allocation2 + $0x210] sm:$0xff]
      %v3757 = vld [vmem:[#allocation2 + $0x218] sm:$0xff]
      %v3758 = vld [vmem:[#allocation2 + $0x220] sm:$0xff]
      %v3759 = vld [vmem:[#allocation2 + $0x228] sm:$0xff]
      %v3760 = vld [vmem:[#allocation2 + $0x230] sm:$0xff]
      %v3761 = vld [vmem:[#allocation2 + $0x238] sm:$0xff]
      %3763 = vset.pattern.permute.xlu0 0
      %3764 = vperm.xlu0 %3763, %v3361
      %v3765 = vpop.permute.xlu0 %3764
      %v3768 = vsel %vm822, %v3360, 0
      %3770 = vmatprep.subr.mxu0 %v3691
      %3771 = vmatpush1.msra.mxu0 %v3690
      %3772 = vmatprep.subr.mxu0 %v3695
      %3773 = vmatpush1.msra.mxu0 %v3694
      %3774 = vmatprep.subr.mxu0 %v3699
      %3775 = vmatpush1.msra.mxu0 %v3698
      %3776 = vmatprep.subr.mxu0 %v3703
      %3777 = vmatpush1.msra.mxu0 %v3702
      %3778 = vmatprep.subr.mxu0 %v3707
      %3779 = vmatpush1.msra.mxu0 %v3706
      %3780 = vmatprep.subr.mxu0 %v3711
      %3781 = vmatpush1.msra.mxu0 %v3710
      %3782 = vmatprep.subr.mxu0 %v3715
      %3783 = vmatpush1.msra.mxu0 %v3714
      %3784 = vmatprep.subr.mxu0 %v3719
      %3785 = vmatpush1.msra.mxu0 %v3718
      %3786 = vmatprep.subr.mxu0 %v3723
      %3787 = vmatpush1.msra.mxu0 %v3722
      %3788 = vmatprep.subr.mxu0 %v3727
      %3789 = vmatpush1.msra.mxu0 %v3726
      %3790 = vmatprep.subr.mxu0 %v3731
      %3791 = vmatpush1.msra.mxu0 %v3730
      %3792 = vmatprep.subr.mxu0 %v3735
      %3793 = vmatpush1.msra.mxu0 %v3734
      %3794 = vmatprep.subr.mxu0 %v3739
      %3795 = vmatpush1.msra.mxu0 %v3738
      %3796 = vmatprep.subr.mxu0 %v3743
      %3797 = vmatpush1.msra.mxu0 %v3742
      %3798 = vmatprep.subr.mxu0 %v3747
      %3799 = vmatpush1.msra.mxu0 %v3746
      %3800 = vmatprep.subr.mxu0 %v3751
      %3801 = vmatpush1.msra.mxu0 %v3750
      %3802 = vmatprep.subr.mxu0 %v3755
      %3803 = vmatpush1.msra.mxu0 %v3754
      %3804 = vmatprep.subr.mxu0 %v3759
      %3805 = vmatpush1.msra.mxu0 %v3758
      %3806 = vmatprep.subr.mxu0 0.0
      %3807 = vmatpush1.msra.mxu0 0.0
      %3808 = vmatprep.subr.mxu0 0.0
      %3809 = vmatpush1.msra.mxu0 0.0
      %3810 = vmatprep.subr.mxu0 0.0
      %3811 = vmatpush1.msra.mxu0 0.0
      %3812 = vmatprep.subr.mxu0 0.0
      %3813 = vmatpush1.msra.mxu0 0.0
      %3814 = vmatprep.subr.mxu0 0.0
      %3815 = vmatpush1.msra.mxu0 0.0
      %3816 = vmatprep.subr.mxu0 0.0
      %3817 = vmatpush1.msra.mxu0 0.0
      %3818 = vmatprep.subr.mxu0 0.0
      %3819 = vmatpush1.msra.mxu0 0.0
      %3820 = vmatprep.subr.mxu0 0.0
      %3821 = vmatpush1.msra.mxu0 0.0
      %3822 = vmatprep.subr.mxu0 0.0
      %3823 = vmatpush1.msra.mxu0 0.0
      %3824 = vmatprep.subr.mxu0 0.0
      %3825 = vmatpush1.msra.mxu0 0.0
      %3826 = vmatprep.subr.mxu0 0.0
      %3827 = vmatpush1.msra.mxu0 0.0
      %3828 = vmatprep.subr.mxu0 0.0
      %3829 = vmatpush1.msra.mxu0 0.0
      %3830 = vmatprep.subr.mxu0 0.0
      %3831 = vmatpush1.msra.mxu0 0.0
      %3832 = vmatprep.subr.mxu0 0.0
      %3833 = vmatpush1.msra.mxu0 0.0
      %3834 = vmatprep.mubr.f32.mxu0 %v3768
      %3835 = vmatmul.mubr.f32.gmra.mrb[0].mxu0 %v3359
      %v3836 = vpop.f32.mrb[0].mxu0
      %v3837 = vadd.f32 %v3765, %v3836
      %v3838 = vpop.f32.mrb[0].mxu0
      %v3839 = vadd.f32 %v3765, %v3838
      %3840 = vdwg.mxu0
      %3841 = vmatprep.subr.mxu0 %v3693
      %3842 = vmatpush1.msra.mxu0 %v3692
      %3843 = vmatprep.subr.mxu0 %v3697
      %3844 = vmatpush1.msra.mxu0 %v3696
      %3845 = vmatprep.subr.mxu0 %v3701
      %3846 = vmatpush1.msra.mxu0 %v3700
      %3847 = vmatprep.subr.mxu0 %v3705
      %3848 = vmatpush1.msra.mxu0 %v3704
      %3849 = vmatprep.subr.mxu0 %v3709
      %3850 = vmatpush1.msra.mxu0 %v3708
      %3851 = vmatprep.subr.mxu0 %v3713
      %3852 = vmatpush1.msra.mxu0 %v3712
      %3853 = vmatprep.subr.mxu0 %v3717
      %3854 = vmatpush1.msra.mxu0 %v3716
      %3855 = vmatprep.subr.mxu0 %v3721
      %3856 = vmatpush1.msra.mxu0 %v3720
      %3857 = vmatprep.subr.mxu0 %v3725
      %3858 = vmatpush1.msra.mxu0 %v3724
      %3859 = vmatprep.subr.mxu0 %v3729
      %3860 = vmatpush1.msra.mxu0 %v3728
      %3861 = vmatprep.subr.mxu0 %v3733
      %3862 = vmatpush1.msra.mxu0 %v3732
      %3863 = vmatprep.subr.mxu0 %v3737
      %3864 = vmatpush1.msra.mxu0 %v3736
      %3865 = vmatprep.subr.mxu0 %v3741
      %3866 = vmatpush1.msra.mxu0 %v3740
      %3867 = vmatprep.subr.mxu0 %v3745
      %3868 = vmatpush1.msra.mxu0 %v3744
      %3869 = vmatprep.subr.mxu0 %v3749
      %3870 = vmatpush1.msra.mxu0 %v3748
      %3871 = vmatprep.subr.mxu0 %v3753
      %3872 = vmatpush1.msra.mxu0 %v3752
      %3873 = vmatprep.subr.mxu0 %v3757
      %3874 = vmatpush1.msra.mxu0 %v3756
      %3875 = vmatprep.subr.mxu0 %v3761
      %3876 = vmatpush1.msra.mxu0 %v3760
      %3877 = vmatprep.subr.mxu0 0.0
      %3878 = vmatpush1.msra.mxu0 0.0
      %3879 = vmatprep.subr.mxu0 0.0
      %3880 = vmatpush1.msra.mxu0 0.0
      %3881 = vmatprep.subr.mxu0 0.0
      %3882 = vmatpush1.msra.mxu0 0.0
      %3883 = vmatprep.subr.mxu0 0.0
      %3884 = vmatpush1.msra.mxu0 0.0
      %3885 = vmatprep.subr.mxu0 0.0
      %3886 = vmatpush1.msra.mxu0 0.0
      %3887 = vmatprep.subr.mxu0 0.0
      %3888 = vmatpush1.msra.mxu0 0.0
      %3889 = vmatprep.subr.mxu0 0.0
      %3890 = vmatpush1.msra.mxu0 0.0
      %3891 = vmatprep.subr.mxu0 0.0
      %3892 = vmatpush1.msra.mxu0 0.0
      %3893 = vmatprep.subr.mxu0 0.0
      %3894 = vmatpush1.msra.mxu0 0.0
      %3895 = vmatprep.subr.mxu0 0.0
      %3896 = vmatpush1.msra.mxu0 0.0
      %3897 = vmatprep.subr.mxu0 0.0
      %3898 = vmatpush1.msra.mxu0 0.0
      %3899 = vmatprep.subr.mxu0 0.0
      %3900 = vmatpush1.msra.mxu0 0.0
      %3901 = vmatprep.subr.mxu0 0.0
      %3902 = vmatpush1.msra.mxu0 0.0
      %3903 = vmatprep.subr.mxu0 0.0
      %3904 = vmatpush1.msra.mxu0 0.0
      %3905 = vmatprep.mubr.f32.mxu0 %v3768
      %3906 = vmatmul.mubr.f32.gmra.mrb[0].mxu0 %v3359
      %v3907 = vpop.f32.mrb[0].mxu0
      %v3908 = vadd.f32 %v3765, %v3907
      %v3909 = vpop.f32.mrb[0].mxu0
      %v3910 = vadd.f32 %v3765, %v3909
      %3911 = vdwg.mxu0
      %v3912 = vtanh.pop %v3837
      %v3913 = vtanh.pop %v3839
      %v3914 = vtanh.pop %v3908
      %v3915 = vtanh.pop %v3910
      %3916 = vst [vmem:[%s251] sm:$0xff] %v3912
      %3917 = vst [vmem:[%s251 + $0x8] sm:$0xff] %v3913
      %3918 = vst [vmem:[%s251 + $0x10] sm:$0xff] %v3914
      %3919 = vst [vmem:[%s251 + $0x18] sm:$0xff] %v3915
      %p3920 = scmp.lt.s32.totalorder %s17, 1
      %s3921 = scalar_select %p3920, %s17, 1
      %s3922 = smul.addr %s3921, 4
      %s3923 = smul.addr %s3922, 8
      %s3924 = scalar_lea.vmem %s6, %s3923
      // Predicated region
      $region45: #{decoder_forward.1} parent=43 // pred_check
        %p3925 = pneg %p166
      $region46: #{decoder_forward.1} parent=43 // pred_check_branch
        %3927 = sbr.rel (%p3925) target = $region48
      $region47: #{decoder_forward.1} parent=43 // pred_region
        _
      $region48: #{decoder_forward.1} parent=43 // pred_fallthru
        _
    $region44: #{decoder_forward.1} parent=5 // pred_fallthru
      _
    %p3928 = scmp.le.s32.totalorder 2, %s12
    // Predicated region
    $region49: #{decoder_forward.1} parent=5 // pred_check
      %p3929 = pneg %p3928
    $region50: #{decoder_forward.1} parent=5 // pred_check_branch
      %3931 = sbr.rel (%p3929) target = $region52
    $region51: #{decoder_forward.1} parent=5 // pred_region
      %s3932 = ssub.s32 %s12, 2
      // Predicated region
      $region53: #{decoder_forward.1} parent=51 // pred_check
        %p3933 = pneg %p172
      $region54: #{decoder_forward.1} parent=51 // pred_check_branch
        %3935 = sbr.rel (%p3933) target = $region56
      $region55: #{decoder_forward.1} parent=51 // pred_region
        %p3936 = scmp.lt.s32.totalorder %s18, 1
        %s3937 = scalar_select %p3936, %s18, 1
        %s3938 = smul.addr %s3937, 4
        %s3939 = smul.addr %s3938, 8
        %s3940 = scalar_lea.vmem %s6, %s3939
      $region56: #{decoder_forward.1} parent=51 // pred_fallthru
        _
    $region52: #{decoder_forward.1} parent=5 // pred_fallthru
      _
  $region6: #{decoder_forward.1} parent=0 // loop_footer
    %s16 = sadd.s32 1, %s12
  $region7: #{decoder_forward.1} parent=0 // loop_footer_branch
    %11 = sbr.rel target = $region3
  $region8: #{decoder_forward.1} parent=0 // loop_exit
    _

</llo_original>
